<compile_context>
chip_gen: v7x
topology: tpu7x:2x2x1
jax: 0.10.0
libtpu: 0.0.40
codegen_flags: <defaults>
</compile_context>

<pallas_src>
import functools

import jax
import jax.numpy as jnp
from jax import lax
from jax.experimental import pallas as pl
from jax.experimental.pallas import tpu as pltpu

EPS = 1e-12      # matches F.normalize eps (clamp on the L2 norm)
LANES = 128
HALO = 8         # sublane-aligned halo rows per side (only 2 of them are real)


def _round_up(n, m):
    return (n + m - 1) // m * m


def _pad_last(a, target):
    pad = target - a.shape[-1]
    if pad == 0:
        return a
    return jnp.pad(a, [(0, 0)] * (a.ndim - 1) + [(0, pad)])


def _silu(x):
    return x * jax.nn.sigmoid(x)


def _rmsnorm(x, g, real_c):
    # ConvRMSNorm over the channel (lane) axis. Padded lanes are exactly zero,
    # so the L2 norm over the padded 128 lanes equals the real-channel norm.
    norm = jnp.sqrt(jnp.sum(x * x, axis=-1, keepdims=True))
    return x / jnp.maximum(norm, EPS) * (float(real_c) ** 0.5) * g


def resnet_block_kernel(lens_ref,                       # int32[B] scalar prefetch (SMEM)
                        x_ref, lhalo_ref, rhalo_ref,
                        scale_ref, shift_ref, gate_ref,
                        g1_ref, w1_ref, b1_ref,
                        g2_ref, w2_ref, b2_ref,
                        wres_ref, bres_ref,
                        o_ref, *, tl, cin, cout):
    b = pl.program_id(0)
    j = pl.program_id(1)
    ext = tl + 2 * HALO

    x_bf = x_ref[...]                                   # (tl, Cp_in) bf16 core tile

    # Extended f32 slab: [left halo (8) | tile (tl) | right halo (8)] rows.
    # Every piece is 8-row aligned, so the concat is a plain aligned copy.
    x32 = jnp.concatenate(
        [lhalo_ref[...].astype(jnp.float32),
         x_bf.astype(jnp.float32),
         rhalo_ref[...].astype(jnp.float32)], axis=0)   # (ext, Cp_in)

    # Global L position of every slab row. (0 <= pos < lens[b]) reproduces both
    # the MaskedConv1d audio mask and the conv's zero padding at both sequence
    # edges (halo rows outside [0, lens) contribute exactly zero).
    pos = j * tl + lax.broadcasted_iota(jnp.int32, (ext, 1), 0) - HALO
    mask = jnp.logical_and(pos >= 0, pos < lens_ref[b]).astype(jnp.float32)

    def conv3(hm, w_ref_, b_ref_):
        # Conv1d(k=3, padding=1) over L as 3 accumulating bf16 MXU dots (no lane
        # concat). pltpu.roll wraps rows 0 / ext-1, but those rows are never
        # stored and never feed a stored row, and the position mask already
        # zeroes every out-of-range input row, so no boundary select is needed.
        # TODO(synk): roll the bf16 copy instead (halves these f32 temporaries)
        # once packed-sublane rolls are verified on the target toolchain; on
        # v6e/v7x the surrounding elementwise chain could also run in bf16.
        h_prev = pltpu.roll(hm, 1, 0)                   # hm[r-1]
        h_next = pltpu.roll(hm, ext - 1, 0)             # hm[r+1]
        y = jnp.dot(h_prev.astype(jnp.bfloat16), w_ref_[0],
                    preferred_element_type=jnp.float32)
        y += jnp.dot(hm.astype(jnp.bfloat16), w_ref_[1],
                     preferred_element_type=jnp.float32)
        y += jnp.dot(h_next.astype(jnp.bfloat16), w_ref_[2],
                     preferred_element_type=jnp.float32)
        return y + b_ref_[...]

    # ---- block1: norm -> SiLU -> mask -> conv3 ------------------------------
    h = _rmsnorm(x32, g1_ref[...], cin)
    hm = _silu(h) * mask                                # (ext, Cp_in) f32
    h1 = conv3(hm, w1_ref, b1_ref)                      # (ext, Cp_out) f32
    # h1 is correct on rows [HALO-1, HALO+tl] — the 1-row halo block2 needs.

    # ---- block2: norm -> (scale+1)*x + shift -> SiLU -> mask -> conv3 -------
    h2 = _rmsnorm(h1, g2_ref[...], cout)
    h2 = h2 * (scale_ref[...] + 1.0) + shift_ref[...]   # (1, Cp_out) broadcasts
    h2m = _silu(h2) * mask
    h2c = conv3(h2m, w2_ref, b2_ref)                    # (ext, Cp_out) f32

    # ---- gate + residual 1x1 conv over the core tile rows -------------------
    res = jnp.dot(x_bf, wres_ref[...],
                  preferred_element_type=jnp.float32) + bres_ref[...]
    out = h2c[HALO:HALO + tl] * gate_ref[...] + res     # aligned core-row slice
    o_ref[...] = out.astype(o_ref.dtype)


def _weight_spec(shape, single_buffer):
    nd = len(shape)
    imap = lambda b, j, ls, _nd=nd: (0,) * _nd
    if single_buffer:
        # Constant index map -> only ever DMA'd once; a single buffer saves VMEM.
        return pl.BlockSpec(shape, imap, pipeline_mode=pl.Buffered(1))
    return pl.BlockSpec(shape, imap)


def _vmem_limit_bytes():
    # Raise the scoped-VMEM cap (defaults are only 16/32/32 MiB on v5e/v6e/v7x):
    # ~0.85 * physical, capped at 100 MiB  (=> ~54 MiB on v7x, ~100 MiB on v5e/v6e).
    try:
        cap = int(pltpu.get_tpu_info().vmem_capacity_bytes)
    except Exception:
        cap = 64 * 1024 * 1024
    return int(min(int(cap * 0.85), 100 * 1024 * 1024))


def resnet_block(x, time_emb, lens, params, *, tl=None):
    """x: (B, L, Cin) f32 channel-last, time_emb: (B, T) f32, lens: int32[B].

    Returns the lane/row-padded activation (B, L_pad, Cp_out) f32 so chained
    ResnetBlocks can consume it directly; slice [:, :L, :Cout] to recover the
    (transposed) PyTorch output.
    """
    B, L, Cin = x.shape
    Cout = params["b1"].shape[-1]
    cp_in = _round_up(Cin, LANES)
    cp_out = _round_up(Cout, LANES)
    if tl is None:
        # TODO(synk): per-chip sweep — ~512 rows on v7x, 1024-2048 on v5e/v6e at C>=512.
        tl = min(512, _round_up(L, 8))
    assert tl % 8 == 0
    L_pad = _round_up(L, tl)
    nlt = L_pad // tl

    # Hoisted time-MLP (degenerate M=1 matmuls; better as one XLA batched dot).
    te_s = _silu(time_emb)

    def mlp(k):
        v = te_s @ params["w_mlp"][k] + params["b_mlp"][k]       # (B, Cout) f32
        return _pad_last(v, cp_out)[:, None, :]                  # (B, 1, Cp_out)

    scale, shift, gate = mlp(0), mlp(1), mlp(2)

    # Activations: lane-pad channels, cast to bf16 (halves HBM/VMEM traffic for
    # the dominant operand), row-pad L to a multiple of tl.
    x_p = _pad_last(x, cp_in).astype(jnp.bfloat16)               # (B, L, Cp_in)
    x_p = jnp.pad(x_p, ((0, 0), (0, L_pad - L), (0, 0)))         # (B, L_pad, Cp_in)

    # 8-row halo blocks per (batch, L-tile); only rows 6,7 (left) / 0,1 (right)
    # carry the conv's +-2 neighbours, the rest just keep everything aligned.
    # TODO(synk): when chaining blocks at production sizes (C already 128k) feed
    # the padded activation straight through and fetch the halo via manual DMA
    # instead of materializing these side tensors in the wrapper.
    x_pp = jnp.pad(x_p, ((0, 0), (HALO, HALO), (0, 0)))          # (B, L_pad+16, Cp_in)
    lhalo = jnp.stack([x_pp[:, j * tl:j * tl + HALO]
                       for j in range(nlt)], axis=1)             # (B, nlt, 8, Cp_in)
    rhalo = jnp.stack([x_pp[:, HALO + (j + 1) * tl:2 * HALO + (j + 1) * tl]
                       for j in range(nlt)], axis=1)             # (B, nlt, 8, Cp_in)

    def conv_w(w, ci, co):
        # (3, Cin, Cout) -> zero-pad channels -> (3, ci, co) bf16, one matrix per tap.
        # TODO(synk): for tiny channel counts on v5e, pack the 3 taps' real
        # channels into one 128-lane K block instead of padding each tap.
        return jnp.pad(w, ((0, 0), (0, ci - w.shape[1]),
                           (0, co - w.shape[2]))).astype(jnp.bfloat16)

    g1 = _pad_last(params["g1"], cp_in)
    w1 = conv_w(params["w1"], cp_in, cp_out)
    b1 = _pad_last(params["b1"], cp_out)
    g2 = _pad_last(params["g2"], cp_out)
    w2 = conv_w(params["w2"], cp_out, cp_out)
    b2 = _pad_last(params["b2"], cp_out)
    wres = jnp.pad(params["w_res"],
                   ((0, cp_in - Cin), (0, cp_out - Cout))).astype(jnp.bfloat16)
    bres = _pad_last(params["b_res"], cp_out)

    kernel = functools.partial(resnet_block_kernel, tl=tl, cin=Cin, cout=Cout)

    # Advisory cost so XLA can schedule the hoisted MLP / pads around the call.
    m_rows = B * L_pad
    flops = 2 * m_rows * cp_out * (3 * cp_in + 3 * cp_out + cp_in)
    bytes_acc = (m_rows * cp_in * 2 + m_rows * cp_out * 4
                 + (3 * cp_in + 3 * cp_out + cp_in) * cp_out * 2)
    cost = pl.CostEstimate(flops=int(flops),
                           transcendentals=int(m_rows * (cp_in + cp_out)),
                           bytes_accessed=int(bytes_acc))

    def build(single_buffer_weights):
        grid_spec = pltpu.PrefetchScalarGridSpec(
            num_scalar_prefetch=1,                     # lens -> SMEM, no mask DMA
            grid=(B, nlt),
            in_specs=[
                pl.BlockSpec((None, tl, cp_in), lambda b, j, ls: (b, j, 0)),            # x tile
                pl.BlockSpec((None, None, HALO, cp_in), lambda b, j, ls: (b, j, 0, 0)),  # left halo
                pl.BlockSpec((None, None, HALO, cp_in), lambda b, j, ls: (b, j, 0, 0)),  # right halo
                pl.BlockSpec((None, 1, cp_out), lambda b, j, ls: (b, 0, 0)),            # scale
                pl.BlockSpec((None, 1, cp_out), lambda b, j, ls: (b, 0, 0)),            # shift
                pl.BlockSpec((None, 1, cp_out), lambda b, j, ls: (b, 0, 0)),            # gate
                _weight_spec((1, cp_in), single_buffer_weights),            # g1
                _weight_spec((3, cp_in, cp_out), single_buffer_weights),    # w1
                _weight_spec((1, cp_out), single_buffer_weights),           # b1
                _weight_spec((1, cp_out), single_buffer_weights),           # g2
                _weight_spec((3, cp_out, cp_out), single_buffer_weights),   # w2
                _weight_spec((1, cp_out), single_buffer_weights),           # b2
                _weight_spec((cp_in, cp_out), single_buffer_weights),       # w_res
                _weight_spec((1, cp_out), single_buffer_weights),           # b_res
            ],
            out_specs=pl.BlockSpec((None, tl, cp_out), lambda b, j, ls: (b, j, 0)),
        )
        return pl.pallas_call(
            kernel,
            out_shape=jax.ShapeDtypeStruct((B, L_pad, cp_out), jnp.float32),
            grid_spec=grid_spec,
            compiler_params=pltpu.CompilerParams(
                dimension_semantics=("parallel", "parallel"),
                vmem_limit_bytes=_vmem_limit_bytes()),
            cost_estimate=cost,
        )

    args = (jnp.asarray(lens, jnp.int32), x_p, lhalo, rhalo, scale, shift, gate,
            g1, w1, b1, g2, w2, b2, wres, bres)
    last_exc = None
    for single_buf in (True, False):   # fall back if pipeline_mode is unsupported
        try:
            return jax.block_until_ready(build(single_buf)(*args))
        except Exception as e:  # noqa: BLE001
            last_exc = e
    raise last_exc


def reference(x, time_emb, lens, p):
    """Pure-JAX reference (channel-last, unpadded; mirrors the kernel's bf16 points)."""
    B, L, Cin = x.shape
    Cout = p["b1"].shape[-1]
    x32 = x.astype(jnp.bfloat16).astype(jnp.float32)     # kernel streams x as bf16
    te_s = _silu(time_emb)
    scale = te_s @ p["w_mlp"][0] + p["b_mlp"][0]
    shift = te_s @ p["w_mlp"][1] + p["b_mlp"][1]
    gate = te_s @ p["w_mlp"][2] + p["b_mlp"][2]
    mask = (jnp.arange(L)[None, :] < lens[:, None]).astype(jnp.float32)[:, :, None]

    def conv3(h, w, b):
        hp = jnp.pad(h, ((0, 0), (1, 1), (0, 0))).astype(jnp.bfloat16)
        wb = w.astype(jnp.bfloat16)
        y = jnp.einsum("blc,cf->blf", hp[:, :-2], wb[0],
                       preferred_element_type=jnp.float32)
        y += jnp.einsum("blc,cf->blf", hp[:, 1:-1], wb[1],
                        preferred_element_type=jnp.float32)
        y += jnp.einsum("blc,cf->blf", hp[:, 2:], wb[2],
                        preferred_element_type=jnp.float32)
        return y + b

    h = _rmsnorm(x32, p["g1"], Cin)
    h = _silu(h) * mask
    h = conv3(h, p["w1"], p["b1"])
    h2 = _rmsnorm(h, p["g2"], Cout)
    h2 = h2 * (scale[:, None, :] + 1.0) + shift[:, None, :]
    h2 = _silu(h2) * mask
    h2 = conv3(h2, p["w2"], p["b2"])
    res = jnp.einsum("blc,cf->blf", x32.astype(jnp.bfloat16),
                     p["w_res"].astype(jnp.bfloat16),
                     preferred_element_type=jnp.float32) + p["b_res"]
    return h2 * gate[:, None, :] + res


if __name__ == "__main__":
    # ResnetBlock(dim=32, dim_out=64, time_emb_dim=32); B=4, L=40, L-tile=16.
    B, L, Cin, Cout, T = 4, 40, 32, 64, 32

    key = jax.random.PRNGKey(0)
    ks = jax.random.split(key, 10)

    # PyTorch-layout input (N, C, L), transposed to the kernel layout (B, L, C).
    x_ncl = jax.random.normal(ks[0], (B, Cin, L), jnp.float32)
    time_emb = jax.random.normal(ks[1], (B, T), jnp.float32)
    lens = jnp.array([L, L - 7, 19, 5], dtype=jnp.int32)   # audio_mask lengths

    s = 0.1
    params = {
        # w[k] <-> W_torch[:, :, k].T  (tap k=0 hits x[l-1], k=2 hits x[l+1])
        "g1": jnp.ones((1, Cin), jnp.float32),
        "w1": s * jax.random.normal(ks[2], (3, Cin, Cout), jnp.float32),
        "b1": s * jax.random.normal(ks[3], (1, Cout), jnp.float32),
        "g2": jnp.ones((1, Cout), jnp.float32),
        "w2": s * jax.random.normal(ks[4], (3, Cout, Cout), jnp.float32),
        "b2": s * jax.random.normal(ks[5], (1, Cout), jnp.float32),
        # TODO(synk): reference __init__ zero-inits this Linear (zero_init_); small
        # random values are used so the scale/shift/gate path is non-trivial.
        "w_mlp": s * jax.random.normal(ks[6], (3, T, Cout), jnp.float32),
        "b_mlp": s * jax.random.normal(ks[7], (3, 1, Cout), jnp.float32),
        "w_res": s * jax.random.normal(ks[8], (Cin, Cout), jnp.float32),
        "b_res": s * jax.random.normal(ks[9], (1, Cout), jnp.float32),
    }

    x = jnp.transpose(x_ncl, (0, 2, 1))      # (B, L, Cin), channel-last

    out_padded = resnet_block(x, time_emb, lens, params, tl=16)
    out_padded = jax.block_until_ready(out_padded)
    out = out_padded[:, :L, :Cout]           # unpad only for the correctness check

    ref = reference(x, time_emb, lens, params)
    err = float(jnp.max(jnp.abs(out - ref)))
    assert out.shape == (B, L, Cout), out.shape
    # Kernel and reference both stream x / matmul inputs as bf16 with f32
    # accumulation; the tolerance only covers accumulation-order differences.
    assert err < 1e-2, f"max abs err = {err}"
    print("KERNEL_OK")
</pallas_src>

<mosaic_0001>
module attributes {stable_mosaic.version = 11 : i64} {
  func.func @resnet_block_kernel(%arg0: i32, %arg1: i32, %arg2: memref<4xi32, #tpu.memory_space<smem>>, %arg3: memref<1x16x128xbf16, #tpu.memory_space<vmem>>, %arg4: memref<1x1x8x128xbf16, #tpu.memory_space<vmem>>, %arg5: memref<1x1x8x128xbf16, #tpu.memory_space<vmem>>, %arg6: memref<1x1x128xf32, #tpu.memory_space<vmem>>, %arg7: memref<1x1x128xf32, #tpu.memory_space<vmem>>, %arg8: memref<1x1x128xf32, #tpu.memory_space<vmem>>, %arg9: memref<1x128xf32, #tpu.memory_space<vmem>>, %arg10: memref<3x128x128xbf16, #tpu.memory_space<vmem>>, %arg11: memref<1x128xf32, #tpu.memory_space<vmem>>, %arg12: memref<1x128xf32, #tpu.memory_space<vmem>>, %arg13: memref<3x128x128xbf16, #tpu.memory_space<vmem>>, %arg14: memref<1x128xf32, #tpu.memory_space<vmem>>, %arg15: memref<128x128xbf16, #tpu.memory_space<vmem>>, %arg16: memref<1x128xf32, #tpu.memory_space<vmem>>, %arg17: memref<1x16x128xf32, #tpu.memory_space<vmem>>) attributes {dimension_semantics = [#tpu.dimension_semantics<parallel>, #tpu.dimension_semantics<parallel>], iteration_bounds = array<i64: 4, 3>, scalar_prefetch = 1 : i64, scratch_operands = 0 : i64, tpu.core_type = #tpu.core_type<tc>, window_params = [{transform_indices = @transform_0, window_bounds = array<i64: 1, 16, 128>}, {transform_indices = @transform_1, window_bounds = array<i64: 1, 1, 8, 128>}, {transform_indices = @transform_2, window_bounds = array<i64: 1, 1, 8, 128>}, {transform_indices = @transform_3, window_bounds = array<i64: 1, 1, 128>}, {transform_indices = @transform_4, window_bounds = array<i64: 1, 1, 128>}, {transform_indices = @transform_5, window_bounds = array<i64: 1, 1, 128>}, {pipeline_mode = #tpu.pipeline_mode<synchronous>, transform_indices = @transform_6, window_bounds = array<i64: 1, 128>}, {pipeline_mode = #tpu.pipeline_mode<synchronous>, transform_indices = @transform_7, window_bounds = array<i64: 3, 128, 128>}, {pipeline_mode = #tpu.pipeline_mode<synchronous>, transform_indices = @transform_8, window_bounds = array<i64: 1, 128>}, {pipeline_mode = #tpu.pipeline_mode<synchronous>, transform_indices = @transform_9, window_bounds = array<i64: 1, 128>}, {pipeline_mode = #tpu.pipeline_mode<synchronous>, transform_indices = @transform_10, window_bounds = array<i64: 3, 128, 128>}, {pipeline_mode = #tpu.pipeline_mode<synchronous>, transform_indices = @transform_11, window_bounds = array<i64: 1, 128>}, {pipeline_mode = #tpu.pipeline_mode<synchronous>, transform_indices = @transform_12, window_bounds = array<i64: 128, 128>}, {pipeline_mode = #tpu.pipeline_mode<synchronous>, transform_indices = @transform_13, window_bounds = array<i64: 1, 128>}, {transform_indices = @transform_14, window_bounds = array<i64: 1, 16, 128>}]} {
    %c0 = arith.constant 0 : index
    %c0_0 = arith.constant 0 : index
    %c0_1 = arith.constant 0 : index
    %0 = vector.load %arg3[%c0, %c0_0, %c0_1] : memref<1x16x128xbf16, #tpu.memory_space<vmem>>, vector<1x16x128xbf16>
    %1 = vector.shape_cast %0 : vector<1x16x128xbf16> to vector<16x128xbf16>
    %c0_2 = arith.constant 0 : index
    %c0_3 = arith.constant 0 : index
    %c0_4 = arith.constant 0 : index
    %c0_5 = arith.constant 0 : index
    %2 = vector.load %arg4[%c0_2, %c0_3, %c0_4, %c0_5] : memref<1x1x8x128xbf16, #tpu.memory_space<vmem>>, vector<1x1x8x128xbf16>
    %3 = vector.shape_cast %2 : vector<1x1x8x128xbf16> to vector<8x128xbf16>
    %4 = arith.extf %3 : vector<8x128xbf16> to vector<8x128xf32>
    %5 = arith.extf %1 : vector<16x128xbf16> to vector<16x128xf32>
    %c0_6 = arith.constant 0 : index
    %c0_7 = arith.constant 0 : index
    %c0_8 = arith.constant 0 : index
    %c0_9 = arith.constant 0 : index
    %6 = vector.load %arg5[%c0_6, %c0_7, %c0_8, %c0_9] : memref<1x1x8x128xbf16, #tpu.memory_space<vmem>>, vector<1x1x8x128xbf16>
    %7 = vector.shape_cast %6 : vector<1x1x8x128xbf16> to vector<8x128xbf16>
    %8 = arith.extf %7 : vector<8x128xbf16> to vector<8x128xf32>
    %9 = tpu.concatenate %4, %5, %8 in 0 : vector<8x128xf32>, vector<16x128xf32>, vector<8x128xf32> -> vector<32x128xf32>
    %c16_i32 = arith.constant 16 : i32
    %10 = arith.muli %arg1, %c16_i32 : i32
    %11 = tpu.iota {dimensions = array<i32: 0>} : vector<32x1xi32>
    %12 = vector.broadcast %10 : i32 to vector<32x1xi32>
    %13 = arith.addi %12, %11 : vector<32x1xi32>
    %c8_i32 = arith.constant 8 : i32
    %14 = vector.broadcast %c8_i32 : i32 to vector<32x1xi32>
    %15 = arith.subi %13, %14 : vector<32x1xi32>
    %c0_i32 = arith.constant 0 : i32
    %16 = vector.broadcast %c0_i32 : i32 to vector<32x1xi32>
    %17 = arith.cmpi sge, %15, %16 : vector<32x1xi32>
    %18 = arith.index_cast %arg0 : i32 to index
    %19 = memref.load %arg2[%18] : memref<4xi32, #tpu.memory_space<smem>>
    %20 = vector.broadcast %19 : i32 to vector<32x1xi32>
    %21 = arith.cmpi slt, %15, %20 : vector<32x1xi32>
    %22 = arith.andi %17, %21 : vector<32x1xi1>
    %23 = arith.extui %22 : vector<32x1xi1> to vector<32x1xi32>
    %24 = arith.sitofp %23 : vector<32x1xi32> to vector<32x1xf32>
    %c0_10 = arith.constant 0 : index
    %c0_11 = arith.constant 0 : index
    %25 = vector.load %arg9[%c0_10, %c0_11] : memref<1x128xf32, #tpu.memory_space<vmem>>, vector<1x128xf32>
    %26 = arith.mulf %9, %9 : vector<32x128xf32>
    %cst = arith.constant dense<0.000000e+00> : vector<32xf32>
    %27 = vector.multi_reduction <add>, %26, %cst [1] : vector<32x128xf32> to vector<32xf32>
    %28 = vector.shape_cast %27 : vector<32xf32> to vector<32x1xf32>
    %29 = math.sqrt %28 : vector<32x1xf32>
    %cst_12 = arith.constant 9.99999996E-13 : f32
    %30 = vector.broadcast %cst_12 : f32 to vector<32x1xf32>
    %31 = arith.maximumf %29, %30 : vector<32x1xf32>
    %32 = vector.broadcast %31 : vector<32x1xf32> to vector<32x128xf32>
    %33 = arith.divf %9, %32 : vector<32x128xf32>
    %cst_13 = arith.constant 5.65685415 : f32
    %34 = vector.broadcast %cst_13 : f32 to vector<32x128xf32>
    %35 = arith.mulf %33, %34 : vector<32x128xf32>
    %36 = vector.broadcast %25 : vector<1x128xf32> to vector<32x128xf32>
    %37 = arith.mulf %35, %36 : vector<32x128xf32>
    %38 = arith.negf %37 : vector<32x128xf32>
    %39 = math.exp %38 : vector<32x128xf32>
    %cst_14 = arith.constant 1.000000e+00 : f32
    %40 = vector.broadcast %cst_14 : f32 to vector<32x128xf32>
    %41 = arith.addf %40, %39 : vector<32x128xf32>
    %42 = arith.divf %40, %41 : vector<32x128xf32>
    %43 = arith.mulf %37, %42 : vector<32x128xf32>
    %44 = vector.broadcast %24 : vector<32x1xf32> to vector<32x128xf32>
    %45 = arith.mulf %43, %44 : vector<32x128xf32>
    %c1_i32 = arith.constant 1 : i32
    %46 = tpu.dynamic_rotate %45 by %c1_i32 dim 0 : vector<32x128xf32>, i32 -> vector<32x128xf32>
    %c31_i32 = arith.constant 31 : i32
    %47 = tpu.dynamic_rotate %45 by %c31_i32 dim 0 : vector<32x128xf32>, i32 -> vector<32x128xf32>
    %48 = arith.truncf %46 : vector<32x128xf32> to vector<32x128xbf16>
    %c0_15 = arith.constant 0 : index
    %c0_16 = arith.constant 0 : index
    %c0_17 = arith.constant 0 : index
    %49 = vector.load %arg10[%c0_15, %c0_16, %c0_17] : memref<3x128x128xbf16, #tpu.memory_space<vmem>>, vector<1x128x128xbf16>
    %50 = vector.shape_cast %49 : vector<1x128x128xbf16> to vector<128x128xbf16>
    %cst_18 = arith.constant dense<0.000000e+00> : vector<32x128xf32>
    %51 = tpu.matmul %48, %50, %cst_18 {dimension_numbers = #tpu.dot_dimension_numbers<[1], [0], [0], [1], [0, 0, 1, 1], [], []>} : vector<32x128xbf16>, vector<128x128xbf16>, vector<32x128xf32> -> vector<32x128xf32>
    %52 = arith.truncf %45 : vector<32x128xf32> to vector<32x128xbf16>
    %c1 = arith.constant 1 : index
    %c0_19 = arith.constant 0 : index
    %c0_20 = arith.constant 0 : index
    %53 = vector.load %arg10[%c1, %c0_19, %c0_20] : memref<3x128x128xbf16, #tpu.memory_space<vmem>>, vector<1x128x128xbf16>
    %54 = vector.shape_cast %53 : vector<1x128x128xbf16> to vector<128x128xbf16>
    %cst_21 = arith.constant dense<0.000000e+00> : vector<32x128xf32>
    %55 = tpu.matmul %52, %54, %cst_21 {dimension_numbers = #tpu.dot_dimension_numbers<[1], [0], [0], [1], [0, 0, 1, 1], [], []>} : vector<32x128xbf16>, vector<128x128xbf16>, vector<32x128xf32> -> vector<32x128xf32>
    %56 = arith.addf %51, %55 : vector<32x128xf32>
    %57 = arith.truncf %47 : vector<32x128xf32> to vector<32x128xbf16>
    %c2 = arith.constant 2 : index
    %c0_22 = arith.constant 0 : index
    %c0_23 = arith.constant 0 : index
    %58 = vector.load %arg10[%c2, %c0_22, %c0_23] : memref<3x128x128xbf16, #tpu.memory_space<vmem>>, vector<1x128x128xbf16>
    %59 = vector.shape_cast %58 : vector<1x128x128xbf16> to vector<128x128xbf16>
    %cst_24 = arith.constant dense<0.000000e+00> : vector<32x128xf32>
    %60 = tpu.matmul %57, %59, %cst_24 {dimension_numbers = #tpu.dot_dimension_numbers<[1], [0], [0], [1], [0, 0, 1, 1], [], []>} : vector<32x128xbf16>, vector<128x128xbf16>, vector<32x128xf32> -> vector<32x128xf32>
    %61 = arith.addf %56, %60 : vector<32x128xf32>
    %c0_25 = arith.constant 0 : index
    %c0_26 = arith.constant 0 : index
    %62 = vector.load %arg11[%c0_25, %c0_26] : memref<1x128xf32, #tpu.memory_space<vmem>>, vector<1x128xf32>
    %63 = vector.broadcast %62 : vector<1x128xf32> to vector<32x128xf32>
    %64 = arith.addf %61, %63 : vector<32x128xf32>
    %c0_27 = arith.constant 0 : index
    %c0_28 = arith.constant 0 : index
    %65 = vector.load %arg12[%c0_27, %c0_28] : memref<1x128xf32, #tpu.memory_space<vmem>>, vector<1x128xf32>
    %66 = arith.mulf %64, %64 : vector<32x128xf32>
    %cst_29 = arith.constant dense<0.000000e+00> : vector<32xf32>
    %67 = vector.multi_reduction <add>, %66, %cst_29 [1] : vector<32x128xf32> to vector<32xf32>
    %68 = vector.shape_cast %67 : vector<32xf32> to vector<32x1xf32>
    %69 = math.sqrt %68 : vector<32x1xf32>
    %cst_30 = arith.constant 9.99999996E-13 : f32
    %70 = vector.broadcast %cst_30 : f32 to vector<32x1xf32>
    %71 = arith.maximumf %69, %70 : vector<32x1xf32>
    %72 = vector.broadcast %71 : vector<32x1xf32> to vector<32x128xf32>
    %73 = arith.divf %64, %72 : vector<32x128xf32>
    %cst_31 = arith.constant 8.000000e+00 : f32
    %74 = vector.broadcast %cst_31 : f32 to vector<32x128xf32>
    %75 = arith.mulf %73, %74 : vector<32x128xf32>
    %76 = vector.broadcast %65 : vector<1x128xf32> to vector<32x128xf32>
    %77 = arith.mulf %75, %76 : vector<32x128xf32>
    %c0_32 = arith.constant 0 : index
    %c0_33 = arith.constant 0 : index
    %c0_34 = arith.constant 0 : index
    %78 = vector.load %arg6[%c0_32, %c0_33, %c0_34] : memref<1x1x128xf32, #tpu.memory_space<vmem>>, vector<1x1x128xf32>
    %79 = vector.shape_cast %78 : vector<1x1x128xf32> to vector<1x128xf32>
    %cst_35 = arith.constant 1.000000e+00 : f32
    %80 = vector.broadcast %cst_35 : f32 to vector<1x128xf32>
    %81 = arith.addf %79, %80 : vector<1x128xf32>
    %82 = vector.broadcast %81 : vector<1x128xf32> to vector<32x128xf32>
    %83 = arith.mulf %77, %82 : vector<32x128xf32>
    %c0_36 = arith.constant 0 : index
    %c0_37 = arith.constant 0 : index
    %c0_38 = arith.constant 0 : index
    %84 = vector.load %arg7[%c0_36, %c0_37, %c0_38] : memref<1x1x128xf32, #tpu.memory_space<vmem>>, vector<1x1x128xf32>
    %85 = vector.shape_cast %84 : vector<1x1x128xf32> to vector<1x128xf32>
    %86 = vector.broadcast %85 : vector<1x128xf32> to vector<32x128xf32>
    %87 = arith.addf %83, %86 : vector<32x128xf32>
    %88 = arith.negf %87 : vector<32x128xf32>
    %89 = math.exp %88 : vector<32x128xf32>
    %cst_39 = arith.constant 1.000000e+00 : f32
    %90 = vector.broadcast %cst_39 : f32 to vector<32x128xf32>
    %91 = arith.addf %90, %89 : vector<32x128xf32>
    %92 = arith.divf %90, %91 : vector<32x128xf32>
    %93 = arith.mulf %87, %92 : vector<32x128xf32>
    %94 = vector.broadcast %24 : vector<32x1xf32> to vector<32x128xf32>
    %95 = arith.mulf %93, %94 : vector<32x128xf32>
    %c1_i32_40 = arith.constant 1 : i32
    %96 = tpu.dynamic_rotate %95 by %c1_i32_40 dim 0 : vector<32x128xf32>, i32 -> vector<32x128xf32>
    %c31_i32_41 = arith.constant 31 : i32
    %97 = tpu.dynamic_rotate %95 by %c31_i32_41 dim 0 : vector<32x128xf32>, i32 -> vector<32x128xf32>
    %98 = arith.truncf %96 : vector<32x128xf32> to vector<32x128xbf16>
    %c0_42 = arith.constant 0 : index
    %c0_43 = arith.constant 0 : index
    %c0_44 = arith.constant 0 : index
    %99 = vector.load %arg13[%c0_42, %c0_43, %c0_44] : memref<3x128x128xbf16, #tpu.memory_space<vmem>>, vector<1x128x128xbf16>
    %100 = vector.shape_cast %99 : vector<1x128x128xbf16> to vector<128x128xbf16>
    %cst_45 = arith.constant dense<0.000000e+00> : vector<32x128xf32>
    %101 = tpu.matmul %98, %100, %cst_45 {dimension_numbers = #tpu.dot_dimension_numbers<[1], [0], [0], [1], [0, 0, 1, 1], [], []>} : vector<32x128xbf16>, vector<128x128xbf16>, vector<32x128xf32> -> vector<32x128xf32>
    %102 = arith.truncf %95 : vector<32x128xf32> to vector<32x128xbf16>
    %c1_46 = arith.constant 1 : index
    %c0_47 = arith.constant 0 : index
    %c0_48 = arith.constant 0 : index
    %103 = vector.load %arg13[%c1_46, %c0_47, %c0_48] : memref<3x128x128xbf16, #tpu.memory_space<vmem>>, vector<1x128x128xbf16>
    %104 = vector.shape_cast %103 : vector<1x128x128xbf16> to vector<128x128xbf16>
    %cst_49 = arith.constant dense<0.000000e+00> : vector<32x128xf32>
    %105 = tpu.matmul %102, %104, %cst_49 {dimension_numbers = #tpu.dot_dimension_numbers<[1], [0], [0], [1], [0, 0, 1, 1], [], []>} : vector<32x128xbf16>, vector<128x128xbf16>, vector<32x128xf32> -> vector<32x128xf32>
    %106 = arith.addf %101, %105 : vector<32x128xf32>
    %107 = arith.truncf %97 : vector<32x128xf32> to vector<32x128xbf16>
    %c2_50 = arith.constant 2 : index
    %c0_51 = arith.constant 0 : index
    %c0_52 = arith.constant 0 : index
    %108 = vector.load %arg13[%c2_50, %c0_51, %c0_52] : memref<3x128x128xbf16, #tpu.memory_space<vmem>>, vector<1x128x128xbf16>
    %109 = vector.shape_cast %108 : vector<1x128x128xbf16> to vector<128x128xbf16>
    %cst_53 = arith.constant dense<0.000000e+00> : vector<32x128xf32>
    %110 = tpu.matmul %107, %109, %cst_53 {dimension_numbers = #tpu.dot_dimension_numbers<[1], [0], [0], [1], [0, 0, 1, 1], [], []>} : vector<32x128xbf16>, vector<128x128xbf16>, vector<32x128xf32> -> vector<32x128xf32>
    %111 = arith.addf %106, %110 : vector<32x128xf32>
    %c0_54 = arith.constant 0 : index
    %c0_55 = arith.constant 0 : index
    %112 = vector.load %arg14[%c0_54, %c0_55] : memref<1x128xf32, #tpu.memory_space<vmem>>, vector<1x128xf32>
    %113 = vector.broadcast %112 : vector<1x128xf32> to vector<32x128xf32>
    %114 = arith.addf %111, %113 : vector<32x128xf32>
    %c0_56 = arith.constant 0 : index
    %c0_57 = arith.constant 0 : index
    %115 = vector.load %arg15[%c0_56, %c0_57] : memref<128x128xbf16, #tpu.memory_space<vmem>>, vector<128x128xbf16>
    %cst_58 = arith.constant dense<0.000000e+00> : vector<16x128xf32>
    %116 = tpu.matmul %1, %115, %cst_58 {dimension_numbers = #tpu.dot_dimension_numbers<[1], [0], [0], [1], [0, 0, 1, 1], [], []>} : vector<16x128xbf16>, vector<128x128xbf16>, vector<16x128xf32> -> vector<16x128xf32>
    %c0_59 = arith.constant 0 : index
    %c0_60 = arith.constant 0 : index
    %117 = vector.load %arg16[%c0_59, %c0_60] : memref<1x128xf32, #tpu.memory_space<vmem>>, vector<1x128xf32>
    %118 = vector.broadcast %117 : vector<1x128xf32> to vector<16x128xf32>
    %119 = arith.addf %116, %118 : vector<16x128xf32>
    %120 = vector.extract_strided_slice %114 {offsets = [8, 0], sizes = [16, 128], strides = [1, 1]} : vector<32x128xf32> to vector<16x128xf32>
    %c0_61 = arith.constant 0 : index
    %c0_62 = arith.constant 0 : index
    %c0_63 = arith.constant 0 : index
    %121 = vector.load %arg8[%c0_61, %c0_62, %c0_63] : memref<1x1x128xf32, #tpu.memory_space<vmem>>, vector<1x1x128xf32>
    %122 = vector.shape_cast %121 : vector<1x1x128xf32> to vector<1x128xf32>
    %123 = vector.broadcast %122 : vector<1x128xf32> to vector<16x128xf32>
    %124 = arith.mulf %120, %123 : vector<16x128xf32>
    %125 = arith.addf %124, %119 : vector<16x128xf32>
    %c0_64 = arith.constant 0 : index
    %c0_65 = arith.constant 0 : index
    %c0_66 = arith.constant 0 : index
    %126 = vector.load %arg17[%c0_64, %c0_65, %c0_66] : memref<1x16x128xf32, #tpu.memory_space<vmem>>, vector<1x16x128xf32>
    %127 = vector.shape_cast %126 : vector<1x16x128xf32> to vector<16x128xf32>
    %128 = vector.shape_cast %125 : vector<16x128xf32> to vector<1x16x128xf32>
    tpu.vector_store %arg17[%c0_64, %c0_65, %c0_66], %128 {strides = array<i32>} : memref<1x16x128xf32, #tpu.memory_space<vmem>>, vector<1x16x128xf32>,
    return
  }
  func.func @transform_0(%arg0: i32, %arg1: i32, %arg2: memref<4xi32, #tpu.memory_space<smem>>) -> (i32, i32, i32) {
    %c0_i32 = arith.constant 0 : i32
    %c0_i32_0 = arith.constant 0 : i32
    return %arg0, %arg1, %c0_i32 : i32, i32, i32
  }
  func.func @transform_1(%arg0: i32, %arg1: i32, %arg2: memref<4xi32, #tpu.memory_space<smem>>) -> (i32, i32, i32, i32) {
    %c0_i32 = arith.constant 0 : i32
    %c0_i32_0 = arith.constant 0 : i32
    %c0_i32_1 = arith.constant 0 : i32
    return %arg0, %arg1, %c0_i32, %c0_i32_0 : i32, i32, i32, i32
  }
  func.func @transform_2(%arg0: i32, %arg1: i32, %arg2: memref<4xi32, #tpu.memory_space<smem>>) -> (i32, i32, i32, i32) {
    %c0_i32 = arith.constant 0 : i32
    %c0_i32_0 = arith.constant 0 : i32
    %c0_i32_1 = arith.constant 0 : i32
    return %arg0, %arg1, %c0_i32, %c0_i32_0 : i32, i32, i32, i32
  }
  func.func @transform_3(%arg0: i32, %arg1: i32, %arg2: memref<4xi32, #tpu.memory_space<smem>>) -> (i32, i32, i32) {
    %c0_i32 = arith.constant 0 : i32
    %c0_i32_0 = arith.constant 0 : i32
    %c0_i32_1 = arith.constant 0 : i32
    return %arg0, %c0_i32, %c0_i32_0 : i32, i32, i32
  }
  func.func @transform_4(%arg0: i32, %arg1: i32, %arg2: memref<4xi32, #tpu.memory_space<smem>>) -> (i32, i32, i32) {
    %c0_i32 = arith.constant 0 : i32
    %c0_i32_0 = arith.constant 0 : i32
    %c0_i32_1 = arith.constant 0 : i32
    return %arg0, %c0_i32, %c0_i32_0 : i32, i32, i32
  }
  func.func @transform_5(%arg0: i32, %arg1: i32, %arg2: memref<4xi32, #tpu.memory_space<smem>>) -> (i32, i32, i32) {
    %c0_i32 = arith.constant 0 : i32
    %c0_i32_0 = arith.constant 0 : i32
    %c0_i32_1 = arith.constant 0 : i32
    return %arg0, %c0_i32, %c0_i32_0 : i32, i32, i32
  }
  func.func @transform_6(%arg0: i32, %arg1: i32, %arg2: memref<4xi32, #tpu.memory_space<smem>>) -> (i32, i32) {
    %c0_i32 = arith.constant 0 : i32
    %c0_i32_0 = arith.constant 0 : i32
    %c0_i32_1 = arith.constant 0 : i32
    return %c0_i32, %c0_i32_0 : i32, i32
  }
  func.func @transform_7(%arg0: i32, %arg1: i32, %arg2: memref<4xi32, #tpu.memory_space<smem>>) -> (i32, i32, i32) {
    %c0_i32 = arith.constant 0 : i32
    %c0_i32_0 = arith.constant 0 : i32
    %c0_i32_1 = arith.constant 0 : i32
    %c0_i32_2 = arith.constant 0 : i32
    return %c0_i32, %c0_i32_0, %c0_i32_1 : i32, i32, i32
  }
  func.func @transform_8(%arg0: i32, %arg1: i32, %arg2: memref<4xi32, #tpu.memory_space<smem>>) -> (i32, i32) {
    %c0_i32 = arith.constant 0 : i32
    %c0_i32_0 = arith.constant 0 : i32
    %c0_i32_1 = arith.constant 0 : i32
    return %c0_i32, %c0_i32_0 : i32, i32
  }
  func.func @transform_9(%arg0: i32, %arg1: i32, %arg2: memref<4xi32, #tpu.memory_space<smem>>) -> (i32, i32) {
    %c0_i32 = arith.constant 0 : i32
    %c0_i32_0 = arith.constant 0 : i32
    %c0_i32_1 = arith.constant 0 : i32
    return %c0_i32, %c0_i32_0 : i32, i32
  }
  func.func @transform_10(%arg0: i32, %arg1: i32, %arg2: memref<4xi32, #tpu.memory_space<smem>>) -> (i32, i32, i32) {
    %c0_i32 = arith.constant 0 : i32
    %c0_i32_0 = arith.constant 0 : i32
    %c0_i32_1 = arith.constant 0 : i32
    %c0_i32_2 = arith.constant 0 : i32
    return %c0_i32, %c0_i32_0, %c0_i32_1 : i32, i32, i32
  }
  func.func @transform_11(%arg0: i32, %arg1: i32, %arg2: memref<4xi32, #tpu.memory_space<smem>>) -> (i32, i32) {
    %c0_i32 = arith.constant 0 : i32
    %c0_i32_0 = arith.constant 0 : i32
    %c0_i32_1 = arith.constant 0 : i32
    return %c0_i32, %c0_i32_0 : i32, i32
  }
  func.func @transform_12(%arg0: i32, %arg1: i32, %arg2: memref<4xi32, #tpu.memory_space<smem>>) -> (i32, i32) {
    %c0_i32 = arith.constant 0 : i32
    %c0_i32_0 = arith.constant 0 : i32
    %c0_i32_1 = arith.constant 0 : i32
    return %c0_i32, %c0_i32_0 : i32, i32
  }
  func.func @transform_13(%arg0: i32, %arg1: i32, %arg2: memref<4xi32, #tpu.memory_space<smem>>) -> (i32, i32) {
    %c0_i32 = arith.constant 0 : i32
    %c0_i32_0 = arith.constant 0 : i32
    %c0_i32_1 = arith.constant 0 : i32
    return %c0_i32, %c0_i32_0 : i32, i32
  }
  func.func @transform_14(%arg0: i32, %arg1: i32, %arg2: memref<4xi32, #tpu.memory_space<smem>>) -> (i32, i32, i32) {
    %c0_i32 = arith.constant 0 : i32
    %c0_i32_0 = arith.constant 0 : i32
    return %arg0, %arg1, %c0_i32 : i32, i32, i32
  }
}

module attributes {stable_mosaic.version = 11 : i64} {
  func.func @resnet_block_kernel(%arg0: i32, %arg1: i32, %arg2: memref<4xi32, #tpu.memory_space<smem>>, %arg3: memref<1x16x128xbf16, #tpu.memory_space<vmem>>, %arg4: memref<1x1x8x128xbf16, #tpu.memory_space<vmem>>, %arg5: memref<1x1x8x128xbf16, #tpu.memory_space<vmem>>, %arg6: memref<1x1x128xf32, #tpu.memory_space<vmem>>, %arg7: memref<1x1x128xf32, #tpu.memory_space<vmem>>, %arg8: memref<1x1x128xf32, #tpu.memory_space<vmem>>, %arg9: memref<1x128xf32, #tpu.memory_space<vmem>>, %arg10: memref<3x128x128xbf16, #tpu.memory_space<vmem>>, %arg11: memref<1x128xf32, #tpu.memory_space<vmem>>, %arg12: memref<1x128xf32, #tpu.memory_space<vmem>>, %arg13: memref<3x128x128xbf16, #tpu.memory_space<vmem>>, %arg14: memref<1x128xf32, #tpu.memory_space<vmem>>, %arg15: memref<128x128xbf16, #tpu.memory_space<vmem>>, %arg16: memref<1x128xf32, #tpu.memory_space<vmem>>, %arg17: memref<1x16x128xf32, #tpu.memory_space<vmem>>) attributes {dimension_semantics = [#tpu.dimension_semantics<parallel>, #tpu.dimension_semantics<parallel>], iteration_bounds = array<i64: 4, 3>, scalar_prefetch = 1 : i64, scratch_operands = 0 : i64, tpu.core_type = #tpu.core_type<tc>, window_params = [{transform_indices = @transform_0, window_bounds = array<i64: 1, 16, 128>}, {transform_indices = @transform_1, window_bounds = array<i64: 1, 1, 8, 128>}, {transform_indices = @transform_2, window_bounds = array<i64: 1, 1, 8, 128>}, {transform_indices = @transform_3, window_bounds = array<i64: 1, 1, 128>}, {transform_indices = @transform_4, window_bounds = array<i64: 1, 1, 128>}, {transform_indices = @transform_5, window_bounds = array<i64: 1, 1, 128>}, {pipeline_mode = #tpu.pipeline_mode<synchronous>, transform_indices = @transform_6, window_bounds = array<i64: 1, 128>}, {pipeline_mode = #tpu.pipeline_mode<synchronous>, transform_indices = @transform_7, window_bounds = array<i64: 3, 128, 128>}, {pipeline_mode = #tpu.pipeline_mode<synchronous>, transform_indices = @transform_8, window_bounds = array<i64: 1, 128>}, {pipeline_mode = #tpu.pipeline_mode<synchronous>, transform_indices = @transform_9, window_bounds = array<i64: 1, 128>}, {pipeline_mode = #tpu.pipeline_mode<synchronous>, transform_indices = @transform_10, window_bounds = array<i64: 3, 128, 128>}, {pipeline_mode = #tpu.pipeline_mode<synchronous>, transform_indices = @transform_11, window_bounds = array<i64: 1, 128>}, {pipeline_mode = #tpu.pipeline_mode<synchronous>, transform_indices = @transform_12, window_bounds = array<i64: 128, 128>}, {pipeline_mode = #tpu.pipeline_mode<synchronous>, transform_indices = @transform_13, window_bounds = array<i64: 1, 128>}, {transform_indices = @transform_14, window_bounds = array<i64: 1, 16, 128>}]} {
    %c0 = arith.constant 0 : index
    %c0_0 = arith.constant 0 : index
    %c0_1 = arith.constant 0 : index
    %0 = vector.load %arg3[%c0, %c0_0, %c0_1] : memref<1x16x128xbf16, #tpu.memory_space<vmem>>, vector<1x16x128xbf16>
    %1 = vector.shape_cast %0 : vector<1x16x128xbf16> to vector<16x128xbf16>
    %c0_2 = arith.constant 0 : index
    %c0_3 = arith.constant 0 : index
    %c0_4 = arith.constant 0 : index
    %c0_5 = arith.constant 0 : index
    %2 = vector.load %arg4[%c0_2, %c0_3, %c0_4, %c0_5] : memref<1x1x8x128xbf16, #tpu.memory_space<vmem>>, vector<1x1x8x128xbf16>
    %3 = vector.shape_cast %2 : vector<1x1x8x128xbf16> to vector<8x128xbf16>
    %4 = arith.extf %3 : vector<8x128xbf16> to vector<8x128xf32>
    %5 = arith.extf %1 : vector<16x128xbf16> to vector<16x128xf32>
    %c0_6 = arith.constant 0 : index
    %c0_7 = arith.constant 0 : index
    %c0_8 = arith.constant 0 : index
    %c0_9 = arith.constant 0 : index
    %6 = vector.load %arg5[%c0_6, %c0_7, %c0_8, %c0_9] : memref<1x1x8x128xbf16, #tpu.memory_space<vmem>>, vector<1x1x8x128xbf16>
    %7 = vector.shape_cast %6 : vector<1x1x8x128xbf16> to vector<8x128xbf16>
    %8 = arith.extf %7 : vector<8x128xbf16> to vector<8x128xf32>
    %9 = tpu.concatenate %4, %5, %8 in 0 : vector<8x128xf32>, vector<16x128xf32>, vector<8x128xf32> -> vector<32x128xf32>
    %c16_i32 = arith.constant 16 : i32
    %10 = arith.muli %arg1, %c16_i32 : i32
    %11 = tpu.iota {dimensions = array<i32: 0>} : vector<32x1xi32>
    %12 = vector.broadcast %10 : i32 to vector<32x1xi32>
    %13 = arith.addi %12, %11 : vector<32x1xi32>
    %c8_i32 = arith.constant 8 : i32
    %14 = vector.broadcast %c8_i32 : i32 to vector<32x1xi32>
    %15 = arith.subi %13, %14 : vector<32x1xi32>
    %c0_i32 = arith.constant 0 : i32
    %16 = vector.broadcast %c0_i32 : i32 to vector<32x1xi32>
    %17 = arith.cmpi sge, %15, %16 : vector<32x1xi32>
    %18 = arith.index_cast %arg0 : i32 to index
    %19 = memref.load %arg2[%18] : memref<4xi32, #tpu.memory_space<smem>>
    %20 = vector.broadcast %19 : i32 to vector<32x1xi32>
    %21 = arith.cmpi slt, %15, %20 : vector<32x1xi32>
    %22 = arith.andi %17, %21 : vector<32x1xi1>
    %23 = arith.extui %22 : vector<32x1xi1> to vector<32x1xi32>
    %24 = arith.sitofp %23 : vector<32x1xi32> to vector<32x1xf32>
    %c0_10 = arith.constant 0 : index
    %c0_11 = arith.constant 0 : index
    %25 = vector.load %arg9[%c0_10, %c0_11] : memref<1x128xf32, #tpu.memory_space<vmem>>, vector<1x128xf32>
    %26 = arith.mulf %9, %9 : vector<32x128xf32>
    %cst = arith.constant dense<0.000000e+00> : vector<32xf32>
    %27 = vector.multi_reduction <add>, %26, %cst [1] : vector<32x128xf32> to vector<32xf32>
    %28 = vector.shape_cast %27 : vector<32xf32> to vector<32x1xf32>
    %29 = math.sqrt %28 : vector<32x1xf32>
    %cst_12 = arith.constant 9.99999996E-13 : f32
    %30 = vector.broadcast %cst_12 : f32 to vector<32x1xf32>
    %31 = arith.maximumf %29, %30 : vector<32x1xf32>
    %32 = vector.broadcast %31 : vector<32x1xf32> to vector<32x128xf32>
    %33 = arith.divf %9, %32 : vector<32x128xf32>
    %cst_13 = arith.constant 5.65685415 : f32
    %34 = vector.broadcast %cst_13 : f32 to vector<32x128xf32>
    %35 = arith.mulf %33, %34 : vector<32x128xf32>
    %36 = vector.broadcast %25 : vector<1x128xf32> to vector<32x128xf32>
    %37 = arith.mulf %35, %36 : vector<32x128xf32>
    %38 = arith.negf %37 : vector<32x128xf32>
    %39 = math.exp %38 : vector<32x128xf32>
    %cst_14 = arith.constant 1.000000e+00 : f32
    %40 = vector.broadcast %cst_14 : f32 to vector<32x128xf32>
    %41 = arith.addf %40, %39 : vector<32x128xf32>
    %42 = arith.divf %40, %41 : vector<32x128xf32>
    %43 = arith.mulf %37, %42 : vector<32x128xf32>
    %44 = vector.broadcast %24 : vector<32x1xf32> to vector<32x128xf32>
    %45 = arith.mulf %43, %44 : vector<32x128xf32>
    %c1_i32 = arith.constant 1 : i32
    %46 = tpu.dynamic_rotate %45 by %c1_i32 dim 0 : vector<32x128xf32>, i32 -> vector<32x128xf32>
    %c31_i32 = arith.constant 31 : i32
    %47 = tpu.dynamic_rotate %45 by %c31_i32 dim 0 : vector<32x128xf32>, i32 -> vector<32x128xf32>
    %48 = arith.truncf %46 : vector<32x128xf32> to vector<32x128xbf16>
    %c0_15 = arith.constant 0 : index
    %c0_16 = arith.constant 0 : index
    %c0_17 = arith.constant 0 : index
    %49 = vector.load %arg10[%c0_15, %c0_16, %c0_17] : memref<3x128x128xbf16, #tpu.memory_space<vmem>>, vector<1x128x128xbf16>
    %50 = vector.shape_cast %49 : vector<1x128x128xbf16> to vector<128x128xbf16>
    %cst_18 = arith.constant dense<0.000000e+00> : vector<32x128xf32>
    %51 = tpu.matmul %48, %50, %cst_18 {dimension_numbers = #tpu.dot_dimension_numbers<[1], [0], [0], [1], [0, 0, 1, 1], [], []>} : vector<32x128xbf16>, vector<128x128xbf16>, vector<32x128xf32> -> vector<32x128xf32>
    %52 = arith.truncf %45 : vector<32x128xf32> to vector<32x128xbf16>
    %c1 = arith.constant 1 : index
    %c0_19 = arith.constant 0 : index
    %c0_20 = arith.constant 0 : index
    %53 = vector.load %arg10[%c1, %c0_19, %c0_20] : memref<3x128x128xbf16, #tpu.memory_space<vmem>>, vector<1x128x128xbf16>
    %54 = vector.shape_cast %53 : vector<1x128x128xbf16> to vector<128x128xbf16>
    %cst_21 = arith.constant dense<0.000000e+00> : vector<32x128xf32>
    %55 = tpu.matmul %52, %54, %cst_21 {dimension_numbers = #tpu.dot_dimension_numbers<[1], [0], [0], [1], [0, 0, 1, 1], [], []>} : vector<32x128xbf16>, vector<128x128xbf16>, vector<32x128xf32> -> vector<32x128xf32>
    %56 = arith.addf %51, %55 : vector<32x128xf32>
    %57 = arith.truncf %47 : vector<32x128xf32> to vector<32x128xbf16>
    %c2 = arith.constant 2 : index
    %c0_22 = arith.constant 0 : index
    %c0_23 = arith.constant 0 : index
    %58 = vector.load %arg10[%c2, %c0_22, %c0_23] : memref<3x128x128xbf16, #tpu.memory_space<vmem>>, vector<1x128x128xbf16>
    %59 = vector.shape_cast %58 : vector<1x128x128xbf16> to vector<128x128xbf16>
    %cst_24 = arith.constant dense<0.000000e+00> : vector<32x128xf32>
    %60 = tpu.matmul %57, %59, %cst_24 {dimension_numbers = #tpu.dot_dimension_numbers<[1], [0], [0], [1], [0, 0, 1, 1], [], []>} : vector<32x128xbf16>, vector<128x128xbf16>, vector<32x128xf32> -> vector<32x128xf32>
    %61 = arith.addf %56, %60 : vector<32x128xf32>
    %c0_25 = arith.constant 0 : index
    %c0_26 = arith.constant 0 : index
    %62 = vector.load %arg11[%c0_25, %c0_26] : memref<1x128xf32, #tpu.memory_space<vmem>>, vector<1x128xf32>
    %63 = vector.broadcast %62 : vector<1x128xf32> to vector<32x128xf32>
    %64 = arith.addf %61, %63 : vector<32x128xf32>
    %c0_27 = arith.constant 0 : index
    %c0_28 = arith.constant 0 : index
    %65 = vector.load %arg12[%c0_27, %c0_28] : memref<1x128xf32, #tpu.memory_space<vmem>>, vector<1x128xf32>
    %66 = arith.mulf %64, %64 : vector<32x128xf32>
    %cst_29 = arith.constant dense<0.000000e+00> : vector<32xf32>
    %67 = vector.multi_reduction <add>, %66, %cst_29 [1] : vector<32x128xf32> to vector<32xf32>
    %68 = vector.shape_cast %67 : vector<32xf32> to vector<32x1xf32>
    %69 = math.sqrt %68 : vector<32x1xf32>
    %cst_30 = arith.constant 9.99999996E-13 : f32
    %70 = vector.broadcast %cst_30 : f32 to vector<32x1xf32>
    %71 = arith.maximumf %69, %70 : vector<32x1xf32>
    %72 = vector.broadcast %71 : vector<32x1xf32> to vector<32x128xf32>
    %73 = arith.divf %64, %72 : vector<32x128xf32>
    %cst_31 = arith.constant 8.000000e+00 : f32
    %74 = vector.broadcast %cst_31 : f32 to vector<32x128xf32>
    %75 = arith.mulf %73, %74 : vector<32x128xf32>
    %76 = vector.broadcast %65 : vector<1x128xf32> to vector<32x128xf32>
    %77 = arith.mulf %75, %76 : vector<32x128xf32>
    %c0_32 = arith.constant 0 : index
    %c0_33 = arith.constant 0 : index
    %c0_34 = arith.constant 0 : index
    %78 = vector.load %arg6[%c0_32, %c0_33, %c0_34] : memref<1x1x128xf32, #tpu.memory_space<vmem>>, vector<1x1x128xf32>
    %79 = vector.shape_cast %78 : vector<1x1x128xf32> to vector<1x128xf32>
    %cst_35 = arith.constant 1.000000e+00 : f32
    %80 = vector.broadcast %cst_35 : f32 to vector<1x128xf32>
    %81 = arith.addf %79, %80 : vector<1x128xf32>
    %82 = vector.broadcast %81 : vector<1x128xf32> to vector<32x128xf32>
    %83 = arith.mulf %77, %82 : vector<32x128xf32>
    %c0_36 = arith.constant 0 : index
    %c0_37 = arith.constant 0 : index
    %c0_38 = arith.constant 0 : index
    %84 = vector.load %arg7[%c0_36, %c0_37, %c0_38] : memref<1x1x128xf32, #tpu.memory_space<vmem>>, vector<1x1x128xf32>
    %85 = vector.shape_cast %84 : vector<1x1x128xf32> to vector<1x128xf32>
    %86 = vector.broadcast %85 : vector<1x128xf32> to vector<32x128xf32>
    %87 = arith.addf %83, %86 : vector<32x128xf32>
    %88 = arith.negf %87 : vector<32x128xf32>
    %89 = math.exp %88 : vector<32x128xf32>
    %cst_39 = arith.constant 1.000000e+00 : f32
    %90 = vector.broadcast %cst_39 : f32 to vector<32x128xf32>
    %91 = arith.addf %90, %89 : vector<32x128xf32>
    %92 = arith.divf %90, %91 : vector<32x128xf32>
    %93 = arith.mulf %87, %92 : vector<32x128xf32>
    %94 = vector.broadcast %24 : vector<32x1xf32> to vector<32x128xf32>
    %95 = arith.mulf %93, %94 : vector<32x128xf32>
    %c1_i32_40 = arith.constant 1 : i32
    %96 = tpu.dynamic_rotate %95 by %c1_i32_40 dim 0 : vector<32x128xf32>, i32 -> vector<32x128xf32>
    %c31_i32_41 = arith.constant 31 : i32
    %97 = tpu.dynamic_rotate %95 by %c31_i32_41 dim 0 : vector<32x128xf32>, i32 -> vector<32x128xf32>
    %98 = arith.truncf %96 : vector<32x128xf32> to vector<32x128xbf16>
    %c0_42 = arith.constant 0 : index
    %c0_43 = arith.constant 0 : index
    %c0_44 = arith.constant 0 : index
    %99 = vector.load %arg13[%c0_42, %c0_43, %c0_44] : memref<3x128x128xbf16, #tpu.memory_space<vmem>>, vector<1x128x128xbf16>
    %100 = vector.shape_cast %99 : vector<1x128x128xbf16> to vector<128x128xbf16>
    %cst_45 = arith.constant dense<0.000000e+00> : vector<32x128xf32>
    %101 = tpu.matmul %98, %100, %cst_45 {dimension_numbers = #tpu.dot_dimension_numbers<[1], [0], [0], [1], [0, 0, 1, 1], [], []>} : vector<32x128xbf16>, vector<128x128xbf16>, vector<32x128xf32> -> vector<32x128xf32>
    %102 = arith.truncf %95 : vector<32x128xf32> to vector<32x128xbf16>
    %c1_46 = arith.constant 1 : index
    %c0_47 = arith.constant 0 : index
    %c0_48 = arith.constant 0 : index
    %103 = vector.load %arg13[%c1_46, %c0_47, %c0_48] : memref<3x128x128xbf16, #tpu.memory_space<vmem>>, vector<1x128x128xbf16>
    %104 = vector.shape_cast %103 : vector<1x128x128xbf16> to vector<128x128xbf16>
    %cst_49 = arith.constant dense<0.000000e+00> : vector<32x128xf32>
    %105 = tpu.matmul %102, %104, %cst_49 {dimension_numbers = #tpu.dot_dimension_numbers<[1], [0], [0], [1], [0, 0, 1, 1], [], []>} : vector<32x128xbf16>, vector<128x128xbf16>, vector<32x128xf32> -> vector<32x128xf32>
    %106 = arith.addf %101, %105 : vector<32x128xf32>
    %107 = arith.truncf %97 : vector<32x128xf32> to vector<32x128xbf16>
    %c2_50 = arith.constant 2 : index
    %c0_51 = arith.constant 0 : index
    %c0_52 = arith.constant 0 : index
    %108 = vector.load %arg13[%c2_50, %c0_51, %c0_52] : memref<3x128x128xbf16, #tpu.memory_space<vmem>>, vector<1x128x128xbf16>
    %109 = vector.shape_cast %108 : vector<1x128x128xbf16> to vector<128x128xbf16>
    %cst_53 = arith.constant dense<0.000000e+00> : vector<32x128xf32>
    %110 = tpu.matmul %107, %109, %cst_53 {dimension_numbers = #tpu.dot_dimension_numbers<[1], [0], [0], [1], [0, 0, 1, 1], [], []>} : vector<32x128xbf16>, vector<128x128xbf16>, vector<32x128xf32> -> vector<32x128xf32>
    %111 = arith.addf %106, %110 : vector<32x128xf32>
    %c0_54 = arith.constant 0 : index
    %c0_55 = arith.constant 0 : index
    %112 = vector.load %arg14[%c0_54, %c0_55] : memref<1x128xf32, #tpu.memory_space<vmem>>, vector<1x128xf32>
    %113 = vector.broadcast %112 : vector<1x128xf32> to vector<32x128xf32>
    %114 = arith.addf %111, %113 : vector<32x128xf32>
    %c0_56 = arith.constant 0 : index
    %c0_57 = arith.constant 0 : index
    %115 = vector.load %arg15[%c0_56, %c0_57] : memref<128x128xbf16, #tpu.memory_space<vmem>>, vector<128x128xbf16>
    %cst_58 = arith.constant dense<0.000000e+00> : vector<16x128xf32>
    %116 = tpu.matmul %1, %115, %cst_58 {dimension_numbers = #tpu.dot_dimension_numbers<[1], [0], [0], [1], [0, 0, 1, 1], [], []>} : vector<16x128xbf16>, vector<128x128xbf16>, vector<16x128xf32> -> vector<16x128xf32>
    %c0_59 = arith.constant 0 : index
    %c0_60 = arith.constant 0 : index
    %117 = vector.load %arg16[%c0_59, %c0_60] : memref<1x128xf32, #tpu.memory_space<vmem>>, vector<1x128xf32>
    %118 = vector.broadcast %117 : vector<1x128xf32> to vector<16x128xf32>
    %119 = arith.addf %116, %118 : vector<16x128xf32>
    %120 = vector.extract_strided_slice %114 {offsets = [8, 0], sizes = [16, 128], strides = [1, 1]} : vector<32x128xf32> to vector<16x128xf32>
    %c0_61 = arith.constant 0 : index
    %c0_62 = arith.constant 0 : index
    %c0_63 = arith.constant 0 : index
    %121 = vector.load %arg8[%c0_61, %c0_62, %c0_63] : memref<1x1x128xf32, #tpu.memory_space<vmem>>, vector<1x1x128xf32>
    %122 = vector.shape_cast %121 : vector<1x1x128xf32> to vector<1x128xf32>
    %123 = vector.broadcast %122 : vector<1x128xf32> to vector<16x128xf32>
    %124 = arith.mulf %120, %123 : vector<16x128xf32>
    %125 = arith.addf %124, %119 : vector<16x128xf32>
    %c0_64 = arith.constant 0 : index
    %c0_65 = arith.constant 0 : index
    %c0_66 = arith.constant 0 : index
    %126 = vector.load %arg17[%c0_64, %c0_65, %c0_66] : memref<1x16x128xf32, #tpu.memory_space<vmem>>, vector<1x16x128xf32>
    %127 = vector.shape_cast %126 : vector<1x16x128xf32> to vector<16x128xf32>
    %128 = vector.shape_cast %125 : vector<16x128xf32> to vector<1x16x128xf32>
    tpu.vector_store %arg17[%c0_64, %c0_65, %c0_66], %128 {strides = array<i32>} : memref<1x16x128xf32, #tpu.memory_space<vmem>>, vector<1x16x128xf32>,
    return
  }
  func.func @transform_0(%arg0: i32, %arg1: i32, %arg2: memref<4xi32, #tpu.memory_space<smem>>) -> (i32, i32, i32) {
    %c0_i32 = arith.constant 0 : i32
    %c0_i32_0 = arith.constant 0 : i32
    return %arg0, %arg1, %c0_i32 : i32, i32, i32
  }
  func.func @transform_1(%arg0: i32, %arg1: i32, %arg2: memref<4xi32, #tpu.memory_space<smem>>) -> (i32, i32, i32, i32) {
    %c0_i32 = arith.constant 0 : i32
    %c0_i32_0 = arith.constant 0 : i32
    %c0_i32_1 = arith.constant 0 : i32
    return %arg0, %arg1, %c0_i32, %c0_i32_0 : i32, i32, i32, i32
  }
  func.func @transform_2(%arg0: i32, %arg1: i32, %arg2: memref<4xi32, #tpu.memory_space<smem>>) -> (i32, i32, i32, i32) {
    %c0_i32 = arith.constant 0 : i32
    %c0_i32_0 = arith.constant 0 : i32
    %c0_i32_1 = arith.constant 0 : i32
    return %arg0, %arg1, %c0_i32, %c0_i32_0 : i32, i32, i32, i32
  }
  func.func @transform_3(%arg0: i32, %arg1: i32, %arg2: memref<4xi32, #tpu.memory_space<smem>>) -> (i32, i32, i32) {
    %c0_i32 = arith.constant 0 : i32
    %c0_i32_0 = arith.constant 0 : i32
    %c0_i32_1 = arith.constant 0 : i32
    return %arg0, %c0_i32, %c0_i32_0 : i32, i32, i32
  }
  func.func @transform_4(%arg0: i32, %arg1: i32, %arg2: memref<4xi32, #tpu.memory_space<smem>>) -> (i32, i32, i32) {
    %c0_i32 = arith.constant 0 : i32
    %c0_i32_0 = arith.constant 0 : i32
    %c0_i32_1 = arith.constant 0 : i32
    return %arg0, %c0_i32, %c0_i32_0 : i32, i32, i32
  }
  func.func @transform_5(%arg0: i32, %arg1: i32, %arg2: memref<4xi32, #tpu.memory_space<smem>>) -> (i32, i32, i32) {
    %c0_i32 = arith.constant 0 : i32
    %c0_i32_0 = arith.constant 0 : i32
    %c0_i32_1 = arith.constant 0 : i32
    return %arg0, %c0_i32, %c0_i32_0 : i32, i32, i32
  }
  func.func @transform_6(%arg0: i32, %arg1: i32, %arg2: memref<4xi32, #tpu.memory_space<smem>>) -> (i32, i32) {
    %c0_i32 = arith.constant 0 : i32
    %c0_i32_0 = arith.constant 0 : i32
    %c0_i32_1 = arith.constant 0 : i32
    return %c0_i32, %c0_i32_0 : i32, i32
  }
  func.func @transform_7(%arg0: i32, %arg1: i32, %arg2: memref<4xi32, #tpu.memory_space<smem>>) -> (i32, i32, i32) {
    %c0_i32 = arith.constant 0 : i32
    %c0_i32_0 = arith.constant 0 : i32
    %c0_i32_1 = arith.constant 0 : i32
    %c0_i32_2 = arith.constant 0 : i32
    return %c0_i32, %c0_i32_0, %c0_i32_1 : i32, i32, i32
  }
  func.func @transform_8(%arg0: i32, %arg1: i32, %arg2: memref<4xi32, #tpu.memory_space<smem>>) -> (i32, i32) {
    %c0_i32 = arith.constant 0 : i32
    %c0_i32_0 = arith.constant 0 : i32
    %c0_i32_1 = arith.constant 0 : i32
    return %c0_i32, %c0_i32_0 : i32, i32
  }
  func.func @transform_9(%arg0: i32, %arg1: i32, %arg2: memref<4xi32, #tpu.memory_space<smem>>) -> (i32, i32) {
    %c0_i32 = arith.constant 0 : i32
    %c0_i32_0 = arith.constant 0 : i32
    %c0_i32_1 = arith.constant 0 : i32
    return %c0_i32, %c0_i32_0 : i32, i32
  }
  func.func @transform_10(%arg0: i32, %arg1: i32, %arg2: memref<4xi32, #tpu.memory_space<smem>>) -> (i32, i32, i32) {
    %c0_i32 = arith.constant 0 : i32
    %c0_i32_0 = arith.constant 0 : i32
    %c0_i32_1 = arith.constant 0 : i32
    %c0_i32_2 = arith.constant 0 : i32
    return %c0_i32, %c0_i32_0, %c0_i32_1 : i32, i32, i32
  }
  func.func @transform_11(%arg0: i32, %arg1: i32, %arg2: memref<4xi32, #tpu.memory_space<smem>>) -> (i32, i32) {
    %c0_i32 = arith.constant 0 : i32
    %c0_i32_0 = arith.constant 0 : i32
    %c0_i32_1 = arith.constant 0 : i32
    return %c0_i32, %c0_i32_0 : i32, i32
  }
  func.func @transform_12(%arg0: i32, %arg1: i32, %arg2: memref<4xi32, #tpu.memory_space<smem>>) -> (i32, i32) {
    %c0_i32 = arith.constant 0 : i32
    %c0_i32_0 = arith.constant 0 : i32
    %c0_i32_1 = arith.constant 0 : i32
    return %c0_i32, %c0_i32_0 : i32, i32
  }
  func.func @transform_13(%arg0: i32, %arg1: i32, %arg2: memref<4xi32, #tpu.memory_space<smem>>) -> (i32, i32) {
    %c0_i32 = arith.constant 0 : i32
    %c0_i32_0 = arith.constant 0 : i32
    %c0_i32_1 = arith.constant 0 : i32
    return %c0_i32, %c0_i32_0 : i32, i32
  }
  func.func @transform_14(%arg0: i32, %arg1: i32, %arg2: memref<4xi32, #tpu.memory_space<smem>>) -> (i32, i32, i32) {
    %c0_i32 = arith.constant 0 : i32
    %c0_i32_0 = arith.constant 0 : i32
    return %arg0, %arg1, %c0_i32 : i32, i32, i32
  }
}

</mosaic_0001>

<llo_original>
// kernel: tpu_custom_call.1
$region0: #{tpu_custom_call.1}
  #allocation0 [shape = 'u32[]', space=smem, size = 0x4, offset = 0x4, fixed_abs, tag = 'smem constant byte address 0x4 - core index']
  #allocation1 [shape = 'u32[144,128]{1,0:T(1,128)}', space=vmem, size = 0x12000, scoped, tag = 'internal scratch']
  #allocation2 [shape = 's32[1]{0}', space=sflag, size = 0x4, scoped, tag = 'scoped memory for tpu_custom_call.1']
  #allocation3 [shape = 'u8[512]{0}', space=smem, size = 0x200, scoped, tag = 'prefetched SMEM operand 0']
  %s0 = inlined_call_operand.hbm [shape: s32[4], index: 0, kind: input, shape index: {}]
  %s1 = inlined_call_operand.hbm [shape: bf16[4,48,128], index: 1, kind: input, shape index: {}]
  %s2 = inlined_call_operand.hbm [shape: bf16[4,3,8,128], index: 2, kind: input, shape index: {}]
  %s3 = inlined_call_operand.hbm [shape: bf16[4,3,8,128], index: 3, kind: input, shape index: {}]
  %s4 = inlined_call_operand.vmem [shape: f32[4,1,128], index: 4, kind: input, shape index: {}]
  %s5 = inlined_call_operand.vmem [shape: f32[4,1,128], index: 5, kind: input, shape index: {}]
  %s6 = inlined_call_operand.vmem [shape: f32[4,1,128], index: 6, kind: input, shape index: {}]
  %s7 = inlined_call_operand.vmem [shape: f32[1,128], index: 7, kind: input, shape index: {}]
  %s8 = inlined_call_operand.hbm [shape: bf16[3,128,128], index: 8, kind: input, shape index: {}]
  %s9 = inlined_call_operand.vmem [shape: f32[1,128], index: 9, kind: input, shape index: {}]
  %s10 = inlined_call_operand.vmem [shape: f32[1,128], index: 10, kind: input, shape index: {}]
  %s11 = inlined_call_operand.hbm [shape: bf16[3,128,128], index: 11, kind: input, shape index: {}]
  %s12 = inlined_call_operand.vmem [shape: f32[1,128], index: 12, kind: input, shape index: {}]
  %s13 = inlined_call_operand.hbm [shape: bf16[128,128], index: 13, kind: input, shape index: {}]
  %s14 = inlined_call_operand.vmem [shape: f32[1,128], index: 14, kind: input, shape index: {}]
  %s15 = inlined_call_operand.hbm [shape: f32[4,48,128], index: 15, kind: output, shape index: {}]
  %s16 = sld [smem:[#allocation0]]
  $region113: #{tpu_custom_call.1} parent=0
    _
  %s18 = ssub.s32 1, %s16
  %s19 = scalar_select 0, %s18, %s16
  %21 = dma.hbm_to_smem %s0, 16, [#allocation3], [#allocation2]
  %22 = dma.done [#allocation2], 16
  %23 = sfence
  $region1: #{tpu_custom_call.1} parent=0
    #allocation4 [shape = 'u8[8192]{0}', space=vmem, size = 0x2000, scoped, tag = 'input window, operand 1']
    #allocation5 [shape = 's32[2]{0}', space=sflag, size = 0x8, scoped, tag = 'scoped memory for tpu_custom_call.1']
    #allocation6 [shape = 's32[2]{0}', space=sflag, size = 0x8, scoped, tag = 'scoped memory for tpu_custom_call.1']
    #allocation7 [shape = 'u8[4096]{0}', space=vmem, size = 0x1000, scoped, tag = 'input window, operand 2']
    #allocation8 [shape = 's32[2]{0}', space=sflag, size = 0x8, scoped, tag = 'scoped memory for tpu_custom_call.1']
    #allocation9 [shape = 'u8[4096]{0}', space=vmem, size = 0x1000, scoped, tag = 'input window, operand 3']
    #allocation10 [shape = 'u8[98304]{0}', space=vmem, size = 0x18000, scoped, tag = 'input window, operand 8, single buffered']
    #allocation11 [shape = 's32[1]{0}', space=sflag, size = 0x4, scoped, tag = 'scoped memory for tpu_custom_call.1']
    #allocation12 [shape = 'u8[98304]{0}', space=vmem, size = 0x18000, scoped, tag = 'input window, operand 11, single buffered']
    #allocation13 [shape = 'u8[32768]{0}', space=vmem, size = 0x8000, scoped, tag = 'input window, operand 13, single buffered']
    #allocation14 [shape = 's32[1]{0}', space=sflag, size = 0x4, scoped, tag = 'scoped memory for tpu_custom_call.1']
    #allocation15 [shape = 'u8[16384]{0}', space=vmem, size = 0x4000, scoped, tag = 'output window, operand 0']
    %24 = vsyncpa [#allocation5], 0
    %s25 = scalar_lea.sflag [#allocation5], 1
    %26 = vsyncpa %s25, 0
    %27 = vsyncpa [#allocation8], 0
    %s28 = scalar_lea.sflag [#allocation8], 1
    %29 = vsyncpa %s28, 0
    %30 = vsyncpa [#allocation11], 0
    %31 = vsyncpa [#allocation14], 0
    %32 = vsyncpa [#allocation6], 0
    %s33 = scalar_lea.sflag [#allocation6], 1
    %34 = vsyncpa %s33, 0
    loop: start=0, step=1, limit=14
    $region2: #{tpu_custom_call.1} parent=1 // loop_pre_header
      _
    $region3: #{tpu_custom_call.1} parent=1 // loop_header
      %s36 = sphi 0, %s40
      %p37 = scmp.ge.s32.totalorder %s36, 14
      %s43 = sphi 0, %s55
      %s44 = sphi 0, %s51
      %s45 = sphi 0, %s43
      %s46 = sphi 0, %s44
      %s47 = sphi 0, %s45
      %s48 = sphi 0, %s46
      %s60 = sphi 0, %s62
      %s63 = sphi 0, %s60
      %s64 = sphi 0, %s63
      %s80 = sphi 0, %s64
      %s88 = sphi 0, %s90
      %s91 = sphi 0, %s88
      %s92 = sphi 0, %s91
      %s108 = sphi 0, %s92
      %s116 = sphi 0, %s118
      %s119 = sphi 0, %s116
      %s120 = sphi 0, %s119
      %s136 = sphi 0, %s120
      %s142 = sphi 0, %s144
      %s145 = sphi 0, %s142
      %s146 = sphi 0, %s145
      %s162 = sphi 0, %s146
      %s168 = sphi 0, %s170
      %s171 = sphi 0, %s168
      %s172 = sphi 0, %s171
      %s188 = sphi 0, %s172
      %s194 = sphi 0, %s196
      %s197 = sphi 0, %s194
      %s198 = sphi 0, %s197
      %s214 = sphi 0, %s198
      %s218 = sphi 0, %s218
      %s220 = sphi 0, %s218
      %s221 = sphi 0, %s220
      %s235 = sphi 0, %s221
      %s239 = sphi 0, %s239
      %s241 = sphi 0, %s239
      %s242 = sphi 0, %s241
      %s256 = sphi 0, %s242
      %s260 = sphi 0, %s260
      %s262 = sphi 0, %s260
      %s263 = sphi 0, %s262
      %s277 = sphi 0, %s263
      %s281 = sphi 0, %s281
      %s283 = sphi 0, %s281
      %s284 = sphi 0, %s283
      %s298 = sphi 0, %s284
      %s302 = sphi 0, %s302
      %s304 = sphi 0, %s302
      %s305 = sphi 0, %s304
      %s319 = sphi 0, %s305
      %s323 = sphi 0, %s323
      %s325 = sphi 0, %s323
      %s326 = sphi 0, %s325
      %s340 = sphi 0, %s326
      %s344 = sphi 0, %s344
      %s346 = sphi 0, %s344
      %s347 = sphi 0, %s346
      %s361 = sphi 0, %s347
      %s365 = sphi 0, %s365
      %s367 = sphi 0, %s365
      %s368 = sphi 0, %s367
      %s382 = sphi 0, %s368
      %s390 = sphi 0, %s392
      %s393 = sphi 0, %s390
      %s394 = sphi 0, %s393
      %s410 = sphi 0, %s394
    $region4: #{tpu_custom_call.1} parent=1 // loop_header_branch
      %39 = sbr.rel (%p37) target = $region8
    $region5: #{tpu_custom_call.1} parent=1 // loop_body
      %s41 = ssub.s32 %s36, 1
      %s42 = ssub.s32 %s36, 2
      %s49 = sadd.s32 1, %s44
      %p50 = scmp.ge.s32.totalorder %s49, 3
      %s51 = scalar_select %p50, 0, %s49
      %s52 = sadd.s32 1, %s43
      %s53 = scalar_select %p50, %s52, %s43
      %p54 = scmp.ge.s32.totalorder %s53, 4
      %s55 = scalar_select %p54, 0, %s53
      %s56 = ssub.s32 %s43, %s55
      %s57 = ssub.s32 %s44, %s51
      %s58 = sor.u32 %s56, %s57
      %p59 = scmp.eq.s32.totalorder %s58, 0
      %s61 = sadd.s32 %s60, 1
      %s62 = scalar_select %p59, %s60, %s61
      %p65 = pneg %p59
      %p66 = scmp.eq.s32.totalorder %s36, 11
      %p67 = por %p65, %p66
      %p68 = scmp.ne.s32.totalorder %s60, %s63
      %p69 = scmp.eq.s32.totalorder %s36, 0
      %p70 = por %p68, %p69
      %p71 = scmp.ne.s32.totalorder %s60, %s63
      %p72 = scmp.eq.s32.totalorder %s41, 11
      %p73 = por %p71, %p72
      %p74 = scmp.ne.s32.totalorder %s63, %s64
      %p75 = scmp.eq.s32.totalorder %s41, 0
      %p76 = por %p74, %p75
      %p77 = scmp.ne.s32.totalorder %s63, %s64
      %p78 = scmp.eq.s32.totalorder %s42, 11
      %p79 = por %p77, %p78
      %p81 = scmp.ne.s32.totalorder %s64, %s80
      %p82 = scmp.eq.s32.totalorder %s42, 0
      %p83 = por %p81, %p82
      %s84 = ssub.s32 %s43, %s55
      %s85 = ssub.s32 %s44, %s51
      %s86 = sor.u32 %s84, %s85
      %p87 = scmp.eq.s32.totalorder %s86, 0
      %s89 = sadd.s32 %s88, 1
      %s90 = scalar_select %p87, %s88, %s89
      %p93 = pneg %p87
      %p94 = scmp.eq.s32.totalorder %s36, 11
      %p95 = por %p93, %p94
      %p96 = scmp.ne.s32.totalorder %s88, %s91
      %p97 = scmp.eq.s32.totalorder %s36, 0
      %p98 = por %p96, %p97
      %p99 = scmp.ne.s32.totalorder %s88, %s91
      %p100 = scmp.eq.s32.totalorder %s41, 11
      %p101 = por %p99, %p100
      %p102 = scmp.ne.s32.totalorder %s91, %s92
      %p103 = scmp.eq.s32.totalorder %s41, 0
      %p104 = por %p102, %p103
      %p105 = scmp.ne.s32.totalorder %s91, %s92
      %p106 = scmp.eq.s32.totalorder %s42, 11
      %p107 = por %p105, %p106
      %p109 = scmp.ne.s32.totalorder %s92, %s108
      %p110 = scmp.eq.s32.totalorder %s42, 0
      %p111 = por %p109, %p110
      %s112 = ssub.s32 %s43, %s55
      %s113 = ssub.s32 %s44, %s51
      %s114 = sor.u32 %s112, %s113
      %p115 = scmp.eq.s32.totalorder %s114, 0
      %s117 = sadd.s32 %s116, 1
      %s118 = scalar_select %p115, %s116, %s117
      %p121 = pneg %p115
      %p122 = scmp.eq.s32.totalorder %s36, 11
      %p123 = por %p121, %p122
      %p124 = scmp.ne.s32.totalorder %s116, %s119
      %p125 = scmp.eq.s32.totalorder %s36, 0
      %p126 = por %p124, %p125
      %p127 = scmp.ne.s32.totalorder %s116, %s119
      %p128 = scmp.eq.s32.totalorder %s41, 11
      %p129 = por %p127, %p128
      %p130 = scmp.ne.s32.totalorder %s119, %s120
      %p131 = scmp.eq.s32.totalorder %s41, 0
      %p132 = por %p130, %p131
      %p133 = scmp.ne.s32.totalorder %s119, %s120
      %p134 = scmp.eq.s32.totalorder %s42, 11
      %p135 = por %p133, %p134
      %p137 = scmp.ne.s32.totalorder %s120, %s136
      %p138 = scmp.eq.s32.totalorder %s42, 0
      %p139 = por %p137, %p138
      %s140 = ssub.s32 %s43, %s55
      %p141 = scmp.eq.s32.totalorder %s140, 0
      %s143 = sadd.s32 %s142, 1
      %s144 = scalar_select %p141, %s142, %s143
      %p147 = pneg %p141
      %p148 = scmp.eq.s32.totalorder %s36, 11
      %p149 = por %p147, %p148
      %p150 = scmp.ne.s32.totalorder %s142, %s145
      %p151 = scmp.eq.s32.totalorder %s36, 0
      %p152 = por %p150, %p151
      %p153 = scmp.ne.s32.totalorder %s142, %s145
      %p154 = scmp.eq.s32.totalorder %s41, 11
      %p155 = por %p153, %p154
      %p156 = scmp.ne.s32.totalorder %s145, %s146
      %p157 = scmp.eq.s32.totalorder %s41, 0
      %p158 = por %p156, %p157
      %p159 = scmp.ne.s32.totalorder %s145, %s146
      %p160 = scmp.eq.s32.totalorder %s42, 11
      %p161 = por %p159, %p160
      %p163 = scmp.ne.s32.totalorder %s146, %s162
      %p164 = scmp.eq.s32.totalorder %s42, 0
      %p165 = por %p163, %p164
      %s166 = ssub.s32 %s43, %s55
      %p167 = scmp.eq.s32.totalorder %s166, 0
      %s169 = sadd.s32 %s168, 1
      %s170 = scalar_select %p167, %s168, %s169
      %p173 = pneg %p167
      %p174 = scmp.eq.s32.totalorder %s36, 11
      %p175 = por %p173, %p174
      %p176 = scmp.ne.s32.totalorder %s168, %s171
      %p177 = scmp.eq.s32.totalorder %s36, 0
      %p178 = por %p176, %p177
      %p179 = scmp.ne.s32.totalorder %s168, %s171
      %p180 = scmp.eq.s32.totalorder %s41, 11
      %p181 = por %p179, %p180
      %p182 = scmp.ne.s32.totalorder %s171, %s172
      %p183 = scmp.eq.s32.totalorder %s41, 0
      %p184 = por %p182, %p183
      %p185 = scmp.ne.s32.totalorder %s171, %s172
      %p186 = scmp.eq.s32.totalorder %s42, 11
      %p187 = por %p185, %p186
      %p189 = scmp.ne.s32.totalorder %s172, %s188
      %p190 = scmp.eq.s32.totalorder %s42, 0
      %p191 = por %p189, %p190
      %s192 = ssub.s32 %s43, %s55
      %p193 = scmp.eq.s32.totalorder %s192, 0
      %s195 = sadd.s32 %s194, 1
      %s196 = scalar_select %p193, %s194, %s195
      %p199 = pneg %p193
      %p200 = scmp.eq.s32.totalorder %s36, 11
      %p201 = por %p199, %p200
      %p202 = scmp.ne.s32.totalorder %s194, %s197
      %p203 = scmp.eq.s32.totalorder %s36, 0
      %p204 = por %p202, %p203
      %p205 = scmp.ne.s32.totalorder %s194, %s197
      %p206 = scmp.eq.s32.totalorder %s41, 11
      %p207 = por %p205, %p206
      %p208 = scmp.ne.s32.totalorder %s197, %s198
      %p209 = scmp.eq.s32.totalorder %s41, 0
      %p210 = por %p208, %p209
      %p211 = scmp.ne.s32.totalorder %s197, %s198
      %p212 = scmp.eq.s32.totalorder %s42, 11
      %p213 = por %p211, %p212
      %p215 = scmp.ne.s32.totalorder %s198, %s214
      %p216 = scmp.eq.s32.totalorder %s42, 0
      %p217 = por %p215, %p216
      %s219 = sadd.s32 %s218, 1
      %p222 = scmp.eq.s32.totalorder %s36, 11
      %p223 = scmp.ne.s32.totalorder %s218, %s220
      %p224 = scmp.eq.s32.totalorder %s36, 0
      %p225 = por %p223, %p224
      %p226 = scmp.ne.s32.totalorder %s218, %s220
      %p227 = scmp.eq.s32.totalorder %s41, 11
      %p228 = por %p226, %p227
      %p229 = scmp.ne.s32.totalorder %s220, %s221
      %p230 = scmp.eq.s32.totalorder %s41, 0
      %p231 = por %p229, %p230
      %p232 = scmp.ne.s32.totalorder %s220, %s221
      %p233 = scmp.eq.s32.totalorder %s42, 11
      %p234 = por %p232, %p233
      %p236 = scmp.ne.s32.totalorder %s221, %s235
      %p237 = scmp.eq.s32.totalorder %s42, 0
      %p238 = por %p236, %p237
      %s240 = sadd.s32 %s239, 1
      %p243 = scmp.eq.s32.totalorder %s36, 11
      %p244 = scmp.ne.s32.totalorder %s239, %s241
      %p245 = scmp.eq.s32.totalorder %s36, 0
      %p246 = por %p244, %p245
      %p247 = scmp.ne.s32.totalorder %s239, %s241
      %p248 = scmp.eq.s32.totalorder %s41, 11
      %p249 = por %p247, %p248
      %p250 = scmp.ne.s32.totalorder %s241, %s242
      %p251 = scmp.eq.s32.totalorder %s41, 0
      %p252 = por %p250, %p251
      %p253 = scmp.ne.s32.totalorder %s241, %s242
      %p254 = scmp.eq.s32.totalorder %s42, 11
      %p255 = por %p253, %p254
      %p257 = scmp.ne.s32.totalorder %s242, %s256
      %p258 = scmp.eq.s32.totalorder %s42, 0
      %p259 = por %p257, %p258
      %s261 = sadd.s32 %s260, 1
      %p264 = scmp.eq.s32.totalorder %s36, 11
      %p265 = scmp.ne.s32.totalorder %s260, %s262
      %p266 = scmp.eq.s32.totalorder %s36, 0
      %p267 = por %p265, %p266
      %p268 = scmp.ne.s32.totalorder %s260, %s262
      %p269 = scmp.eq.s32.totalorder %s41, 11
      %p270 = por %p268, %p269
      %p271 = scmp.ne.s32.totalorder %s262, %s263
      %p272 = scmp.eq.s32.totalorder %s41, 0
      %p273 = por %p271, %p272
      %p274 = scmp.ne.s32.totalorder %s262, %s263
      %p275 = scmp.eq.s32.totalorder %s42, 11
      %p276 = por %p274, %p275
      %p278 = scmp.ne.s32.totalorder %s263, %s277
      %p279 = scmp.eq.s32.totalorder %s42, 0
      %p280 = por %p278, %p279
      %s282 = sadd.s32 %s281, 1
      %p285 = scmp.eq.s32.totalorder %s36, 11
      %p286 = scmp.ne.s32.totalorder %s281, %s283
      %p287 = scmp.eq.s32.totalorder %s36, 0
      %p288 = por %p286, %p287
      %p289 = scmp.ne.s32.totalorder %s281, %s283
      %p290 = scmp.eq.s32.totalorder %s41, 11
      %p291 = por %p289, %p290
      %p292 = scmp.ne.s32.totalorder %s283, %s284
      %p293 = scmp.eq.s32.totalorder %s41, 0
      %p294 = por %p292, %p293
      %p295 = scmp.ne.s32.totalorder %s283, %s284
      %p296 = scmp.eq.s32.totalorder %s42, 11
      %p297 = por %p295, %p296
      %p299 = scmp.ne.s32.totalorder %s284, %s298
      %p300 = scmp.eq.s32.totalorder %s42, 0
      %p301 = por %p299, %p300
      %s303 = sadd.s32 %s302, 1
      %p306 = scmp.eq.s32.totalorder %s36, 11
      %p307 = scmp.ne.s32.totalorder %s302, %s304
      %p308 = scmp.eq.s32.totalorder %s36, 0
      %p309 = por %p307, %p308
      %p310 = scmp.ne.s32.totalorder %s302, %s304
      %p311 = scmp.eq.s32.totalorder %s41, 11
      %p312 = por %p310, %p311
      %p313 = scmp.ne.s32.totalorder %s304, %s305
      %p314 = scmp.eq.s32.totalorder %s41, 0
      %p315 = por %p313, %p314
      %p316 = scmp.ne.s32.totalorder %s304, %s305
      %p317 = scmp.eq.s32.totalorder %s42, 11
      %p318 = por %p316, %p317
      %p320 = scmp.ne.s32.totalorder %s305, %s319
      %p321 = scmp.eq.s32.totalorder %s42, 0
      %p322 = por %p320, %p321
      %s324 = sadd.s32 %s323, 1
      %p327 = scmp.eq.s32.totalorder %s36, 11
      %p328 = scmp.ne.s32.totalorder %s323, %s325
      %p329 = scmp.eq.s32.totalorder %s36, 0
      %p330 = por %p328, %p329
      %p331 = scmp.ne.s32.totalorder %s323, %s325
      %p332 = scmp.eq.s32.totalorder %s41, 11
      %p333 = por %p331, %p332
      %p334 = scmp.ne.s32.totalorder %s325, %s326
      %p335 = scmp.eq.s32.totalorder %s41, 0
      %p336 = por %p334, %p335
      %p337 = scmp.ne.s32.totalorder %s325, %s326
      %p338 = scmp.eq.s32.totalorder %s42, 11
      %p339 = por %p337, %p338
      %p341 = scmp.ne.s32.totalorder %s326, %s340
      %p342 = scmp.eq.s32.totalorder %s42, 0
      %p343 = por %p341, %p342
      %s345 = sadd.s32 %s344, 1
      %p348 = scmp.eq.s32.totalorder %s36, 11
      %p349 = scmp.ne.s32.totalorder %s344, %s346
      %p350 = scmp.eq.s32.totalorder %s36, 0
      %p351 = por %p349, %p350
      %p352 = scmp.ne.s32.totalorder %s344, %s346
      %p353 = scmp.eq.s32.totalorder %s41, 11
      %p354 = por %p352, %p353
      %p355 = scmp.ne.s32.totalorder %s346, %s347
      %p356 = scmp.eq.s32.totalorder %s41, 0
      %p357 = por %p355, %p356
      %p358 = scmp.ne.s32.totalorder %s346, %s347
      %p359 = scmp.eq.s32.totalorder %s42, 11
      %p360 = por %p358, %p359
      %p362 = scmp.ne.s32.totalorder %s347, %s361
      %p363 = scmp.eq.s32.totalorder %s42, 0
      %p364 = por %p362, %p363
      %s366 = sadd.s32 %s365, 1
      %p369 = scmp.eq.s32.totalorder %s36, 11
      %p370 = scmp.ne.s32.totalorder %s365, %s367
      %p371 = scmp.eq.s32.totalorder %s36, 0
      %p372 = por %p370, %p371
      %p373 = scmp.ne.s32.totalorder %s365, %s367
      %p374 = scmp.eq.s32.totalorder %s41, 11
      %p375 = por %p373, %p374
      %p376 = scmp.ne.s32.totalorder %s367, %s368
      %p377 = scmp.eq.s32.totalorder %s41, 0
      %p378 = por %p376, %p377
      %p379 = scmp.ne.s32.totalorder %s367, %s368
      %p380 = scmp.eq.s32.totalorder %s42, 11
      %p381 = por %p379, %p380
      %p383 = scmp.ne.s32.totalorder %s368, %s382
      %p384 = scmp.eq.s32.totalorder %s42, 0
      %p385 = por %p383, %p384
      %s386 = ssub.s32 %s43, %s55
      %s387 = ssub.s32 %s44, %s51
      %s388 = sor.u32 %s386, %s387
      %p389 = scmp.eq.s32.totalorder %s388, 0
      %s391 = sadd.s32 %s390, 1
      %s392 = scalar_select %p389, %s390, %s391
      %p395 = pneg %p389
      %p396 = scmp.eq.s32.totalorder %s36, 11
      %p397 = por %p395, %p396
      %p398 = scmp.ne.s32.totalorder %s390, %s393
      %p399 = scmp.eq.s32.totalorder %s36, 0
      %p400 = por %p398, %p399
      %p401 = scmp.ne.s32.totalorder %s390, %s393
      %p402 = scmp.eq.s32.totalorder %s41, 11
      %p403 = por %p401, %p402
      %p404 = scmp.ne.s32.totalorder %s393, %s394
      %p405 = scmp.eq.s32.totalorder %s41, 0
      %p406 = por %p404, %p405
      %p407 = scmp.ne.s32.totalorder %s393, %s394
      %p408 = scmp.eq.s32.totalorder %s42, 11
      %p409 = por %p407, %p408
      %p411 = scmp.ne.s32.totalorder %s394, %s410
      %p412 = scmp.eq.s32.totalorder %s42, 0
      %p413 = por %p411, %p412
      %p414 = scmp.le.s32.totalorder 1, %s36
      %p415 = scmp.lt.s32.totalorder %s36, 13
      %p416 = pnand %p414, %p415
      %p417 = pneg %p416
      // Predicated region
      $region9: #{tpu_custom_call.1} parent=5 // pred_check
        _
      $region10: #{tpu_custom_call.1} parent=5 // pred_check_branch
        %419 = sbr.rel (%p416) target = $region12
      $region11: #{tpu_custom_call.1} parent=5 // pred_region
        %s420 = ssub.s32 %s36, 1
        // Predicated region
        $region13: #{tpu_custom_call.1} parent=11 // pred_check
          %p421 = pneg %p231
        $region14: #{tpu_custom_call.1} parent=11 // pred_check_branch
          %423 = sbr.rel (%p421) target = $region16
        $region15: #{tpu_custom_call.1} parent=11 // pred_region
          _
        $region16: #{tpu_custom_call.1} parent=11 // pred_fallthru
          _
        // Predicated region
        $region17: #{tpu_custom_call.1} parent=11 // pred_check
          %p424 = pneg %p252
        $region18: #{tpu_custom_call.1} parent=11 // pred_check_branch
          %426 = sbr.rel (%p424) target = $region20
        $region19: #{tpu_custom_call.1} parent=11 // pred_region
          %s428 = ssub.s32 3072, 3072
          %429 = vsyncadd [#allocation11], %s428
          %s430 = sshll.u32 [#allocation10], 4
          %s431 = int_to_ptr.vmem [resolvable:$true] %s430
          %436 = dma.hbm_to_vmem [thread:$0]  %s8, 3072, %s431, [#allocation11], 64, 64, 4
        $region20: #{tpu_custom_call.1} parent=11 // pred_fallthru
          _
        // Predicated region
        $region21: #{tpu_custom_call.1} parent=11 // pred_check
          %p437 = pneg %p273
        $region22: #{tpu_custom_call.1} parent=11 // pred_check_branch
          %439 = sbr.rel (%p437) target = $region24
        $region23: #{tpu_custom_call.1} parent=11 // pred_region
          _
        $region24: #{tpu_custom_call.1} parent=11 // pred_fallthru
          _
        // Predicated region
        $region25: #{tpu_custom_call.1} parent=11 // pred_check
          %p440 = pneg %p294
        $region26: #{tpu_custom_call.1} parent=11 // pred_check_branch
          %442 = sbr.rel (%p440) target = $region28
        $region27: #{tpu_custom_call.1} parent=11 // pred_region
          _
        $region28: #{tpu_custom_call.1} parent=11 // pred_fallthru
          _
        // Predicated region
        $region29: #{tpu_custom_call.1} parent=11 // pred_check
          %p443 = pneg %p315
        $region30: #{tpu_custom_call.1} parent=11 // pred_check_branch
          %445 = sbr.rel (%p443) target = $region32
        $region31: #{tpu_custom_call.1} parent=11 // pred_region
          %s447 = ssub.s32 3072, 3072
          %448 = vsyncadd [#allocation11], %s447
          %s449 = sshll.u32 [#allocation12], 4
          %s450 = int_to_ptr.vmem [resolvable:$true] %s449
          %455 = dma.hbm_to_vmem [thread:$0]  %s11, 3072, %s450, [#allocation11], 64, 64, 4
        $region32: #{tpu_custom_call.1} parent=11 // pred_fallthru
          _
        // Predicated region
        $region33: #{tpu_custom_call.1} parent=11 // pred_check
          %p456 = pneg %p336
        $region34: #{tpu_custom_call.1} parent=11 // pred_check_branch
          %458 = sbr.rel (%p456) target = $region36
        $region35: #{tpu_custom_call.1} parent=11 // pred_region
          _
        $region36: #{tpu_custom_call.1} parent=11 // pred_fallthru
          _
        // Predicated region
        $region37: #{tpu_custom_call.1} parent=11 // pred_check
          %p459 = pneg %p357
        $region38: #{tpu_custom_call.1} parent=11 // pred_check_branch
          %461 = sbr.rel (%p459) target = $region40
        $region39: #{tpu_custom_call.1} parent=11 // pred_region
          %s463 = ssub.s32 1024, 1024
          %464 = vsyncadd [#allocation14], %s463
          %s465 = sshll.u32 [#allocation13], 4
          %s466 = int_to_ptr.vmem [resolvable:$true] %s465
          %471 = dma.hbm_to_vmem [thread:$0]  %s13, 1024, %s466, [#allocation14], 64, 64, 4
        $region40: #{tpu_custom_call.1} parent=11 // pred_fallthru
          _
        // Predicated region
        $region41: #{tpu_custom_call.1} parent=11 // pred_check
          %p472 = pneg %p378
        $region42: #{tpu_custom_call.1} parent=11 // pred_check_branch
          %474 = sbr.rel (%p472) target = $region44
        $region43: #{tpu_custom_call.1} parent=11 // pred_region
          _
        $region44: #{tpu_custom_call.1} parent=11 // pred_fallthru
          _
      $region12: #{tpu_custom_call.1} parent=5 // pred_fallthru
        _
      %p475 = scmp.lt.s32.totalorder %s36, 12
      // Predicated region
      $region45: #{tpu_custom_call.1} parent=5 // pred_check
        %p476 = pneg %p475
      $region46: #{tpu_custom_call.1} parent=5 // pred_check_branch
        %478 = sbr.rel (%p476) target = $region48
      $region47: #{tpu_custom_call.1} parent=5 // pred_region
        // Predicated region
        $region49: #{tpu_custom_call.1} parent=47 // pred_check
          %p479 = pneg %p70
        $region50: #{tpu_custom_call.1} parent=47 // pred_check_branch
          %481 = sbr.rel (%p479) target = $region52
        $region51: #{tpu_custom_call.1} parent=47 // pred_region
          %s482 = sand.u32 %s60, 1
          %s483 = scalar_lea.sflag [#allocation5], %s482
          %s484 = sand.u32 %s60, 1
          %s485 = smul.addr %s484, 8
          %s486 = scalar_lea.vmem [#allocation4], %s485
          %s487 = smul.u32 2, %s44
          %s489 = ssub.s32 128, 128
          %490 = vsyncadd %s483, %s489
          %s491 = smul.addr %s43, 6
          %s492 = sadd.s32 %s487, %s491
          %s493 = smul.addr %s492, 64
          %s494 = scalar_lea.hbm %s1, %s493
          %s495 = sshll.u32 %s486, 4
          %s496 = int_to_ptr.vmem [resolvable:$true] %s495
          %501 = dma.hbm_to_vmem [thread:$0]  %s494, 128, %s496, %s483, 64, 64, 4
        $region52: #{tpu_custom_call.1} parent=47 // pred_fallthru
          _
        // Predicated region
        $region53: #{tpu_custom_call.1} parent=47 // pred_check
          %p502 = pneg %p98
        $region54: #{tpu_custom_call.1} parent=47 // pred_check_branch
          %504 = sbr.rel (%p502) target = $region56
        $region55: #{tpu_custom_call.1} parent=47 // pred_region
          %s505 = sand.u32 %s36, 1
          %s506 = scalar_lea.sflag [#allocation8], %s505
          %s507 = sand.u32 %s88, 1
          %s508 = smul.addr %s507, 4
          %s509 = scalar_lea.vmem [#allocation7], %s508
          %s511 = ssub.s32 64, 64
          %512 = vsyncadd %s506, %s511
          %s513 = smul.addr %s43, 3
          %s514 = sadd.s32 %s44, %s513
          %s515 = smul.addr %s514, 64
          %s516 = scalar_lea.hbm %s2, %s515
          %s518 = sshll.u32 %s509, 4
          %s519 = int_to_ptr.vmem [resolvable:$true] %s518
          %521 = dma.hbm_to_vmem [thread:$0]  %s516, 64, %s519, %s506
        $region56: #{tpu_custom_call.1} parent=47 // pred_fallthru
          _
        // Predicated region
        $region57: #{tpu_custom_call.1} parent=47 // pred_check
          %p522 = pneg %p126
        $region58: #{tpu_custom_call.1} parent=47 // pred_check_branch
          %524 = sbr.rel (%p522) target = $region60
        $region59: #{tpu_custom_call.1} parent=47 // pred_region
          %s525 = sand.u32 %s36, 1
          %s526 = scalar_lea.sflag [#allocation8], %s525
          %s527 = sand.u32 %s116, 1
          %s528 = smul.addr %s527, 4
          %s529 = scalar_lea.vmem [#allocation9], %s528
          %s531 = ssub.s32 64, 64
          %532 = vsyncadd %s526, %s531
          %s533 = smul.addr %s43, 3
          %s534 = sadd.s32 %s44, %s533
          %s535 = smul.addr %s534, 64
          %s536 = scalar_lea.hbm %s3, %s535
          %s538 = sshll.u32 %s529, 4
          %s539 = int_to_ptr.vmem [resolvable:$true] %s538
          %541 = dma.hbm_to_vmem [thread:$0]  %s536, 64, %s539, %s526
        $region60: #{tpu_custom_call.1} parent=47 // pred_fallthru
          _
        // Predicated region
        $region61: #{tpu_custom_call.1} parent=47 // pred_check
          %p542 = pneg %p152
        $region62: #{tpu_custom_call.1} parent=47 // pred_check_branch
          %544 = sbr.rel (%p542) target = $region64
        $region63: #{tpu_custom_call.1} parent=47 // pred_region
          %p545 = scmp.lt.s32.totalorder %s43, 3
          %s546 = scalar_select %p545, %s43, 3
          %s547 = scalar_lea.vmem %s4, %s546
        $region64: #{tpu_custom_call.1} parent=47 // pred_fallthru
          _
        // Predicated region
        $region65: #{tpu_custom_call.1} parent=47 // pred_check
          %p548 = pneg %p178
        $region66: #{tpu_custom_call.1} parent=47 // pred_check_branch
          %550 = sbr.rel (%p548) target = $region68
        $region67: #{tpu_custom_call.1} parent=47 // pred_region
          %p551 = scmp.lt.s32.totalorder %s43, 3
          %s552 = scalar_select %p551, %s43, 3
          %s553 = scalar_lea.vmem %s5, %s552
        $region68: #{tpu_custom_call.1} parent=47 // pred_fallthru
          _
        // Predicated region
        $region69: #{tpu_custom_call.1} parent=47 // pred_check
          %p554 = pneg %p204
        $region70: #{tpu_custom_call.1} parent=47 // pred_check_branch
          %556 = sbr.rel (%p554) target = $region72
        $region71: #{tpu_custom_call.1} parent=47 // pred_region
          %p557 = scmp.lt.s32.totalorder %s43, 3
          %s558 = scalar_select %p557, %s43, 3
          %s559 = scalar_lea.vmem %s6, %s558
        $region72: #{tpu_custom_call.1} parent=47 // pred_fallthru
          _
      $region48: #{tpu_custom_call.1} parent=5 // pred_fallthru
        _
      %p560 = scmp.le.s32.totalorder 1, %s36
      %p561 = scmp.lt.s32.totalorder %s36, 13
      %p562 = pnand %p560, %p561
      %p563 = pneg %p562
      // Predicated region
      $region73: #{tpu_custom_call.1} parent=5 // pred_check
        _
      $region74: #{tpu_custom_call.1} parent=5 // pred_check_branch
        %565 = sbr.rel (%p562) target = $region76
      $region75: #{tpu_custom_call.1} parent=5 // pred_region
        %s566 = ssub.s32 %s36, 1
        %s567 = sand.u32 %s63, 1
        %s568 = scalar_lea.sflag [#allocation5], %s567
        %s569 = sand.u32 %s63, 1
        %s570 = smul.addr %s569, 8
        %s571 = scalar_lea.vmem [#allocation4], %s570
        // Predicated region
        $region77: #{tpu_custom_call.1} parent=75 // pred_check
          %p572 = pneg %p76
        $region78: #{tpu_custom_call.1} parent=75 // pred_check_branch
          %574 = sbr.rel (%p572) target = $region80
        $region79: #{tpu_custom_call.1} parent=75 // pred_region
          %575 = dma.done %s568, 128
        $region80: #{tpu_custom_call.1} parent=75 // pred_fallthru
          _
        %s576 = sand.u32 %s41, 1
        %s577 = scalar_lea.sflag [#allocation8], %s576
        %s578 = sand.u32 %s91, 1
        %s579 = smul.addr %s578, 4
        %s580 = scalar_lea.vmem [#allocation7], %s579
        // Predicated region
        $region81: #{tpu_custom_call.1} parent=75 // pred_check
          %p581 = pneg %p104
        $region82: #{tpu_custom_call.1} parent=75 // pred_check_branch
          %583 = sbr.rel (%p581) target = $region84
        $region83: #{tpu_custom_call.1} parent=75 // pred_region
          %584 = dma.done %s577, 64
        $region84: #{tpu_custom_call.1} parent=75 // pred_fallthru
          _
        %s585 = sand.u32 %s41, 1
        %s586 = scalar_lea.sflag [#allocation8], %s585
        %s587 = sand.u32 %s119, 1
        %s588 = smul.addr %s587, 4
        %s589 = scalar_lea.vmem [#allocation9], %s588
        // Predicated region
        $region85: #{tpu_custom_call.1} parent=75 // pred_check
          %p590 = pneg %p132
        $region86: #{tpu_custom_call.1} parent=75 // pred_check_branch
          %592 = sbr.rel (%p590) target = $region88
        $region87: #{tpu_custom_call.1} parent=75 // pred_region
          %593 = dma.done %s586, 64
        $region88: #{tpu_custom_call.1} parent=75 // pred_fallthru
          _
        // Predicated region
        $region89: #{tpu_custom_call.1} parent=75 // pred_check
          %p594 = pneg %p252
        $region90: #{tpu_custom_call.1} parent=75 // pred_check_branch
          %596 = sbr.rel (%p594) target = $region92
        $region91: #{tpu_custom_call.1} parent=75 // pred_region
          %597 = dma.done [#allocation11], 3072
        $region92: #{tpu_custom_call.1} parent=75 // pred_fallthru
          _
        // Predicated region
        $region93: #{tpu_custom_call.1} parent=75 // pred_check
          %p598 = pneg %p315
        $region94: #{tpu_custom_call.1} parent=75 // pred_check_branch
          %600 = sbr.rel (%p598) target = $region96
        $region95: #{tpu_custom_call.1} parent=75 // pred_region
          %601 = dma.done [#allocation11], 3072
        $region96: #{tpu_custom_call.1} parent=75 // pred_fallthru
          _
        // Predicated region
        $region97: #{tpu_custom_call.1} parent=75 // pred_check
          %p602 = pneg %p357
        $region98: #{tpu_custom_call.1} parent=75 // pred_check_branch
          %604 = sbr.rel (%p602) target = $region100
        $region99: #{tpu_custom_call.1} parent=75 // pred_region
          %605 = dma.done [#allocation14], 1024
        $region100: #{tpu_custom_call.1} parent=75 // pred_fallthru
          _
        %s606 = sand.u32 %s63, 1
        %s607 = scalar_lea.sflag [#allocation5], %s606
        %s608 = sand.u32 %s63, 1
        %s609 = smul.addr %s608, 8
        %s610 = scalar_lea.vmem [#allocation4], %s609
        %p611 = pneg %p76
        %p612 = pneg %p73
        %s613 = sand.u32 %s41, 1
        %s614 = scalar_lea.sflag [#allocation8], %s613
        %s615 = sand.u32 %s91, 1
        %s616 = smul.addr %s615, 4
        %s617 = scalar_lea.vmem [#allocation7], %s616
        %p618 = pneg %p104
        %p619 = pneg %p101
        %s620 = sand.u32 %s41, 1
        %s621 = scalar_lea.sflag [#allocation8], %s620
        %s622 = sand.u32 %s119, 1
        %s623 = smul.addr %s622, 4
        %s624 = scalar_lea.vmem [#allocation9], %s623
        %p625 = pneg %p132
        %p626 = pneg %p129
        %p627 = scmp.lt.s32.totalorder %s45, 3
        %s628 = scalar_select %p627, %s45, 3
        %s629 = scalar_lea.vmem %s4, %s628
        %p630 = pneg %p158
        %p631 = pneg %p155
        %p632 = scmp.lt.s32.totalorder %s45, 3
        %s633 = scalar_select %p632, %s45, 3
        %s634 = scalar_lea.vmem %s5, %s633
        %p635 = pneg %p184
        %p636 = pneg %p181
        %p637 = scmp.lt.s32.totalorder %s45, 3
        %s638 = scalar_select %p637, %s45, 3
        %s639 = scalar_lea.vmem %s6, %s638
        %p640 = pneg %p210
        %p641 = pneg %p207
        %p642 = pneg %p231
        %p643 = pneg %p228
        %p644 = pneg %p252
        %p645 = pneg %p249
        %p646 = pneg %p273
        %p647 = pneg %p270
        %p648 = pneg %p294
        %p649 = pneg %p291
        %p650 = pneg %p315
        %p651 = pneg %p312
        %p652 = pneg %p336
        %p653 = pneg %p333
        %p654 = pneg %p357
        %p655 = pneg %p354
        %p656 = pneg %p378
        %p657 = pneg %p375
        %p658 = pneg %p406
        %p659 = pneg %p403
        %s660 = sand.u32 %s393, 1
        %s661 = scalar_lea.sflag [#allocation6], %s660
        %s662 = sand.u32 %s393, 1
        %s663 = smul.addr %s662, 16
        %s664 = scalar_lea.vmem [#allocation15], %s663
        %s665 = smul.u32 2, %s46
        %p666 = scmp.lt.s32.totalorder %s45, 3
        %s667 = scalar_select %p666, %s45, 3
        %s668 = scalar_lea.vmem %s4, %s667
        %p669 = scmp.lt.s32.totalorder %s45, 3
        %s670 = scalar_select %p669, %s45, 3
        %s671 = scalar_lea.vmem %s5, %s670
        %p672 = scmp.lt.s32.totalorder %s45, 3
        %s673 = scalar_select %p672, %s45, 3
        %s674 = scalar_lea.vmem %s6, %s673
        %s675 = smul.u32 2, %s46
        %v677 = vld [vmem:[%s571] sm:$0xf]
        %v678 = vld [vmem:[%s571 + $0x4] sm:$0xf]
        %v679 = vld [vmem:[%s580] sm:$0xf]
        %v680 = vunpack.c.l.bf16 %v679
        %v681 = vunpack.c.l.bf16 %v677
        %v682 = vunpack.c.l.bf16 %v678
        %v683 = vld [vmem:[%s589] sm:$0xf]
        %v684 = vunpack.c.l.bf16 %v683
        %s685 = smul.u32 %s46, 16
        %v686 = vlaneseq
        %v687 = vshrl.u32 %v686, 7
        %v688 = vadd.s32 %v687, 8
        %v689 = vadd.s32 %v687, 16
        %v690 = vadd.s32 %v687, 24
        %v691 = vstv %s685
        %v692 = vadd.s32 %v691, %v687
        %v693 = vadd.s32 %v691, %v688
        %v694 = vadd.s32 %v691, %v689
        %v695 = vadd.s32 %v691, %v690
        %v696 = vsub.s32 %v692, 8
        %v697 = vsub.s32 %v693, 8
        %v698 = vsub.s32 %v694, 8
        %v699 = vsub.s32 %v695, 8
        %vm700 = vcmp.ge.s32.totalorder %v696, 0
        %vm701 = vcmp.ge.s32.totalorder %v697, 0
        %vm702 = vcmp.ge.s32.totalorder %v698, 0
        %vm703 = vcmp.ge.s32.totalorder %v699, 0
        %s704 = sld [smem:[#allocation3 + %s45]]
        %v705 = vstv %s704
        %vm706 = vcmp.lt.s32.totalorder %v696, %v705
        %vm707 = vcmp.lt.s32.totalorder %v697, %v705
        %vm708 = vcmp.lt.s32.totalorder %v698, %v705
        %vm709 = vcmp.lt.s32.totalorder %v699, %v705
        %vm710 = vmand %vm700, %vm706
        %vm711 = vmand %vm701, %vm707
        %vm712 = vmand %vm702, %vm708
        %vm713 = vmand %vm703, %vm709
        %v714 = vsel %vm710, 1, 0
        %v715 = vsel %vm711, 1, 0
        %v716 = vsel %vm712, 1, 0
        %v717 = vsel %vm713, 1, 0
        %v718 = vcvt.s32.f32 %v714
        %v719 = vcvt.s32.f32 %v715
        %v720 = vcvt.s32.f32 %v716
        %v721 = vcvt.s32.f32 %v717
        %v722 = vld [vmem:[%s7] sm:$0x1]
        %v723 = vmul.f32 %v680, %v680
        %v724 = vmul.f32 %v681, %v681
        %v725 = vmul.f32 %v682, %v682
        %v726 = vmul.f32 %v684, %v684
        %727 = vadd.xlane.f32.xlu0 %v723
        %v728 = vpop.xlane.xlu0 %727
        %729 = vadd.xlane.f32.xlu0 %v724
        %v730 = vpop.xlane.xlu0 %729
        %731 = vadd.xlane.f32.xlu0 %v725
        %v732 = vpop.xlane.xlu0 %731
        %733 = vadd.xlane.f32.xlu0 %v726
        %v734 = vpop.xlane.xlu0 %733
        %v735 = vrsqrt.pop %v728
        %v736 = vmul.f32 %v728, %v735
        %vm737 = vcmp.eq.f32.partialorder %v728, inf
        %v738 = vsel %vm737, %v728, %v736
        %vm739 = vcmp.eq.f32.partialorder %v728, 0.0
        %v740 = vand.u32 %v728, 2147483648
        %v741 = vsel %vm739, %v740, %v738
        %v742 = vrsqrt.pop %v730
        %v743 = vmul.f32 %v730, %v742
        %vm744 = vcmp.eq.f32.partialorder %v730, inf
        %v745 = vsel %vm744, %v730, %v743
        %vm746 = vcmp.eq.f32.partialorder %v730, 0.0
        %v747 = vand.u32 %v730, 2147483648
        %v748 = vsel %vm746, %v747, %v745
        %v749 = vrsqrt.pop %v732
        %v750 = vmul.f32 %v732, %v749
        %vm751 = vcmp.eq.f32.partialorder %v732, inf
        %v752 = vsel %vm751, %v732, %v750
        %vm753 = vcmp.eq.f32.partialorder %v732, 0.0
        %v754 = vand.u32 %v732, 2147483648
        %v755 = vsel %vm753, %v754, %v752
        %v756 = vrsqrt.pop %v734
        %v757 = vmul.f32 %v734, %v756
        %vm758 = vcmp.eq.f32.partialorder %v734, inf
        %v759 = vsel %vm758, %v734, %v757
        %vm760 = vcmp.eq.f32.partialorder %v734, 0.0
        %v761 = vand.u32 %v734, 2147483648
        %v762 = vsel %vm760, %v761, %v759
        %v763 = vmax.f32 %v741, 1e-12
        %v764 = vmax.f32 %v748, 1e-12
        %v765 = vmax.f32 %v755, 1e-12
        %v766 = vmax.f32 %v762, 1e-12
        %v767 = vrcp.pop %v763
        %v768 = vmul.f32 %v680, %v767
        %v769 = vrcp.pop %v764
        %v770 = vmul.f32 %v681, %v769
        %v771 = vrcp.pop %v765
        %v772 = vmul.f32 %v682, %v771
        %v773 = vrcp.pop %v766
        %v774 = vmul.f32 %v684, %v773
        %v775 = vmul.f32 %v768, 5.656854
        %v776 = vmul.f32 %v770, 5.656854
        %v777 = vmul.f32 %v772, 5.656854
        %v778 = vmul.f32 %v774, 5.656854
        %v780 = vlaneseq
        %v781 = vshrl.u32 %v780, 7
        %v782 = vsub.s32 0, %v781
        %v783 = vrot.slane %v722, %v782
        %v785 = vmul.f32 %v775, %v783
        %v786 = vmul.f32 %v776, %v783
        %v787 = vmul.f32 %v777, %v783
        %v788 = vmul.f32 %v778, %v783
        %v789 = vxor.u32 %v785, 2147483648
        %v790 = vxor.u32 %v786, 2147483648
        %v791 = vxor.u32 %v787, 2147483648
        %v792 = vxor.u32 %v788, 2147483648
        %v793 = vmul.f32 %v789, 1.442695
        %v794 = vpow.pop %v793
        %v795 = vmul.f32 %v790, 1.442695
        %v796 = vpow.pop %v795
        %v797 = vmul.f32 %v791, 1.442695
        %v798 = vpow.pop %v797
        %v799 = vmul.f32 %v792, 1.442695
        %v800 = vpow.pop %v799
        %v801 = vadd.f32 %v794, 1.0
        %v802 = vadd.f32 %v796, 1.0
        %v803 = vadd.f32 %v798, 1.0
        %v804 = vadd.f32 %v800, 1.0
        %v805 = vrcp.pop %v801
        %v806 = vmul.f32 1.0, %v805
        %v807 = vrcp.pop %v802
        %v808 = vmul.f32 1.0, %v807
        %v809 = vrcp.pop %v803
        %v810 = vmul.f32 1.0, %v809
        %v811 = vrcp.pop %v804
        %v812 = vmul.f32 1.0, %v811
        %v813 = vmul.f32 %v785, %v806
        %v814 = vmul.f32 %v786, %v808
        %v815 = vmul.f32 %v787, %v810
        %v816 = vmul.f32 %v788, %v812
        %v817 = vmul.f32 %v813, %v718
        %v818 = vmul.f32 %v814, %v719
        %v819 = vmul.f32 %v815, %v720
        %v820 = vmul.f32 %v816, %v721
        %v821 = vrot.slane %v817, 7
        %v822 = vrot.slane %v818, 7
        %v823 = vrot.slane %v819, 7
        %v824 = vrot.slane %v820, 7
        %vm825 = vcmp.lt.s32.totalorder %v687, 1
        %v826 = vsel %vm825, %v823, %v824
        %v827 = vsel %vm825, %v822, %v823
        %v828 = vsel %vm825, %v821, %v822
        %v829 = vsel %vm825, %v824, %v821
        %v830 = vrot.slane %v817, 1
        %v831 = vrot.slane %v818, 1
        %v832 = vrot.slane %v819, 1
        %v833 = vrot.slane %v820, 1
        %vm834 = vcmp.lt.s32.totalorder %v687, 7
        %v835 = vsel %vm834, %v832, %v833
        %v836 = vsel %vm834, %v831, %v832
        %v837 = vsel %vm834, %v830, %v831
        %v838 = vsel %vm834, %v833, %v830
        %v839 = vpack.c.bf16 %v828, %v829
        %v840 = vpack.c.bf16 %v826, %v827
        %v841 = vld [vmem:[#allocation10] sm:$0xf]
        %v842 = vld [vmem:[#allocation10 + $0x4] sm:$0xf]
        %v843 = vld [vmem:[#allocation10 + $0x8] sm:$0xf]
        %v844 = vld [vmem:[#allocation10 + $0xc] sm:$0xf]
        %v845 = vld [vmem:[#allocation10 + $0x10] sm:$0xf]
        %v846 = vld [vmem:[#allocation10 + $0x14] sm:$0xf]
        %v847 = vld [vmem:[#allocation10 + $0x18] sm:$0xf]
        %v848 = vld [vmem:[#allocation10 + $0x1c] sm:$0xf]
        %v849 = vld [vmem:[#allocation10 + $0x20] sm:$0xf]
        %v850 = vld [vmem:[#allocation10 + $0x24] sm:$0xf]
        %v851 = vld [vmem:[#allocation10 + $0x28] sm:$0xf]
        %v852 = vld [vmem:[#allocation10 + $0x2c] sm:$0xf]
        %v853 = vld [vmem:[#allocation10 + $0x30] sm:$0xf]
        %v854 = vld [vmem:[#allocation10 + $0x34] sm:$0xf]
        %v855 = vld [vmem:[#allocation10 + $0x38] sm:$0xf]
        %v856 = vld [vmem:[#allocation10 + $0x3c] sm:$0xf]
        %v857 = vpack.c.bf16 %v818, %v817
        %v858 = vpack.c.bf16 %v820, %v819
        %s859 = scalar_lea.vmem [#allocation10], 64
        %v860 = vld [vmem:[%s859] sm:$0xf]
        %v861 = vld [vmem:[%s859 + $0x4] sm:$0xf]
        %v862 = vld [vmem:[%s859 + $0x8] sm:$0xf]
        %v863 = vld [vmem:[%s859 + $0xc] sm:$0xf]
        %v864 = vld [vmem:[%s859 + $0x10] sm:$0xf]
        %v865 = vld [vmem:[%s859 + $0x14] sm:$0xf]
        %v866 = vld [vmem:[%s859 + $0x18] sm:$0xf]
        %v867 = vld [vmem:[%s859 + $0x1c] sm:$0xf]
        %v868 = vld [vmem:[%s859 + $0x20] sm:$0xf]
        %v869 = vld [vmem:[%s859 + $0x24] sm:$0xf]
        %v870 = vld [vmem:[%s859 + $0x28] sm:$0xf]
        %v871 = vld [vmem:[%s859 + $0x2c] sm:$0xf]
        %v872 = vld [vmem:[%s859 + $0x30] sm:$0xf]
        %v873 = vld [vmem:[%s859 + $0x34] sm:$0xf]
        %v874 = vld [vmem:[%s859 + $0x38] sm:$0xf]
        %v875 = vld [vmem:[%s859 + $0x3c] sm:$0xf]
        %v892 = vunpack.c.l.b16 %v860
        %v893 = vunpack.c.l.b16 %v861
        %v894 = vunpack.c.l.b16 %v862
        %v895 = vunpack.c.l.b16 %v863
        %v896 = vunpack.c.l.b16 %v864
        %v897 = vunpack.c.l.b16 %v865
        %v898 = vunpack.c.l.b16 %v866
        %v899 = vunpack.c.l.b16 %v867
        %v900 = vunpack.c.l.b16 %v868
        %v901 = vunpack.c.l.b16 %v869
        %v902 = vunpack.c.l.b16 %v870
        %v903 = vunpack.c.l.b16 %v871
        %v904 = vunpack.c.l.b16 %v872
        %v905 = vunpack.c.l.b16 %v873
        %v906 = vunpack.c.l.b16 %v874
        %v907 = vunpack.c.l.b16 %v875
        %v908 = vpack.c.b16 %v893, %v892
        %v909 = vpack.c.b16 %v895, %v894
        %v910 = vpack.c.b16 %v897, %v896
        %v911 = vpack.c.b16 %v899, %v898
        %v912 = vpack.c.b16 %v901, %v900
        %v913 = vpack.c.b16 %v903, %v902
        %v914 = vpack.c.b16 %v905, %v904
        %v915 = vpack.c.b16 %v907, %v906
        %924 = vmatprep.subr.bf16.mxu0 0
        %925 = vmatpush1.bf16.msra.mxu0 %v908
        %926 = vmatprep.subr.bf16.mxu0 0
        %927 = vmatpush1.bf16.msra.mxu0 %v909
        %928 = vmatprep.subr.bf16.mxu0 0
        %929 = vmatpush1.bf16.msra.mxu0 %v910
        %930 = vmatprep.subr.bf16.mxu0 0
        %931 = vmatpush1.bf16.msra.mxu0 %v911
        %932 = vmatprep.subr.bf16.mxu0 0
        %933 = vmatpush1.bf16.msra.mxu0 %v912
        %934 = vmatprep.subr.bf16.mxu0 0
        %935 = vmatpush1.bf16.msra.mxu0 %v913
        %936 = vmatprep.subr.bf16.mxu0 0
        %937 = vmatpush1.bf16.msra.mxu0 %v914
        %938 = vmatprep.subr.bf16.mxu0 0
        %939 = vmatpush1.bf16.msra.mxu0 %v915
        %940 = vmatprep.subr.bf16.mxu0 0
        %941 = vmatpush1.bf16.msra.mxu0 0
        %942 = vmatprep.subr.bf16.mxu0 0
        %943 = vmatpush1.bf16.msra.mxu0 0
        %944 = vmatprep.subr.bf16.mxu0 0
        %945 = vmatpush1.bf16.msra.mxu0 0
        %946 = vmatprep.subr.bf16.mxu0 0
        %947 = vmatpush1.bf16.msra.mxu0 0
        %948 = vmatprep.subr.bf16.mxu0 0
        %949 = vmatpush1.bf16.msra.mxu0 0
        %950 = vmatprep.subr.bf16.mxu0 0
        %951 = vmatpush1.bf16.msra.mxu0 0
        %952 = vmatprep.subr.bf16.mxu0 0
        %953 = vmatpush1.bf16.msra.mxu0 0
        %954 = vmatprep.subr.bf16.mxu0 0
        %955 = vmatpush1.bf16.msra.mxu0 0
        %956 = vmatprep.mubr.bf16.mxu0 0
        %957 = vmatmul.mubr.bf16.gmra.mrb[0].mxu0 %v857
        %v958 = vpop.f32.mrb[0].mxu0
        %v959 = vadd.f32 0.0, %v958
        %v960 = vpop.f32.mrb[0].mxu0
        %v961 = vpop.f32.mrb[0].mxu0
        %v962 = vadd.f32 0.0, %v961
        %v963 = vpop.f32.mrb[0].mxu0
        %964 = vmatprep.mubr.bf16.mxu0 0
        %965 = vmatmul.mubr.bf16.gmra.mrb[0].mxu0 %v858
        %v966 = vpop.f32.mrb[0].mxu0
        %v967 = vadd.f32 0.0, %v966
        %v968 = vpop.f32.mrb[0].mxu0
        %v969 = vpop.f32.mrb[0].mxu0
        %v970 = vadd.f32 0.0, %v969
        %v971 = vpop.f32.mrb[0].mxu0
        %972 = vdwg.mxu0
        %v989 = vunpack.c.l.b16 %v841
        %v990 = vunpack.c.l.b16 %v842
        %v991 = vunpack.c.l.b16 %v843
        %v992 = vunpack.c.l.b16 %v844
        %v993 = vunpack.c.l.b16 %v845
        %v994 = vunpack.c.l.b16 %v846
        %v995 = vunpack.c.l.b16 %v847
        %v996 = vunpack.c.l.b16 %v848
        %v997 = vunpack.c.l.b16 %v849
        %v998 = vunpack.c.l.b16 %v850
        %v999 = vunpack.c.l.b16 %v851
        %v1000 = vunpack.c.l.b16 %v852
        %v1001 = vunpack.c.l.b16 %v853
        %v1002 = vunpack.c.l.b16 %v854
        %v1003 = vunpack.c.l.b16 %v855
        %v1004 = vunpack.c.l.b16 %v856
        %v1005 = vpack.c.b16 %v990, %v989
        %v1006 = vpack.c.b16 %v992, %v991
        %v1007 = vpack.c.b16 %v994, %v993
        %v1008 = vpack.c.b16 %v996, %v995
        %v1009 = vpack.c.b16 %v998, %v997
        %v1010 = vpack.c.b16 %v1000, %v999
        %v1011 = vpack.c.b16 %v1002, %v1001
        %v1012 = vpack.c.b16 %v1004, %v1003
        %1021 = vmatprep.subr.bf16.mxu0 0
        %1022 = vmatpush1.bf16.msra.mxu0 %v1005
        %1023 = vmatprep.subr.bf16.mxu0 0
        %1024 = vmatpush1.bf16.msra.mxu0 %v1006
        %1025 = vmatprep.subr.bf16.mxu0 0
        %1026 = vmatpush1.bf16.msra.mxu0 %v1007
        %1027 = vmatprep.subr.bf16.mxu0 0
        %1028 = vmatpush1.bf16.msra.mxu0 %v1008
        %1029 = vmatprep.subr.bf16.mxu0 0
        %1030 = vmatpush1.bf16.msra.mxu0 %v1009
        %1031 = vmatprep.subr.bf16.mxu0 0
        %1032 = vmatpush1.bf16.msra.mxu0 %v1010
        %1033 = vmatprep.subr.bf16.mxu0 0
        %1034 = vmatpush1.bf16.msra.mxu0 %v1011
        %1035 = vmatprep.subr.bf16.mxu0 0
        %1036 = vmatpush1.bf16.msra.mxu0 %v1012
        %1037 = vmatprep.subr.bf16.mxu0 0
        %1038 = vmatpush1.bf16.msra.mxu0 0
        %1039 = vmatprep.subr.bf16.mxu0 0
        %1040 = vmatpush1.bf16.msra.mxu0 0
        %1041 = vmatprep.subr.bf16.mxu0 0
        %1042 = vmatpush1.bf16.msra.mxu0 0
        %1043 = vmatprep.subr.bf16.mxu0 0
        %1044 = vmatpush1.bf16.msra.mxu0 0
        %1045 = vmatprep.subr.bf16.mxu0 0
        %1046 = vmatpush1.bf16.msra.mxu0 0
        %1047 = vmatprep.subr.bf16.mxu0 0
        %1048 = vmatpush1.bf16.msra.mxu0 0
        %1049 = vmatprep.subr.bf16.mxu0 0
        %1050 = vmatpush1.bf16.msra.mxu0 0
        %1051 = vmatprep.subr.bf16.mxu0 0
        %1052 = vmatpush1.bf16.msra.mxu0 0
        %1053 = vmatprep.mubr.bf16.mxu0 0
        %1054 = vmatmul.mubr.bf16.gmra.mrb[0].mxu0 %v839
        %v1055 = vpop.f32.mrb[0].mxu0
        %v1056 = vadd.f32 %v959, %v1055
        %v1057 = vpop.f32.mrb[0].mxu0
        %v1058 = vpop.f32.mrb[0].mxu0
        %v1059 = vadd.f32 %v962, %v1058
        %v1060 = vpop.f32.mrb[0].mxu0
        %1061 = vmatprep.mubr.bf16.mxu0 0
        %1062 = vmatmul.mubr.bf16.gmra.mrb[0].mxu0 %v840
        %v1063 = vpop.f32.mrb[0].mxu0
        %v1064 = vadd.f32 %v967, %v1063
        %v1065 = vpop.f32.mrb[0].mxu0
        %v1066 = vpop.f32.mrb[0].mxu0
        %v1067 = vadd.f32 %v970, %v1066
        %v1068 = vpop.f32.mrb[0].mxu0
        %1069 = vdwg.mxu0
        %v1070 = vpack.c.bf16 %v836, %v837
        %v1071 = vpack.c.bf16 %v838, %v835
        %s1072 = scalar_lea.vmem [#allocation10], 128
        %v1073 = vld [vmem:[%s1072] sm:$0xf]
        %v1074 = vld [vmem:[%s1072 + $0x4] sm:$0xf]
        %v1075 = vld [vmem:[%s1072 + $0x8] sm:$0xf]
        %v1076 = vld [vmem:[%s1072 + $0xc] sm:$0xf]
        %v1077 = vld [vmem:[%s1072 + $0x10] sm:$0xf]
        %v1078 = vld [vmem:[%s1072 + $0x14] sm:$0xf]
        %v1079 = vld [vmem:[%s1072 + $0x18] sm:$0xf]
        %v1080 = vld [vmem:[%s1072 + $0x1c] sm:$0xf]
        %v1081 = vld [vmem:[%s1072 + $0x20] sm:$0xf]
        %v1082 = vld [vmem:[%s1072 + $0x24] sm:$0xf]
        %v1083 = vld [vmem:[%s1072 + $0x28] sm:$0xf]
        %v1084 = vld [vmem:[%s1072 + $0x2c] sm:$0xf]
        %v1085 = vld [vmem:[%s1072 + $0x30] sm:$0xf]
        %v1086 = vld [vmem:[%s1072 + $0x34] sm:$0xf]
        %v1087 = vld [vmem:[%s1072 + $0x38] sm:$0xf]
        %v1088 = vld [vmem:[%s1072 + $0x3c] sm:$0xf]
        %v1105 = vunpack.c.l.b16 %v1073
        %v1106 = vunpack.c.l.b16 %v1074
        %v1107 = vunpack.c.l.b16 %v1075
        %v1108 = vunpack.c.l.b16 %v1076
        %v1109 = vunpack.c.l.b16 %v1077
        %v1110 = vunpack.c.l.b16 %v1078
        %v1111 = vunpack.c.l.b16 %v1079
        %v1112 = vunpack.c.l.b16 %v1080
        %v1113 = vunpack.c.l.b16 %v1081
        %v1114 = vunpack.c.l.b16 %v1082
        %v1115 = vunpack.c.l.b16 %v1083
        %v1116 = vunpack.c.l.b16 %v1084
        %v1117 = vunpack.c.l.b16 %v1085
        %v1118 = vunpack.c.l.b16 %v1086
        %v1119 = vunpack.c.l.b16 %v1087
        %v1120 = vunpack.c.l.b16 %v1088
        %v1121 = vpack.c.b16 %v1106, %v1105
        %v1122 = vpack.c.b16 %v1108, %v1107
        %v1123 = vpack.c.b16 %v1110, %v1109
        %v1124 = vpack.c.b16 %v1112, %v1111
        %v1125 = vpack.c.b16 %v1114, %v1113
        %v1126 = vpack.c.b16 %v1116, %v1115
        %v1127 = vpack.c.b16 %v1118, %v1117
        %v1128 = vpack.c.b16 %v1120, %v1119
        %1137 = vmatprep.subr.bf16.mxu0 0
        %1138 = vmatpush1.bf16.msra.mxu0 %v1121
        %1139 = vmatprep.subr.bf16.mxu0 0
        %1140 = vmatpush1.bf16.msra.mxu0 %v1122
        %1141 = vmatprep.subr.bf16.mxu0 0
        %1142 = vmatpush1.bf16.msra.mxu0 %v1123
        %1143 = vmatprep.subr.bf16.mxu0 0
        %1144 = vmatpush1.bf16.msra.mxu0 %v1124
        %1145 = vmatprep.subr.bf16.mxu0 0
        %1146 = vmatpush1.bf16.msra.mxu0 %v1125
        %1147 = vmatprep.subr.bf16.mxu0 0
        %1148 = vmatpush1.bf16.msra.mxu0 %v1126
        %1149 = vmatprep.subr.bf16.mxu0 0
        %1150 = vmatpush1.bf16.msra.mxu0 %v1127
        %1151 = vmatprep.subr.bf16.mxu0 0
        %1152 = vmatpush1.bf16.msra.mxu0 %v1128
        %1153 = vmatprep.subr.bf16.mxu0 0
        %1154 = vmatpush1.bf16.msra.mxu0 0
        %1155 = vmatprep.subr.bf16.mxu0 0
        %1156 = vmatpush1.bf16.msra.mxu0 0
        %1157 = vmatprep.subr.bf16.mxu0 0
        %1158 = vmatpush1.bf16.msra.mxu0 0
        %1159 = vmatprep.subr.bf16.mxu0 0
        %1160 = vmatpush1.bf16.msra.mxu0 0
        %1161 = vmatprep.subr.bf16.mxu0 0
        %1162 = vmatpush1.bf16.msra.mxu0 0
        %1163 = vmatprep.subr.bf16.mxu0 0
        %1164 = vmatpush1.bf16.msra.mxu0 0
        %1165 = vmatprep.subr.bf16.mxu0 0
        %1166 = vmatpush1.bf16.msra.mxu0 0
        %1167 = vmatprep.subr.bf16.mxu0 0
        %1168 = vmatpush1.bf16.msra.mxu0 0
        %1169 = vmatprep.mubr.bf16.mxu0 0
        %1170 = vmatmul.mubr.bf16.gmra.mrb[0].mxu0 %v1070
        %v1171 = vpop.f32.mrb[0].mxu0
        %v1172 = vadd.f32 0.0, %v1171
        %v1173 = vpop.f32.mrb[0].mxu0
        %v1174 = vpop.f32.mrb[0].mxu0
        %v1175 = vadd.f32 0.0, %v1174
        %v1176 = vpop.f32.mrb[0].mxu0
        %1177 = vmatprep.mubr.bf16.mxu0 0
        %1178 = vmatmul.mubr.bf16.gmra.mrb[0].mxu0 %v1071
        %v1179 = vpop.f32.mrb[0].mxu0
        %v1180 = vadd.f32 0.0, %v1179
        %v1181 = vpop.f32.mrb[0].mxu0
        %v1182 = vpop.f32.mrb[0].mxu0
        %v1183 = vadd.f32 0.0, %v1182
        %v1184 = vpop.f32.mrb[0].mxu0
        %1185 = vdwg.mxu0
        %v1186 = vadd.f32 %v1056, %v1172
        %v1187 = vadd.f32 %v1059, %v1175
        %v1188 = vadd.f32 %v1064, %v1180
        %v1189 = vadd.f32 %v1067, %v1183
        %v1190 = vld [vmem:[%s9] sm:$0x1]
        %v1192 = vlaneseq
        %v1193 = vshrl.u32 %v1192, 7
        %v1194 = vsub.s32 0, %v1193
        %v1195 = vrot.slane %v1190, %v1194
        %v1197 = vadd.f32 %v1186, %v1195
        %v1198 = vadd.f32 %v1187, %v1195
        %v1199 = vadd.f32 %v1188, %v1195
        %v1200 = vadd.f32 %v1189, %v1195
        %v1201 = vld [vmem:[%s10] sm:$0x1]
        %v1202 = vmul.f32 %v1197, %v1197
        %v1203 = vmul.f32 %v1198, %v1198
        %v1204 = vmul.f32 %v1199, %v1199
        %v1205 = vmul.f32 %v1200, %v1200
        %1206 = vadd.xlane.f32.xlu0 %v1202
        %v1207 = vpop.xlane.xlu0 %1206
        %1208 = vadd.xlane.f32.xlu0 %v1203
        %v1209 = vpop.xlane.xlu0 %1208
        %1210 = vadd.xlane.f32.xlu0 %v1204
        %v1211 = vpop.xlane.xlu0 %1210
        %1212 = vadd.xlane.f32.xlu0 %v1205
        %v1213 = vpop.xlane.xlu0 %1212
        %v1214 = vrsqrt.pop %v1207
        %v1215 = vmul.f32 %v1207, %v1214
        %vm1216 = vcmp.eq.f32.partialorder %v1207, inf
        %v1217 = vsel %vm1216, %v1207, %v1215
        %vm1218 = vcmp.eq.f32.partialorder %v1207, 0.0
        %v1219 = vand.u32 %v1207, 2147483648
        %v1220 = vsel %vm1218, %v1219, %v1217
        %v1221 = vrsqrt.pop %v1209
        %v1222 = vmul.f32 %v1209, %v1221
        %vm1223 = vcmp.eq.f32.partialorder %v1209, inf
        %v1224 = vsel %vm1223, %v1209, %v1222
        %vm1225 = vcmp.eq.f32.partialorder %v1209, 0.0
        %v1226 = vand.u32 %v1209, 2147483648
        %v1227 = vsel %vm1225, %v1226, %v1224
        %v1228 = vrsqrt.pop %v1211
        %v1229 = vmul.f32 %v1211, %v1228
        %vm1230 = vcmp.eq.f32.partialorder %v1211, inf
        %v1231 = vsel %vm1230, %v1211, %v1229
        %vm1232 = vcmp.eq.f32.partialorder %v1211, 0.0
        %v1233 = vand.u32 %v1211, 2147483648
        %v1234 = vsel %vm1232, %v1233, %v1231
        %v1235 = vrsqrt.pop %v1213
        %v1236 = vmul.f32 %v1213, %v1235
        %vm1237 = vcmp.eq.f32.partialorder %v1213, inf
        %v1238 = vsel %vm1237, %v1213, %v1236
        %vm1239 = vcmp.eq.f32.partialorder %v1213, 0.0
        %v1240 = vand.u32 %v1213, 2147483648
        %v1241 = vsel %vm1239, %v1240, %v1238
        %v1242 = vmax.f32 %v1220, 1e-12
        %v1243 = vmax.f32 %v1227, 1e-12
        %v1244 = vmax.f32 %v1234, 1e-12
        %v1245 = vmax.f32 %v1241, 1e-12
        %v1246 = vrcp.pop %v1242
        %v1247 = vmul.f32 %v1197, %v1246
        %v1248 = vrcp.pop %v1243
        %v1249 = vmul.f32 %v1198, %v1248
        %v1250 = vrcp.pop %v1244
        %v1251 = vmul.f32 %v1199, %v1250
        %v1252 = vrcp.pop %v1245
        %v1253 = vmul.f32 %v1200, %v1252
        %v1254 = vmul.f32 %v1247, 8.0
        %v1255 = vmul.f32 %v1249, 8.0
        %v1256 = vmul.f32 %v1251, 8.0
        %v1257 = vmul.f32 %v1253, 8.0
        %v1259 = vlaneseq
        %v1260 = vshrl.u32 %v1259, 7
        %v1261 = vsub.s32 0, %v1260
        %v1262 = vrot.slane %v1201, %v1261
        %v1264 = vmul.f32 %v1254, %v1262
        %v1265 = vmul.f32 %v1255, %v1262
        %v1266 = vmul.f32 %v1256, %v1262
        %v1267 = vmul.f32 %v1257, %v1262
        %v1268 = vld [vmem:[%s668] sm:$0x1]
        %v1269 = vadd.f32 %v1268, 1.0
        %v1271 = vlaneseq
        %v1272 = vshrl.u32 %v1271, 7
        %v1273 = vsub.s32 0, %v1272
        %v1274 = vrot.slane %v1269, %v1273
        %v1276 = vmul.f32 %v1264, %v1274
        %v1277 = vmul.f32 %v1265, %v1274
        %v1278 = vmul.f32 %v1266, %v1274
        %v1279 = vmul.f32 %v1267, %v1274
        %v1280 = vld [vmem:[%s671] sm:$0x1]
        %v1282 = vlaneseq
        %v1283 = vshrl.u32 %v1282, 7
        %v1284 = vsub.s32 0, %v1283
        %v1285 = vrot.slane %v1280, %v1284
        %v1287 = vadd.f32 %v1276, %v1285
        %v1288 = vadd.f32 %v1277, %v1285
        %v1289 = vadd.f32 %v1278, %v1285
        %v1290 = vadd.f32 %v1279, %v1285
        %v1291 = vxor.u32 %v1287, 2147483648
        %v1292 = vxor.u32 %v1288, 2147483648
        %v1293 = vxor.u32 %v1289, 2147483648
        %v1294 = vxor.u32 %v1290, 2147483648
        %v1295 = vmul.f32 %v1291, 1.442695
        %v1296 = vpow.pop %v1295
        %v1297 = vmul.f32 %v1292, 1.442695
        %v1298 = vpow.pop %v1297
        %v1299 = vmul.f32 %v1293, 1.442695
        %v1300 = vpow.pop %v1299
        %v1301 = vmul.f32 %v1294, 1.442695
        %v1302 = vpow.pop %v1301
        %v1303 = vadd.f32 %v1296, 1.0
        %v1304 = vadd.f32 %v1298, 1.0
        %v1305 = vadd.f32 %v1300, 1.0
        %v1306 = vadd.f32 %v1302, 1.0
        %v1307 = vrcp.pop %v1303
        %v1308 = vmul.f32 1.0, %v1307
        %v1309 = vrcp.pop %v1304
        %v1310 = vmul.f32 1.0, %v1309
        %v1311 = vrcp.pop %v1305
        %v1312 = vmul.f32 1.0, %v1311
        %v1313 = vrcp.pop %v1306
        %v1314 = vmul.f32 1.0, %v1313
        %v1315 = vmul.f32 %v1287, %v1308
        %v1316 = vmul.f32 %v1288, %v1310
        %v1317 = vmul.f32 %v1289, %v1312
        %v1318 = vmul.f32 %v1290, %v1314
        %v1319 = vmul.f32 %v1315, %v718
        %v1320 = vmul.f32 %v1316, %v719
        %v1321 = vmul.f32 %v1317, %v720
        %v1322 = vmul.f32 %v1318, %v721
        %v1323 = vrot.slane %v1319, 7
        %v1324 = vrot.slane %v1320, 7
        %v1325 = vrot.slane %v1321, 7
        %v1326 = vrot.slane %v1322, 7
        %v1327 = vsel %vm825, %v1325, %v1326
        %v1328 = vsel %vm825, %v1324, %v1325
        %v1329 = vsel %vm825, %v1323, %v1324
        %v1330 = vsel %vm825, %v1326, %v1323
        %v1331 = vrot.slane %v1319, 1
        %v1332 = vrot.slane %v1320, 1
        %v1333 = vrot.slane %v1321, 1
        %v1334 = vrot.slane %v1322, 1
        %v1335 = vsel %vm834, %v1333, %v1334
        %v1336 = vsel %vm834, %v1332, %v1333
        %v1337 = vsel %vm834, %v1331, %v1332
        %v1338 = vsel %vm834, %v1334, %v1331
        %v1339 = vpack.c.bf16 %v1329, %v1330
        %v1340 = vpack.c.bf16 %v1327, %v1328
        %v1341 = vld [vmem:[#allocation12] sm:$0xf]
        %v1342 = vld [vmem:[#allocation12 + $0x4] sm:$0xf]
        %v1343 = vld [vmem:[#allocation12 + $0x8] sm:$0xf]
        %v1344 = vld [vmem:[#allocation12 + $0xc] sm:$0xf]
        %v1345 = vld [vmem:[#allocation12 + $0x10] sm:$0xf]
        %v1346 = vld [vmem:[#allocation12 + $0x14] sm:$0xf]
        %v1347 = vld [vmem:[#allocation12 + $0x18] sm:$0xf]
        %v1348 = vld [vmem:[#allocation12 + $0x1c] sm:$0xf]
        %v1349 = vld [vmem:[#allocation12 + $0x20] sm:$0xf]
        %v1350 = vld [vmem:[#allocation12 + $0x24] sm:$0xf]
        %v1351 = vld [vmem:[#allocation12 + $0x28] sm:$0xf]
        %v1352 = vld [vmem:[#allocation12 + $0x2c] sm:$0xf]
        %v1353 = vld [vmem:[#allocation12 + $0x30] sm:$0xf]
        %v1354 = vld [vmem:[#allocation12 + $0x34] sm:$0xf]
        %v1355 = vld [vmem:[#allocation12 + $0x38] sm:$0xf]
        %v1356 = vld [vmem:[#allocation12 + $0x3c] sm:$0xf]
        %v1357 = vpack.c.bf16 %v1320, %v1319
        %v1358 = vpack.c.bf16 %v1322, %v1321
        %s1359 = scalar_lea.vmem [#allocation12], 64
        %v1360 = vld [vmem:[%s1359] sm:$0xf]
        %v1361 = vld [vmem:[%s1359 + $0x4] sm:$0xf]
        %v1362 = vld [vmem:[%s1359 + $0x8] sm:$0xf]
        %v1363 = vld [vmem:[%s1359 + $0xc] sm:$0xf]
        %v1364 = vld [vmem:[%s1359 + $0x10] sm:$0xf]
        %v1365 = vld [vmem:[%s1359 + $0x14] sm:$0xf]
        %v1366 = vld [vmem:[%s1359 + $0x18] sm:$0xf]
        %v1367 = vld [vmem:[%s1359 + $0x1c] sm:$0xf]
        %v1368 = vld [vmem:[%s1359 + $0x20] sm:$0xf]
        %v1369 = vld [vmem:[%s1359 + $0x24] sm:$0xf]
        %v1370 = vld [vmem:[%s1359 + $0x28] sm:$0xf]
        %v1371 = vld [vmem:[%s1359 + $0x2c] sm:$0xf]
        %v1372 = vld [vmem:[%s1359 + $0x30] sm:$0xf]
        %v1373 = vld [vmem:[%s1359 + $0x34] sm:$0xf]
        %v1374 = vld [vmem:[%s1359 + $0x38] sm:$0xf]
        %v1375 = vld [vmem:[%s1359 + $0x3c] sm:$0xf]
        %v1392 = vunpack.c.l.b16 %v1360
        %v1393 = vunpack.c.l.b16 %v1361
        %v1394 = vunpack.c.l.b16 %v1362
        %v1395 = vunpack.c.l.b16 %v1363
        %v1396 = vunpack.c.l.b16 %v1364
        %v1397 = vunpack.c.l.b16 %v1365
        %v1398 = vunpack.c.l.b16 %v1366
        %v1399 = vunpack.c.l.b16 %v1367
        %v1400 = vunpack.c.l.b16 %v1368
        %v1401 = vunpack.c.l.b16 %v1369
        %v1402 = vunpack.c.l.b16 %v1370
        %v1403 = vunpack.c.l.b16 %v1371
        %v1404 = vunpack.c.l.b16 %v1372
        %v1405 = vunpack.c.l.b16 %v1373
        %v1406 = vunpack.c.l.b16 %v1374
        %v1407 = vunpack.c.l.b16 %v1375
        %v1408 = vpack.c.b16 %v1393, %v1392
        %v1409 = vpack.c.b16 %v1395, %v1394
        %v1410 = vpack.c.b16 %v1397, %v1396
        %v1411 = vpack.c.b16 %v1399, %v1398
        %v1412 = vpack.c.b16 %v1401, %v1400
        %v1413 = vpack.c.b16 %v1403, %v1402
        %v1414 = vpack.c.b16 %v1405, %v1404
        %v1415 = vpack.c.b16 %v1407, %v1406
        %1424 = vmatprep.subr.bf16.mxu0 0
        %1425 = vmatpush1.bf16.msra.mxu0 %v1408
        %1426 = vmatprep.subr.bf16.mxu0 0
        %1427 = vmatpush1.bf16.msra.mxu0 %v1409
        %1428 = vmatprep.subr.bf16.mxu0 0
        %1429 = vmatpush1.bf16.msra.mxu0 %v1410
        %1430 = vmatprep.subr.bf16.mxu0 0
        %1431 = vmatpush1.bf16.msra.mxu0 %v1411
        %1432 = vmatprep.subr.bf16.mxu0 0
        %1433 = vmatpush1.bf16.msra.mxu0 %v1412
        %1434 = vmatprep.subr.bf16.mxu0 0
        %1435 = vmatpush1.bf16.msra.mxu0 %v1413
        %1436 = vmatprep.subr.bf16.mxu0 0
        %1437 = vmatpush1.bf16.msra.mxu0 %v1414
        %1438 = vmatprep.subr.bf16.mxu0 0
        %1439 = vmatpush1.bf16.msra.mxu0 %v1415
        %1440 = vmatprep.subr.bf16.mxu0 0
        %1441 = vmatpush1.bf16.msra.mxu0 0
        %1442 = vmatprep.subr.bf16.mxu0 0
        %1443 = vmatpush1.bf16.msra.mxu0 0
        %1444 = vmatprep.subr.bf16.mxu0 0
        %1445 = vmatpush1.bf16.msra.mxu0 0
        %1446 = vmatprep.subr.bf16.mxu0 0
        %1447 = vmatpush1.bf16.msra.mxu0 0
        %1448 = vmatprep.subr.bf16.mxu0 0
        %1449 = vmatpush1.bf16.msra.mxu0 0
        %1450 = vmatprep.subr.bf16.mxu0 0
        %1451 = vmatpush1.bf16.msra.mxu0 0
        %1452 = vmatprep.subr.bf16.mxu0 0
        %1453 = vmatpush1.bf16.msra.mxu0 0
        %1454 = vmatprep.subr.bf16.mxu0 0
        %1455 = vmatpush1.bf16.msra.mxu0 0
        %1456 = vmatprep.mubr.bf16.mxu0 0
        %1457 = vmatmul.mubr.bf16.gmra.mrb[0].mxu0 %v1357
        %v1458 = vpop.f32.mrb[0].mxu0
        %v1459 = vpop.f32.mrb[0].mxu0
        %v1460 = vpop.f32.mrb[0].mxu0
        %v1461 = vadd.f32 0.0, %v1460
        %v1462 = vpop.f32.mrb[0].mxu0
        %1463 = vmatprep.mubr.bf16.mxu0 0
        %1464 = vmatmul.mubr.bf16.gmra.mrb[0].mxu0 %v1358
        %v1465 = vpop.f32.mrb[0].mxu0
        %v1466 = vadd.f32 0.0, %v1465
        %v1467 = vpop.f32.mrb[0].mxu0
        %v1468 = vpop.f32.mrb[0].mxu0
        %v1469 = vpop.f32.mrb[0].mxu0
        %1470 = vdwg.mxu0
        %v1487 = vunpack.c.l.b16 %v1341
        %v1488 = vunpack.c.l.b16 %v1342
        %v1489 = vunpack.c.l.b16 %v1343
        %v1490 = vunpack.c.l.b16 %v1344
        %v1491 = vunpack.c.l.b16 %v1345
        %v1492 = vunpack.c.l.b16 %v1346
        %v1493 = vunpack.c.l.b16 %v1347
        %v1494 = vunpack.c.l.b16 %v1348
        %v1495 = vunpack.c.l.b16 %v1349
        %v1496 = vunpack.c.l.b16 %v1350
        %v1497 = vunpack.c.l.b16 %v1351
        %v1498 = vunpack.c.l.b16 %v1352
        %v1499 = vunpack.c.l.b16 %v1353
        %v1500 = vunpack.c.l.b16 %v1354
        %v1501 = vunpack.c.l.b16 %v1355
        %v1502 = vunpack.c.l.b16 %v1356
        %v1503 = vpack.c.b16 %v1488, %v1487
        %v1504 = vpack.c.b16 %v1490, %v1489
        %v1505 = vpack.c.b16 %v1492, %v1491
        %v1506 = vpack.c.b16 %v1494, %v1493
        %v1507 = vpack.c.b16 %v1496, %v1495
        %v1508 = vpack.c.b16 %v1498, %v1497
        %v1509 = vpack.c.b16 %v1500, %v1499
        %v1510 = vpack.c.b16 %v1502, %v1501
        %1519 = vmatprep.subr.bf16.mxu0 0
        %1520 = vmatpush1.bf16.msra.mxu0 %v1503
        %1521 = vmatprep.subr.bf16.mxu0 0
        %1522 = vmatpush1.bf16.msra.mxu0 %v1504
        %1523 = vmatprep.subr.bf16.mxu0 0
        %1524 = vmatpush1.bf16.msra.mxu0 %v1505
        %1525 = vmatprep.subr.bf16.mxu0 0
        %1526 = vmatpush1.bf16.msra.mxu0 %v1506
        %1527 = vmatprep.subr.bf16.mxu0 0
        %1528 = vmatpush1.bf16.msra.mxu0 %v1507
        %1529 = vmatprep.subr.bf16.mxu0 0
        %1530 = vmatpush1.bf16.msra.mxu0 %v1508
        %1531 = vmatprep.subr.bf16.mxu0 0
        %1532 = vmatpush1.bf16.msra.mxu0 %v1509
        %1533 = vmatprep.subr.bf16.mxu0 0
        %1534 = vmatpush1.bf16.msra.mxu0 %v1510
        %1535 = vmatprep.subr.bf16.mxu0 0
        %1536 = vmatpush1.bf16.msra.mxu0 0
        %1537 = vmatprep.subr.bf16.mxu0 0
        %1538 = vmatpush1.bf16.msra.mxu0 0
        %1539 = vmatprep.subr.bf16.mxu0 0
        %1540 = vmatpush1.bf16.msra.mxu0 0
        %1541 = vmatprep.subr.bf16.mxu0 0
        %1542 = vmatpush1.bf16.msra.mxu0 0
        %1543 = vmatprep.subr.bf16.mxu0 0
        %1544 = vmatpush1.bf16.msra.mxu0 0
        %1545 = vmatprep.subr.bf16.mxu0 0
        %1546 = vmatpush1.bf16.msra.mxu0 0
        %1547 = vmatprep.subr.bf16.mxu0 0
        %1548 = vmatpush1.bf16.msra.mxu0 0
        %1549 = vmatprep.subr.bf16.mxu0 0
        %1550 = vmatpush1.bf16.msra.mxu0 0
        %1551 = vmatprep.mubr.bf16.mxu0 0
        %1552 = vmatmul.mubr.bf16.gmra.mrb[0].mxu0 %v1339
        %v1553 = vpop.f32.mrb[0].mxu0
        %v1554 = vpop.f32.mrb[0].mxu0
        %v1555 = vpop.f32.mrb[0].mxu0
        %v1556 = vadd.f32 %v1461, %v1555
        %v1557 = vpop.f32.mrb[0].mxu0
        %1558 = vmatprep.mubr.bf16.mxu0 0
        %1559 = vmatmul.mubr.bf16.gmra.mrb[0].mxu0 %v1340
        %v1560 = vpop.f32.mrb[0].mxu0
        %v1561 = vadd.f32 %v1466, %v1560
        %v1562 = vpop.f32.mrb[0].mxu0
        %v1563 = vpop.f32.mrb[0].mxu0
        %v1564 = vpop.f32.mrb[0].mxu0
        %1565 = vdwg.mxu0
        %v1566 = vpack.c.bf16 %v1336, %v1337
        %v1567 = vpack.c.bf16 %v1338, %v1335
        %s1568 = scalar_lea.vmem [#allocation12], 128
        %v1569 = vld [vmem:[%s1568] sm:$0xf]
        %v1570 = vld [vmem:[%s1568 + $0x4] sm:$0xf]
        %v1571 = vld [vmem:[%s1568 + $0x8] sm:$0xf]
        %v1572 = vld [vmem:[%s1568 + $0xc] sm:$0xf]
        %v1573 = vld [vmem:[%s1568 + $0x10] sm:$0xf]
        %v1574 = vld [vmem:[%s1568 + $0x14] sm:$0xf]
        %v1575 = vld [vmem:[%s1568 + $0x18] sm:$0xf]
        %v1576 = vld [vmem:[%s1568 + $0x1c] sm:$0xf]
        %v1577 = vld [vmem:[%s1568 + $0x20] sm:$0xf]
        %v1578 = vld [vmem:[%s1568 + $0x24] sm:$0xf]
        %v1579 = vld [vmem:[%s1568 + $0x28] sm:$0xf]
        %v1580 = vld [vmem:[%s1568 + $0x2c] sm:$0xf]
        %v1581 = vld [vmem:[%s1568 + $0x30] sm:$0xf]
        %v1582 = vld [vmem:[%s1568 + $0x34] sm:$0xf]
        %v1583 = vld [vmem:[%s1568 + $0x38] sm:$0xf]
        %v1584 = vld [vmem:[%s1568 + $0x3c] sm:$0xf]
        %v1601 = vunpack.c.l.b16 %v1569
        %v1602 = vunpack.c.l.b16 %v1570
        %v1603 = vunpack.c.l.b16 %v1571
        %v1604 = vunpack.c.l.b16 %v1572
        %v1605 = vunpack.c.l.b16 %v1573
        %v1606 = vunpack.c.l.b16 %v1574
        %v1607 = vunpack.c.l.b16 %v1575
        %v1608 = vunpack.c.l.b16 %v1576
        %v1609 = vunpack.c.l.b16 %v1577
        %v1610 = vunpack.c.l.b16 %v1578
        %v1611 = vunpack.c.l.b16 %v1579
        %v1612 = vunpack.c.l.b16 %v1580
        %v1613 = vunpack.c.l.b16 %v1581
        %v1614 = vunpack.c.l.b16 %v1582
        %v1615 = vunpack.c.l.b16 %v1583
        %v1616 = vunpack.c.l.b16 %v1584
        %v1617 = vpack.c.b16 %v1602, %v1601
        %v1618 = vpack.c.b16 %v1604, %v1603
        %v1619 = vpack.c.b16 %v1606, %v1605
        %v1620 = vpack.c.b16 %v1608, %v1607
        %v1621 = vpack.c.b16 %v1610, %v1609
        %v1622 = vpack.c.b16 %v1612, %v1611
        %v1623 = vpack.c.b16 %v1614, %v1613
        %v1624 = vpack.c.b16 %v1616, %v1615
        %1633 = vmatprep.subr.bf16.mxu0 0
        %1634 = vmatpush1.bf16.msra.mxu0 %v1617
        %1635 = vmatprep.subr.bf16.mxu0 0
        %1636 = vmatpush1.bf16.msra.mxu0 %v1618
        %1637 = vmatprep.subr.bf16.mxu0 0
        %1638 = vmatpush1.bf16.msra.mxu0 %v1619
        %1639 = vmatprep.subr.bf16.mxu0 0
        %1640 = vmatpush1.bf16.msra.mxu0 %v1620
        %1641 = vmatprep.subr.bf16.mxu0 0
        %1642 = vmatpush1.bf16.msra.mxu0 %v1621
        %1643 = vmatprep.subr.bf16.mxu0 0
        %1644 = vmatpush1.bf16.msra.mxu0 %v1622
        %1645 = vmatprep.subr.bf16.mxu0 0
        %1646 = vmatpush1.bf16.msra.mxu0 %v1623
        %1647 = vmatprep.subr.bf16.mxu0 0
        %1648 = vmatpush1.bf16.msra.mxu0 %v1624
        %1649 = vmatprep.subr.bf16.mxu0 0
        %1650 = vmatpush1.bf16.msra.mxu0 0
        %1651 = vmatprep.subr.bf16.mxu0 0
        %1652 = vmatpush1.bf16.msra.mxu0 0
        %1653 = vmatprep.subr.bf16.mxu0 0
        %1654 = vmatpush1.bf16.msra.mxu0 0
        %1655 = vmatprep.subr.bf16.mxu0 0
        %1656 = vmatpush1.bf16.msra.mxu0 0
        %1657 = vmatprep.subr.bf16.mxu0 0
        %1658 = vmatpush1.bf16.msra.mxu0 0
        %1659 = vmatprep.subr.bf16.mxu0 0
        %1660 = vmatpush1.bf16.msra.mxu0 0
        %1661 = vmatprep.subr.bf16.mxu0 0
        %1662 = vmatpush1.bf16.msra.mxu0 0
        %1663 = vmatprep.subr.bf16.mxu0 0
        %1664 = vmatpush1.bf16.msra.mxu0 0
        %1665 = vmatprep.mubr.bf16.mxu0 0
        %1666 = vmatmul.mubr.bf16.gmra.mrb[0].mxu0 %v1566
        %v1667 = vpop.f32.mrb[0].mxu0
        %v1668 = vpop.f32.mrb[0].mxu0
        %v1669 = vpop.f32.mrb[0].mxu0
        %v1670 = vadd.f32 0.0, %v1669
        %v1671 = vpop.f32.mrb[0].mxu0
        %1672 = vmatprep.mubr.bf16.mxu0 0
        %1673 = vmatmul.mubr.bf16.gmra.mrb[0].mxu0 %v1567
        %v1674 = vpop.f32.mrb[0].mxu0
        %v1675 = vadd.f32 0.0, %v1674
        %v1676 = vpop.f32.mrb[0].mxu0
        %v1677 = vpop.f32.mrb[0].mxu0
        %v1678 = vpop.f32.mrb[0].mxu0
        %1679 = vdwg.mxu0
        %v1680 = vadd.f32 %v1556, %v1670
        %v1681 = vadd.f32 %v1561, %v1675
        %v1682 = vld [vmem:[%s12] sm:$0x1]
        %v1684 = vlaneseq
        %v1685 = vshrl.u32 %v1684, 7
        %v1686 = vsub.s32 0, %v1685
        %v1687 = vrot.slane %v1682, %v1686
        %v1689 = vadd.f32 %v1680, %v1687
        %v1690 = vadd.f32 %v1681, %v1687
        %v1691 = vld [vmem:[#allocation13] sm:$0xf]
        %v1692 = vld [vmem:[#allocation13 + $0x4] sm:$0xf]
        %v1693 = vld [vmem:[#allocation13 + $0x8] sm:$0xf]
        %v1694 = vld [vmem:[#allocation13 + $0xc] sm:$0xf]
        %v1695 = vld [vmem:[#allocation13 + $0x10] sm:$0xf]
        %v1696 = vld [vmem:[#allocation13 + $0x14] sm:$0xf]
        %v1697 = vld [vmem:[#allocation13 + $0x18] sm:$0xf]
        %v1698 = vld [vmem:[#allocation13 + $0x1c] sm:$0xf]
        %v1699 = vld [vmem:[#allocation13 + $0x20] sm:$0xf]
        %v1700 = vld [vmem:[#allocation13 + $0x24] sm:$0xf]
        %v1701 = vld [vmem:[#allocation13 + $0x28] sm:$0xf]
        %v1702 = vld [vmem:[#allocation13 + $0x2c] sm:$0xf]
        %v1703 = vld [vmem:[#allocation13 + $0x30] sm:$0xf]
        %v1704 = vld [vmem:[#allocation13 + $0x34] sm:$0xf]
        %v1705 = vld [vmem:[#allocation13 + $0x38] sm:$0xf]
        %v1706 = vld [vmem:[#allocation13 + $0x3c] sm:$0xf]
        %v1707 = vld [vmem:[%s14] sm:$0x1]
        %v1709 = vlaneseq
        %v1710 = vshrl.u32 %v1709, 7
        %v1711 = vsub.s32 0, %v1710
        %v1712 = vrot.slane %v1707, %v1711
        %v1716 = vunpack.c.l.b16 %v677
        %v1717 = vunpack.c.l.b16 %v678
        %v1718 = vpack.c.b16 %v1717, %v1716
        %v1736 = vunpack.c.l.b16 %v1691
        %v1737 = vunpack.c.l.b16 %v1692
        %v1738 = vunpack.c.l.b16 %v1693
        %v1739 = vunpack.c.l.b16 %v1694
        %v1740 = vunpack.c.l.b16 %v1695
        %v1741 = vunpack.c.l.b16 %v1696
        %v1742 = vunpack.c.l.b16 %v1697
        %v1743 = vunpack.c.l.b16 %v1698
        %v1744 = vunpack.c.l.b16 %v1699
        %v1745 = vunpack.c.l.b16 %v1700
        %v1746 = vunpack.c.l.b16 %v1701
        %v1747 = vunpack.c.l.b16 %v1702
        %v1748 = vunpack.c.l.b16 %v1703
        %v1749 = vunpack.c.l.b16 %v1704
        %v1750 = vunpack.c.l.b16 %v1705
        %v1751 = vunpack.c.l.b16 %v1706
        %v1752 = vpack.c.b16 %v1737, %v1736
        %v1753 = vpack.c.b16 %v1739, %v1738
        %v1754 = vpack.c.b16 %v1741, %v1740
        %v1755 = vpack.c.b16 %v1743, %v1742
        %v1756 = vpack.c.b16 %v1745, %v1744
        %v1757 = vpack.c.b16 %v1747, %v1746
        %v1758 = vpack.c.b16 %v1749, %v1748
        %v1759 = vpack.c.b16 %v1751, %v1750
        %1768 = vmatprep.subr.bf16.mxu0 0
        %1769 = vmatpush1.bf16.msra.mxu0 %v1752
        %1770 = vmatprep.subr.bf16.mxu0 0
        %1771 = vmatpush1.bf16.msra.mxu0 %v1753
        %1772 = vmatprep.subr.bf16.mxu0 0
        %1773 = vmatpush1.bf16.msra.mxu0 %v1754
        %1774 = vmatprep.subr.bf16.mxu0 0
        %1775 = vmatpush1.bf16.msra.mxu0 %v1755
        %1776 = vmatprep.subr.bf16.mxu0 0
        %1777 = vmatpush1.bf16.msra.mxu0 %v1756
        %1778 = vmatprep.subr.bf16.mxu0 0
        %1779 = vmatpush1.bf16.msra.mxu0 %v1757
        %1780 = vmatprep.subr.bf16.mxu0 0
        %1781 = vmatpush1.bf16.msra.mxu0 %v1758
        %1782 = vmatprep.subr.bf16.mxu0 0
        %1783 = vmatpush1.bf16.msra.mxu0 %v1759
        %1784 = vmatprep.subr.bf16.mxu0 0
        %1785 = vmatpush1.bf16.msra.mxu0 0
        %1786 = vmatprep.subr.bf16.mxu0 0
        %1787 = vmatpush1.bf16.msra.mxu0 0
        %1788 = vmatprep.subr.bf16.mxu0 0
        %1789 = vmatpush1.bf16.msra.mxu0 0
        %1790 = vmatprep.subr.bf16.mxu0 0
        %1791 = vmatpush1.bf16.msra.mxu0 0
        %1792 = vmatprep.subr.bf16.mxu0 0
        %1793 = vmatpush1.bf16.msra.mxu0 0
        %1794 = vmatprep.subr.bf16.mxu0 0
        %1795 = vmatpush1.bf16.msra.mxu0 0
        %1796 = vmatprep.subr.bf16.mxu0 0
        %1797 = vmatpush1.bf16.msra.mxu0 0
        %1798 = vmatprep.subr.bf16.mxu0 0
        %1799 = vmatpush1.bf16.msra.mxu0 0
        %1800 = vmatprep.mubr.bf16.mxu0 0
        %1801 = vmatmul.mubr.bf16.gmra.mrb[0].mxu0 %v1718
        %v1802 = vpop.f32.mrb[0].mxu0
        %v1803 = vadd.f32 %v1712, %v1802
        %v1804 = vpop.f32.mrb[0].mxu0
        %v1805 = vpop.f32.mrb[0].mxu0
        %v1806 = vadd.f32 %v1712, %v1805
        %v1807 = vpop.f32.mrb[0].mxu0
        %1808 = vdwg.mxu0
        %v1809 = vld [vmem:[%s674] sm:$0x1]
        %v1811 = vlaneseq
        %v1812 = vshrl.u32 %v1811, 7
        %v1813 = vsub.s32 0, %v1812
        %v1814 = vrot.slane %v1809, %v1813
        %v1816 = vmul.f32 %v1689, %v1814
        %v1817 = vmul.f32 %v1690, %v1814
        %v1818 = vadd.f32 %v1816, %v1803
        %v1819 = vadd.f32 %v1817, %v1806
        %1820 = vst [vmem:[%s664] sm:$0xff] %v1818
        %1821 = vst [vmem:[%s664 + $0x8] sm:$0xff] %v1819
        %s1822 = sand.u32 %s393, 1
        %s1823 = scalar_lea.sflag [#allocation6], %s1822
        %s1824 = sand.u32 %s393, 1
        %s1825 = smul.addr %s1824, 16
        %s1826 = scalar_lea.vmem [#allocation15], %s1825
        // Predicated region
        $region101: #{tpu_custom_call.1} parent=75 // pred_check
          %p1827 = pneg %p403
        $region102: #{tpu_custom_call.1} parent=75 // pred_check_branch
          %1829 = sbr.rel (%p1827) target = $region104
        $region103: #{tpu_custom_call.1} parent=75 // pred_region
          %s1830 = smul.u32 2, %s46
          %s1832 = ssub.s32 256, 256
          %1833 = vsyncadd %s1823, %s1832
          %s1834 = smul.addr %s45, 6
          %s1835 = sadd.s32 %s1830, %s1834
          %s1836 = smul.addr %s1835, 128
          %s1837 = scalar_lea.hbm %s15, %s1836
          %s1838 = sshll.u32 %s1826, 4
          %s1839 = int_to_ptr.vmem [resolvable:$true] %s1838
          %1844 = dma.vmem_to_hbm [thread:$0]  %s1839, 256, %s1837, %s1823, 128, 128, 8
        $region104: #{tpu_custom_call.1} parent=75 // pred_fallthru
          _
      $region76: #{tpu_custom_call.1} parent=5 // pred_fallthru
        _
      %p1845 = scmp.le.s32.totalorder 2, %s36
      // Predicated region
      $region105: #{tpu_custom_call.1} parent=5 // pred_check
        %p1846 = pneg %p1845
      $region106: #{tpu_custom_call.1} parent=5 // pred_check_branch
        %1848 = sbr.rel (%p1846) target = $region108
      $region107: #{tpu_custom_call.1} parent=5 // pred_region
        %s1849 = ssub.s32 %s36, 2
        // Predicated region
        $region109: #{tpu_custom_call.1} parent=107 // pred_check
          %p1850 = pneg %p409
        $region110: #{tpu_custom_call.1} parent=107 // pred_check_branch
          %1852 = sbr.rel (%p1850) target = $region112
        $region111: #{tpu_custom_call.1} parent=107 // pred_region
          %s1853 = sand.u32 %s394, 1
          %s1854 = scalar_lea.sflag [#allocation6], %s1853
          %s1855 = sand.u32 %s394, 1
          %s1856 = smul.addr %s1855, 16
          %s1857 = scalar_lea.vmem [#allocation15], %s1856
          %1858 = dma.done %s1854, 256
        $region112: #{tpu_custom_call.1} parent=107 // pred_fallthru
          _
      $region108: #{tpu_custom_call.1} parent=5 // pred_fallthru
        _
    $region6: #{tpu_custom_call.1} parent=1 // loop_footer
      %s40 = sadd.s32 1, %s36
    $region7: #{tpu_custom_call.1} parent=1 // loop_footer_branch
      %35 = sbr.rel target = $region3
    $region8: #{tpu_custom_call.1} parent=1 // loop_exit
      _
    %1859 = vsyncpa [#allocation5], 1
    %s1860 = scalar_lea.sflag [#allocation5], 1
    %1861 = vsyncpa %s1860, 1
    %1862 = vsyncpa [#allocation8], 1
    %s1863 = scalar_lea.sflag [#allocation8], 1
    %1864 = vsyncpa %s1863, 1
    %1865 = vsyncpa [#allocation11], 1
    %1866 = vsyncpa [#allocation14], 1
    %1867 = vsyncpa [#allocation6], 1
    %s1868 = scalar_lea.sflag [#allocation6], 1
    %1869 = vsyncpa %s1868, 1

// kernel: tpu_custom_call.1
$region0: #{tpu_custom_call.1}
  #allocation0 [shape = 'u32[]', space=smem, size = 0x4, offset = 0x4, fixed_abs, tag = 'smem constant byte address 0x4 - core index']
  #allocation1 [shape = 'u32[144,128]{1,0:T(1,128)}', space=vmem, size = 0x12000, scoped, tag = 'internal scratch']
  #allocation2 [shape = 's32[1]{0}', space=sflag, size = 0x4, scoped, tag = 'scoped memory for tpu_custom_call.1']
  #allocation3 [shape = 'u8[512]{0}', space=smem, size = 0x200, scoped, tag = 'prefetched SMEM operand 0']
  %s0 = inlined_call_operand.hbm [shape: s32[4], index: 0, kind: input, shape index: {}]
  %s1 = inlined_call_operand.hbm [shape: bf16[4,48,128], index: 1, kind: input, shape index: {}]
  %s2 = inlined_call_operand.hbm [shape: bf16[4,3,8,128], index: 2, kind: input, shape index: {}]
  %s3 = inlined_call_operand.hbm [shape: bf16[4,3,8,128], index: 3, kind: input, shape index: {}]
  %s4 = inlined_call_operand.vmem [shape: f32[4,1,128], index: 4, kind: input, shape index: {}]
  %s5 = inlined_call_operand.vmem [shape: f32[4,1,128], index: 5, kind: input, shape index: {}]
  %s6 = inlined_call_operand.vmem [shape: f32[4,1,128], index: 6, kind: input, shape index: {}]
  %s7 = inlined_call_operand.vmem [shape: f32[1,128], index: 7, kind: input, shape index: {}]
  %s8 = inlined_call_operand.hbm [shape: bf16[3,128,128], index: 8, kind: input, shape index: {}]
  %s9 = inlined_call_operand.vmem [shape: f32[1,128], index: 9, kind: input, shape index: {}]
  %s10 = inlined_call_operand.vmem [shape: f32[1,128], index: 10, kind: input, shape index: {}]
  %s11 = inlined_call_operand.hbm [shape: bf16[3,128,128], index: 11, kind: input, shape index: {}]
  %s12 = inlined_call_operand.vmem [shape: f32[1,128], index: 12, kind: input, shape index: {}]
  %s13 = inlined_call_operand.hbm [shape: bf16[128,128], index: 13, kind: input, shape index: {}]
  %s14 = inlined_call_operand.vmem [shape: f32[1,128], index: 14, kind: input, shape index: {}]
  %s15 = inlined_call_operand.hbm [shape: f32[4,48,128], index: 15, kind: output, shape index: {}]
  %s16 = sld [smem:[#allocation0]]
  $region113: #{tpu_custom_call.1} parent=0
    _
  %s18 = ssub.s32 1, %s16
  %s19 = scalar_select 0, %s18, %s16
  %21 = dma.hbm_to_smem %s0, 16, [#allocation3], [#allocation2]
  %22 = dma.done [#allocation2], 16
  %23 = sfence
  $region1: #{tpu_custom_call.1} parent=0
    #allocation4 [shape = 'u8[8192]{0}', space=vmem, size = 0x2000, scoped, tag = 'input window, operand 1']
    #allocation5 [shape = 's32[2]{0}', space=sflag, size = 0x8, scoped, tag = 'scoped memory for tpu_custom_call.1']
    #allocation6 [shape = 's32[2]{0}', space=sflag, size = 0x8, scoped, tag = 'scoped memory for tpu_custom_call.1']
    #allocation7 [shape = 'u8[4096]{0}', space=vmem, size = 0x1000, scoped, tag = 'input window, operand 2']
    #allocation8 [shape = 's32[2]{0}', space=sflag, size = 0x8, scoped, tag = 'scoped memory for tpu_custom_call.1']
    #allocation9 [shape = 'u8[4096]{0}', space=vmem, size = 0x1000, scoped, tag = 'input window, operand 3']
    #allocation10 [shape = 'u8[98304]{0}', space=vmem, size = 0x18000, scoped, tag = 'input window, operand 8, single buffered']
    #allocation11 [shape = 's32[1]{0}', space=sflag, size = 0x4, scoped, tag = 'scoped memory for tpu_custom_call.1']
    #allocation12 [shape = 'u8[98304]{0}', space=vmem, size = 0x18000, scoped, tag = 'input window, operand 11, single buffered']
    #allocation13 [shape = 'u8[32768]{0}', space=vmem, size = 0x8000, scoped, tag = 'input window, operand 13, single buffered']
    #allocation14 [shape = 's32[1]{0}', space=sflag, size = 0x4, scoped, tag = 'scoped memory for tpu_custom_call.1']
    #allocation15 [shape = 'u8[16384]{0}', space=vmem, size = 0x4000, scoped, tag = 'output window, operand 0']
    %24 = vsyncpa [#allocation5], 0
    %s25 = scalar_lea.sflag [#allocation5], 1
    %26 = vsyncpa %s25, 0
    %27 = vsyncpa [#allocation8], 0
    %s28 = scalar_lea.sflag [#allocation8], 1
    %29 = vsyncpa %s28, 0
    %30 = vsyncpa [#allocation11], 0
    %31 = vsyncpa [#allocation14], 0
    %32 = vsyncpa [#allocation6], 0
    %s33 = scalar_lea.sflag [#allocation6], 1
    %34 = vsyncpa %s33, 0
    loop: start=0, step=1, limit=14
    $region2: #{tpu_custom_call.1} parent=1 // loop_pre_header
      _
    $region3: #{tpu_custom_call.1} parent=1 // loop_header
      %s36 = sphi 0, %s40
      %p37 = scmp.ge.s32.totalorder %s36, 14
      %s43 = sphi 0, %s55
      %s44 = sphi 0, %s51
      %s45 = sphi 0, %s43
      %s46 = sphi 0, %s44
      %s47 = sphi 0, %s45
      %s48 = sphi 0, %s46
      %s60 = sphi 0, %s62
      %s63 = sphi 0, %s60
      %s64 = sphi 0, %s63
      %s80 = sphi 0, %s64
      %s88 = sphi 0, %s90
      %s91 = sphi 0, %s88
      %s92 = sphi 0, %s91
      %s108 = sphi 0, %s92
      %s116 = sphi 0, %s118
      %s119 = sphi 0, %s116
      %s120 = sphi 0, %s119
      %s136 = sphi 0, %s120
      %s142 = sphi 0, %s144
      %s145 = sphi 0, %s142
      %s146 = sphi 0, %s145
      %s162 = sphi 0, %s146
      %s168 = sphi 0, %s170
      %s171 = sphi 0, %s168
      %s172 = sphi 0, %s171
      %s188 = sphi 0, %s172
      %s194 = sphi 0, %s196
      %s197 = sphi 0, %s194
      %s198 = sphi 0, %s197
      %s214 = sphi 0, %s198
      %s218 = sphi 0, %s218
      %s220 = sphi 0, %s218
      %s221 = sphi 0, %s220
      %s235 = sphi 0, %s221
      %s239 = sphi 0, %s239
      %s241 = sphi 0, %s239
      %s242 = sphi 0, %s241
      %s256 = sphi 0, %s242
      %s260 = sphi 0, %s260
      %s262 = sphi 0, %s260
      %s263 = sphi 0, %s262
      %s277 = sphi 0, %s263
      %s281 = sphi 0, %s281
      %s283 = sphi 0, %s281
      %s284 = sphi 0, %s283
      %s298 = sphi 0, %s284
      %s302 = sphi 0, %s302
      %s304 = sphi 0, %s302
      %s305 = sphi 0, %s304
      %s319 = sphi 0, %s305
      %s323 = sphi 0, %s323
      %s325 = sphi 0, %s323
      %s326 = sphi 0, %s325
      %s340 = sphi 0, %s326
      %s344 = sphi 0, %s344
      %s346 = sphi 0, %s344
      %s347 = sphi 0, %s346
      %s361 = sphi 0, %s347
      %s365 = sphi 0, %s365
      %s367 = sphi 0, %s365
      %s368 = sphi 0, %s367
      %s382 = sphi 0, %s368
      %s390 = sphi 0, %s392
      %s393 = sphi 0, %s390
      %s394 = sphi 0, %s393
      %s410 = sphi 0, %s394
    $region4: #{tpu_custom_call.1} parent=1 // loop_header_branch
      %39 = sbr.rel (%p37) target = $region8
    $region5: #{tpu_custom_call.1} parent=1 // loop_body
      %s41 = ssub.s32 %s36, 1
      %s42 = ssub.s32 %s36, 2
      %s49 = sadd.s32 1, %s44
      %p50 = scmp.ge.s32.totalorder %s49, 3
      %s51 = scalar_select %p50, 0, %s49
      %s52 = sadd.s32 1, %s43
      %s53 = scalar_select %p50, %s52, %s43
      %p54 = scmp.ge.s32.totalorder %s53, 4
      %s55 = scalar_select %p54, 0, %s53
      %s56 = ssub.s32 %s43, %s55
      %s57 = ssub.s32 %s44, %s51
      %s58 = sor.u32 %s56, %s57
      %p59 = scmp.eq.s32.totalorder %s58, 0
      %s61 = sadd.s32 %s60, 1
      %s62 = scalar_select %p59, %s60, %s61
      %p65 = pneg %p59
      %p66 = scmp.eq.s32.totalorder %s36, 11
      %p67 = por %p65, %p66
      %p68 = scmp.ne.s32.totalorder %s60, %s63
      %p69 = scmp.eq.s32.totalorder %s36, 0
      %p70 = por %p68, %p69
      %p71 = scmp.ne.s32.totalorder %s60, %s63
      %p72 = scmp.eq.s32.totalorder %s41, 11
      %p73 = por %p71, %p72
      %p74 = scmp.ne.s32.totalorder %s63, %s64
      %p75 = scmp.eq.s32.totalorder %s41, 0
      %p76 = por %p74, %p75
      %p77 = scmp.ne.s32.totalorder %s63, %s64
      %p78 = scmp.eq.s32.totalorder %s42, 11
      %p79 = por %p77, %p78
      %p81 = scmp.ne.s32.totalorder %s64, %s80
      %p82 = scmp.eq.s32.totalorder %s42, 0
      %p83 = por %p81, %p82
      %s84 = ssub.s32 %s43, %s55
      %s85 = ssub.s32 %s44, %s51
      %s86 = sor.u32 %s84, %s85
      %p87 = scmp.eq.s32.totalorder %s86, 0
      %s89 = sadd.s32 %s88, 1
      %s90 = scalar_select %p87, %s88, %s89
      %p93 = pneg %p87
      %p94 = scmp.eq.s32.totalorder %s36, 11
      %p95 = por %p93, %p94
      %p96 = scmp.ne.s32.totalorder %s88, %s91
      %p97 = scmp.eq.s32.totalorder %s36, 0
      %p98 = por %p96, %p97
      %p99 = scmp.ne.s32.totalorder %s88, %s91
      %p100 = scmp.eq.s32.totalorder %s41, 11
      %p101 = por %p99, %p100
      %p102 = scmp.ne.s32.totalorder %s91, %s92
      %p103 = scmp.eq.s32.totalorder %s41, 0
      %p104 = por %p102, %p103
      %p105 = scmp.ne.s32.totalorder %s91, %s92
      %p106 = scmp.eq.s32.totalorder %s42, 11
      %p107 = por %p105, %p106
      %p109 = scmp.ne.s32.totalorder %s92, %s108
      %p110 = scmp.eq.s32.totalorder %s42, 0
      %p111 = por %p109, %p110
      %s112 = ssub.s32 %s43, %s55
      %s113 = ssub.s32 %s44, %s51
      %s114 = sor.u32 %s112, %s113
      %p115 = scmp.eq.s32.totalorder %s114, 0
      %s117 = sadd.s32 %s116, 1
      %s118 = scalar_select %p115, %s116, %s117
      %p121 = pneg %p115
      %p122 = scmp.eq.s32.totalorder %s36, 11
      %p123 = por %p121, %p122
      %p124 = scmp.ne.s32.totalorder %s116, %s119
      %p125 = scmp.eq.s32.totalorder %s36, 0
      %p126 = por %p124, %p125
      %p127 = scmp.ne.s32.totalorder %s116, %s119
      %p128 = scmp.eq.s32.totalorder %s41, 11
      %p129 = por %p127, %p128
      %p130 = scmp.ne.s32.totalorder %s119, %s120
      %p131 = scmp.eq.s32.totalorder %s41, 0
      %p132 = por %p130, %p131
      %p133 = scmp.ne.s32.totalorder %s119, %s120
      %p134 = scmp.eq.s32.totalorder %s42, 11
      %p135 = por %p133, %p134
      %p137 = scmp.ne.s32.totalorder %s120, %s136
      %p138 = scmp.eq.s32.totalorder %s42, 0
      %p139 = por %p137, %p138
      %s140 = ssub.s32 %s43, %s55
      %p141 = scmp.eq.s32.totalorder %s140, 0
      %s143 = sadd.s32 %s142, 1
      %s144 = scalar_select %p141, %s142, %s143
      %p147 = pneg %p141
      %p148 = scmp.eq.s32.totalorder %s36, 11
      %p149 = por %p147, %p148
      %p150 = scmp.ne.s32.totalorder %s142, %s145
      %p151 = scmp.eq.s32.totalorder %s36, 0
      %p152 = por %p150, %p151
      %p153 = scmp.ne.s32.totalorder %s142, %s145
      %p154 = scmp.eq.s32.totalorder %s41, 11
      %p155 = por %p153, %p154
      %p156 = scmp.ne.s32.totalorder %s145, %s146
      %p157 = scmp.eq.s32.totalorder %s41, 0
      %p158 = por %p156, %p157
      %p159 = scmp.ne.s32.totalorder %s145, %s146
      %p160 = scmp.eq.s32.totalorder %s42, 11
      %p161 = por %p159, %p160
      %p163 = scmp.ne.s32.totalorder %s146, %s162
      %p164 = scmp.eq.s32.totalorder %s42, 0
      %p165 = por %p163, %p164
      %s166 = ssub.s32 %s43, %s55
      %p167 = scmp.eq.s32.totalorder %s166, 0
      %s169 = sadd.s32 %s168, 1
      %s170 = scalar_select %p167, %s168, %s169
      %p173 = pneg %p167
      %p174 = scmp.eq.s32.totalorder %s36, 11
      %p175 = por %p173, %p174
      %p176 = scmp.ne.s32.totalorder %s168, %s171
      %p177 = scmp.eq.s32.totalorder %s36, 0
      %p178 = por %p176, %p177
      %p179 = scmp.ne.s32.totalorder %s168, %s171
      %p180 = scmp.eq.s32.totalorder %s41, 11
      %p181 = por %p179, %p180
      %p182 = scmp.ne.s32.totalorder %s171, %s172
      %p183 = scmp.eq.s32.totalorder %s41, 0
      %p184 = por %p182, %p183
      %p185 = scmp.ne.s32.totalorder %s171, %s172
      %p186 = scmp.eq.s32.totalorder %s42, 11
      %p187 = por %p185, %p186
      %p189 = scmp.ne.s32.totalorder %s172, %s188
      %p190 = scmp.eq.s32.totalorder %s42, 0
      %p191 = por %p189, %p190
      %s192 = ssub.s32 %s43, %s55
      %p193 = scmp.eq.s32.totalorder %s192, 0
      %s195 = sadd.s32 %s194, 1
      %s196 = scalar_select %p193, %s194, %s195
      %p199 = pneg %p193
      %p200 = scmp.eq.s32.totalorder %s36, 11
      %p201 = por %p199, %p200
      %p202 = scmp.ne.s32.totalorder %s194, %s197
      %p203 = scmp.eq.s32.totalorder %s36, 0
      %p204 = por %p202, %p203
      %p205 = scmp.ne.s32.totalorder %s194, %s197
      %p206 = scmp.eq.s32.totalorder %s41, 11
      %p207 = por %p205, %p206
      %p208 = scmp.ne.s32.totalorder %s197, %s198
      %p209 = scmp.eq.s32.totalorder %s41, 0
      %p210 = por %p208, %p209
      %p211 = scmp.ne.s32.totalorder %s197, %s198
      %p212 = scmp.eq.s32.totalorder %s42, 11
      %p213 = por %p211, %p212
      %p215 = scmp.ne.s32.totalorder %s198, %s214
      %p216 = scmp.eq.s32.totalorder %s42, 0
      %p217 = por %p215, %p216
      %s219 = sadd.s32 %s218, 1
      %p222 = scmp.eq.s32.totalorder %s36, 11
      %p223 = scmp.ne.s32.totalorder %s218, %s220
      %p224 = scmp.eq.s32.totalorder %s36, 0
      %p225 = por %p223, %p224
      %p226 = scmp.ne.s32.totalorder %s218, %s220
      %p227 = scmp.eq.s32.totalorder %s41, 11
      %p228 = por %p226, %p227
      %p229 = scmp.ne.s32.totalorder %s220, %s221
      %p230 = scmp.eq.s32.totalorder %s41, 0
      %p231 = por %p229, %p230
      %p232 = scmp.ne.s32.totalorder %s220, %s221
      %p233 = scmp.eq.s32.totalorder %s42, 11
      %p234 = por %p232, %p233
      %p236 = scmp.ne.s32.totalorder %s221, %s235
      %p237 = scmp.eq.s32.totalorder %s42, 0
      %p238 = por %p236, %p237
      %s240 = sadd.s32 %s239, 1
      %p243 = scmp.eq.s32.totalorder %s36, 11
      %p244 = scmp.ne.s32.totalorder %s239, %s241
      %p245 = scmp.eq.s32.totalorder %s36, 0
      %p246 = por %p244, %p245
      %p247 = scmp.ne.s32.totalorder %s239, %s241
      %p248 = scmp.eq.s32.totalorder %s41, 11
      %p249 = por %p247, %p248
      %p250 = scmp.ne.s32.totalorder %s241, %s242
      %p251 = scmp.eq.s32.totalorder %s41, 0
      %p252 = por %p250, %p251
      %p253 = scmp.ne.s32.totalorder %s241, %s242
      %p254 = scmp.eq.s32.totalorder %s42, 11
      %p255 = por %p253, %p254
      %p257 = scmp.ne.s32.totalorder %s242, %s256
      %p258 = scmp.eq.s32.totalorder %s42, 0
      %p259 = por %p257, %p258
      %s261 = sadd.s32 %s260, 1
      %p264 = scmp.eq.s32.totalorder %s36, 11
      %p265 = scmp.ne.s32.totalorder %s260, %s262
      %p266 = scmp.eq.s32.totalorder %s36, 0
      %p267 = por %p265, %p266
      %p268 = scmp.ne.s32.totalorder %s260, %s262
      %p269 = scmp.eq.s32.totalorder %s41, 11
      %p270 = por %p268, %p269
      %p271 = scmp.ne.s32.totalorder %s262, %s263
      %p272 = scmp.eq.s32.totalorder %s41, 0
      %p273 = por %p271, %p272
      %p274 = scmp.ne.s32.totalorder %s262, %s263
      %p275 = scmp.eq.s32.totalorder %s42, 11
      %p276 = por %p274, %p275
      %p278 = scmp.ne.s32.totalorder %s263, %s277
      %p279 = scmp.eq.s32.totalorder %s42, 0
      %p280 = por %p278, %p279
      %s282 = sadd.s32 %s281, 1
      %p285 = scmp.eq.s32.totalorder %s36, 11
      %p286 = scmp.ne.s32.totalorder %s281, %s283
      %p287 = scmp.eq.s32.totalorder %s36, 0
      %p288 = por %p286, %p287
      %p289 = scmp.ne.s32.totalorder %s281, %s283
      %p290 = scmp.eq.s32.totalorder %s41, 11
      %p291 = por %p289, %p290
      %p292 = scmp.ne.s32.totalorder %s283, %s284
      %p293 = scmp.eq.s32.totalorder %s41, 0
      %p294 = por %p292, %p293
      %p295 = scmp.ne.s32.totalorder %s283, %s284
      %p296 = scmp.eq.s32.totalorder %s42, 11
      %p297 = por %p295, %p296
      %p299 = scmp.ne.s32.totalorder %s284, %s298
      %p300 = scmp.eq.s32.totalorder %s42, 0
      %p301 = por %p299, %p300
      %s303 = sadd.s32 %s302, 1
      %p306 = scmp.eq.s32.totalorder %s36, 11
      %p307 = scmp.ne.s32.totalorder %s302, %s304
      %p308 = scmp.eq.s32.totalorder %s36, 0
      %p309 = por %p307, %p308
      %p310 = scmp.ne.s32.totalorder %s302, %s304
      %p311 = scmp.eq.s32.totalorder %s41, 11
      %p312 = por %p310, %p311
      %p313 = scmp.ne.s32.totalorder %s304, %s305
      %p314 = scmp.eq.s32.totalorder %s41, 0
      %p315 = por %p313, %p314
      %p316 = scmp.ne.s32.totalorder %s304, %s305
      %p317 = scmp.eq.s32.totalorder %s42, 11
      %p318 = por %p316, %p317
      %p320 = scmp.ne.s32.totalorder %s305, %s319
      %p321 = scmp.eq.s32.totalorder %s42, 0
      %p322 = por %p320, %p321
      %s324 = sadd.s32 %s323, 1
      %p327 = scmp.eq.s32.totalorder %s36, 11
      %p328 = scmp.ne.s32.totalorder %s323, %s325
      %p329 = scmp.eq.s32.totalorder %s36, 0
      %p330 = por %p328, %p329
      %p331 = scmp.ne.s32.totalorder %s323, %s325
      %p332 = scmp.eq.s32.totalorder %s41, 11
      %p333 = por %p331, %p332
      %p334 = scmp.ne.s32.totalorder %s325, %s326
      %p335 = scmp.eq.s32.totalorder %s41, 0
      %p336 = por %p334, %p335
      %p337 = scmp.ne.s32.totalorder %s325, %s326
      %p338 = scmp.eq.s32.totalorder %s42, 11
      %p339 = por %p337, %p338
      %p341 = scmp.ne.s32.totalorder %s326, %s340
      %p342 = scmp.eq.s32.totalorder %s42, 0
      %p343 = por %p341, %p342
      %s345 = sadd.s32 %s344, 1
      %p348 = scmp.eq.s32.totalorder %s36, 11
      %p349 = scmp.ne.s32.totalorder %s344, %s346
      %p350 = scmp.eq.s32.totalorder %s36, 0
      %p351 = por %p349, %p350
      %p352 = scmp.ne.s32.totalorder %s344, %s346
      %p353 = scmp.eq.s32.totalorder %s41, 11
      %p354 = por %p352, %p353
      %p355 = scmp.ne.s32.totalorder %s346, %s347
      %p356 = scmp.eq.s32.totalorder %s41, 0
      %p357 = por %p355, %p356
      %p358 = scmp.ne.s32.totalorder %s346, %s347
      %p359 = scmp.eq.s32.totalorder %s42, 11
      %p360 = por %p358, %p359
      %p362 = scmp.ne.s32.totalorder %s347, %s361
      %p363 = scmp.eq.s32.totalorder %s42, 0
      %p364 = por %p362, %p363
      %s366 = sadd.s32 %s365, 1
      %p369 = scmp.eq.s32.totalorder %s36, 11
      %p370 = scmp.ne.s32.totalorder %s365, %s367
      %p371 = scmp.eq.s32.totalorder %s36, 0
      %p372 = por %p370, %p371
      %p373 = scmp.ne.s32.totalorder %s365, %s367
      %p374 = scmp.eq.s32.totalorder %s41, 11
      %p375 = por %p373, %p374
      %p376 = scmp.ne.s32.totalorder %s367, %s368
      %p377 = scmp.eq.s32.totalorder %s41, 0
      %p378 = por %p376, %p377
      %p379 = scmp.ne.s32.totalorder %s367, %s368
      %p380 = scmp.eq.s32.totalorder %s42, 11
      %p381 = por %p379, %p380
      %p383 = scmp.ne.s32.totalorder %s368, %s382
      %p384 = scmp.eq.s32.totalorder %s42, 0
      %p385 = por %p383, %p384
      %s386 = ssub.s32 %s43, %s55
      %s387 = ssub.s32 %s44, %s51
      %s388 = sor.u32 %s386, %s387
      %p389 = scmp.eq.s32.totalorder %s388, 0
      %s391 = sadd.s32 %s390, 1
      %s392 = scalar_select %p389, %s390, %s391
      %p395 = pneg %p389
      %p396 = scmp.eq.s32.totalorder %s36, 11
      %p397 = por %p395, %p396
      %p398 = scmp.ne.s32.totalorder %s390, %s393
      %p399 = scmp.eq.s32.totalorder %s36, 0
      %p400 = por %p398, %p399
      %p401 = scmp.ne.s32.totalorder %s390, %s393
      %p402 = scmp.eq.s32.totalorder %s41, 11
      %p403 = por %p401, %p402
      %p404 = scmp.ne.s32.totalorder %s393, %s394
      %p405 = scmp.eq.s32.totalorder %s41, 0
      %p406 = por %p404, %p405
      %p407 = scmp.ne.s32.totalorder %s393, %s394
      %p408 = scmp.eq.s32.totalorder %s42, 11
      %p409 = por %p407, %p408
      %p411 = scmp.ne.s32.totalorder %s394, %s410
      %p412 = scmp.eq.s32.totalorder %s42, 0
      %p413 = por %p411, %p412
      %p414 = scmp.le.s32.totalorder 1, %s36
      %p415 = scmp.lt.s32.totalorder %s36, 13
      %p416 = pnand %p414, %p415
      %p417 = pneg %p416
      // Predicated region
      $region9: #{tpu_custom_call.1} parent=5 // pred_check
        _
      $region10: #{tpu_custom_call.1} parent=5 // pred_check_branch
        %419 = sbr.rel (%p416) target = $region12
      $region11: #{tpu_custom_call.1} parent=5 // pred_region
        %s420 = ssub.s32 %s36, 1
        // Predicated region
        $region13: #{tpu_custom_call.1} parent=11 // pred_check
          %p421 = pneg %p231
        $region14: #{tpu_custom_call.1} parent=11 // pred_check_branch
          %423 = sbr.rel (%p421) target = $region16
        $region15: #{tpu_custom_call.1} parent=11 // pred_region
          _
        $region16: #{tpu_custom_call.1} parent=11 // pred_fallthru
          _
        // Predicated region
        $region17: #{tpu_custom_call.1} parent=11 // pred_check
          %p424 = pneg %p252
        $region18: #{tpu_custom_call.1} parent=11 // pred_check_branch
          %426 = sbr.rel (%p424) target = $region20
        $region19: #{tpu_custom_call.1} parent=11 // pred_region
          %s428 = ssub.s32 3072, 3072
          %429 = vsyncadd [#allocation11], %s428
          %s430 = sshll.u32 [#allocation10], 4
          %s431 = int_to_ptr.vmem [resolvable:$true] %s430
          %436 = dma.hbm_to_vmem [thread:$0]  %s8, 3072, %s431, [#allocation11], 64, 64, 4
        $region20: #{tpu_custom_call.1} parent=11 // pred_fallthru
          _
        // Predicated region
        $region21: #{tpu_custom_call.1} parent=11 // pred_check
          %p437 = pneg %p273
        $region22: #{tpu_custom_call.1} parent=11 // pred_check_branch
          %439 = sbr.rel (%p437) target = $region24
        $region23: #{tpu_custom_call.1} parent=11 // pred_region
          _
        $region24: #{tpu_custom_call.1} parent=11 // pred_fallthru
          _
        // Predicated region
        $region25: #{tpu_custom_call.1} parent=11 // pred_check
          %p440 = pneg %p294
        $region26: #{tpu_custom_call.1} parent=11 // pred_check_branch
          %442 = sbr.rel (%p440) target = $region28
        $region27: #{tpu_custom_call.1} parent=11 // pred_region
          _
        $region28: #{tpu_custom_call.1} parent=11 // pred_fallthru
          _
        // Predicated region
        $region29: #{tpu_custom_call.1} parent=11 // pred_check
          %p443 = pneg %p315
        $region30: #{tpu_custom_call.1} parent=11 // pred_check_branch
          %445 = sbr.rel (%p443) target = $region32
        $region31: #{tpu_custom_call.1} parent=11 // pred_region
          %s447 = ssub.s32 3072, 3072
          %448 = vsyncadd [#allocation11], %s447
          %s449 = sshll.u32 [#allocation12], 4
          %s450 = int_to_ptr.vmem [resolvable:$true] %s449
          %455 = dma.hbm_to_vmem [thread:$0]  %s11, 3072, %s450, [#allocation11], 64, 64, 4
        $region32: #{tpu_custom_call.1} parent=11 // pred_fallthru
          _
        // Predicated region
        $region33: #{tpu_custom_call.1} parent=11 // pred_check
          %p456 = pneg %p336
        $region34: #{tpu_custom_call.1} parent=11 // pred_check_branch
          %458 = sbr.rel (%p456) target = $region36
        $region35: #{tpu_custom_call.1} parent=11 // pred_region
          _
        $region36: #{tpu_custom_call.1} parent=11 // pred_fallthru
          _
        // Predicated region
        $region37: #{tpu_custom_call.1} parent=11 // pred_check
          %p459 = pneg %p357
        $region38: #{tpu_custom_call.1} parent=11 // pred_check_branch
          %461 = sbr.rel (%p459) target = $region40
        $region39: #{tpu_custom_call.1} parent=11 // pred_region
          %s463 = ssub.s32 1024, 1024
          %464 = vsyncadd [#allocation14], %s463
          %s465 = sshll.u32 [#allocation13], 4
          %s466 = int_to_ptr.vmem [resolvable:$true] %s465
          %471 = dma.hbm_to_vmem [thread:$0]  %s13, 1024, %s466, [#allocation14], 64, 64, 4
        $region40: #{tpu_custom_call.1} parent=11 // pred_fallthru
          _
        // Predicated region
        $region41: #{tpu_custom_call.1} parent=11 // pred_check
          %p472 = pneg %p378
        $region42: #{tpu_custom_call.1} parent=11 // pred_check_branch
          %474 = sbr.rel (%p472) target = $region44
        $region43: #{tpu_custom_call.1} parent=11 // pred_region
          _
        $region44: #{tpu_custom_call.1} parent=11 // pred_fallthru
          _
      $region12: #{tpu_custom_call.1} parent=5 // pred_fallthru
        _
      %p475 = scmp.lt.s32.totalorder %s36, 12
      // Predicated region
      $region45: #{tpu_custom_call.1} parent=5 // pred_check
        %p476 = pneg %p475
      $region46: #{tpu_custom_call.1} parent=5 // pred_check_branch
        %478 = sbr.rel (%p476) target = $region48
      $region47: #{tpu_custom_call.1} parent=5 // pred_region
        // Predicated region
        $region49: #{tpu_custom_call.1} parent=47 // pred_check
          %p479 = pneg %p70
        $region50: #{tpu_custom_call.1} parent=47 // pred_check_branch
          %481 = sbr.rel (%p479) target = $region52
        $region51: #{tpu_custom_call.1} parent=47 // pred_region
          %s482 = sand.u32 %s60, 1
          %s483 = scalar_lea.sflag [#allocation5], %s482
          %s484 = sand.u32 %s60, 1
          %s485 = smul.addr %s484, 8
          %s486 = scalar_lea.vmem [#allocation4], %s485
          %s487 = smul.u32 2, %s44
          %s489 = ssub.s32 128, 128
          %490 = vsyncadd %s483, %s489
          %s491 = smul.addr %s43, 6
          %s492 = sadd.s32 %s487, %s491
          %s493 = smul.addr %s492, 64
          %s494 = scalar_lea.hbm %s1, %s493
          %s495 = sshll.u32 %s486, 4
          %s496 = int_to_ptr.vmem [resolvable:$true] %s495
          %501 = dma.hbm_to_vmem [thread:$0]  %s494, 128, %s496, %s483, 64, 64, 4
        $region52: #{tpu_custom_call.1} parent=47 // pred_fallthru
          _
        // Predicated region
        $region53: #{tpu_custom_call.1} parent=47 // pred_check
          %p502 = pneg %p98
        $region54: #{tpu_custom_call.1} parent=47 // pred_check_branch
          %504 = sbr.rel (%p502) target = $region56
        $region55: #{tpu_custom_call.1} parent=47 // pred_region
          %s505 = sand.u32 %s36, 1
          %s506 = scalar_lea.sflag [#allocation8], %s505
          %s507 = sand.u32 %s88, 1
          %s508 = smul.addr %s507, 4
          %s509 = scalar_lea.vmem [#allocation7], %s508
          %s511 = ssub.s32 64, 64
          %512 = vsyncadd %s506, %s511
          %s513 = smul.addr %s43, 3
          %s514 = sadd.s32 %s44, %s513
          %s515 = smul.addr %s514, 64
          %s516 = scalar_lea.hbm %s2, %s515
          %s518 = sshll.u32 %s509, 4
          %s519 = int_to_ptr.vmem [resolvable:$true] %s518
          %521 = dma.hbm_to_vmem [thread:$0]  %s516, 64, %s519, %s506
        $region56: #{tpu_custom_call.1} parent=47 // pred_fallthru
          _
        // Predicated region
        $region57: #{tpu_custom_call.1} parent=47 // pred_check
          %p522 = pneg %p126
        $region58: #{tpu_custom_call.1} parent=47 // pred_check_branch
          %524 = sbr.rel (%p522) target = $region60
        $region59: #{tpu_custom_call.1} parent=47 // pred_region
          %s525 = sand.u32 %s36, 1
          %s526 = scalar_lea.sflag [#allocation8], %s525
          %s527 = sand.u32 %s116, 1
          %s528 = smul.addr %s527, 4
          %s529 = scalar_lea.vmem [#allocation9], %s528
          %s531 = ssub.s32 64, 64
          %532 = vsyncadd %s526, %s531
          %s533 = smul.addr %s43, 3
          %s534 = sadd.s32 %s44, %s533
          %s535 = smul.addr %s534, 64
          %s536 = scalar_lea.hbm %s3, %s535
          %s538 = sshll.u32 %s529, 4
          %s539 = int_to_ptr.vmem [resolvable:$true] %s538
          %541 = dma.hbm_to_vmem [thread:$0]  %s536, 64, %s539, %s526
        $region60: #{tpu_custom_call.1} parent=47 // pred_fallthru
          _
        // Predicated region
        $region61: #{tpu_custom_call.1} parent=47 // pred_check
          %p542 = pneg %p152
        $region62: #{tpu_custom_call.1} parent=47 // pred_check_branch
          %544 = sbr.rel (%p542) target = $region64
        $region63: #{tpu_custom_call.1} parent=47 // pred_region
          %p545 = scmp.lt.s32.totalorder %s43, 3
          %s546 = scalar_select %p545, %s43, 3
          %s547 = scalar_lea.vmem %s4, %s546
        $region64: #{tpu_custom_call.1} parent=47 // pred_fallthru
          _
        // Predicated region
        $region65: #{tpu_custom_call.1} parent=47 // pred_check
          %p548 = pneg %p178
        $region66: #{tpu_custom_call.1} parent=47 // pred_check_branch
          %550 = sbr.rel (%p548) target = $region68
        $region67: #{tpu_custom_call.1} parent=47 // pred_region
          %p551 = scmp.lt.s32.totalorder %s43, 3
          %s552 = scalar_select %p551, %s43, 3
          %s553 = scalar_lea.vmem %s5, %s552
        $region68: #{tpu_custom_call.1} parent=47 // pred_fallthru
          _
        // Predicated region
        $region69: #{tpu_custom_call.1} parent=47 // pred_check
          %p554 = pneg %p204
        $region70: #{tpu_custom_call.1} parent=47 // pred_check_branch
          %556 = sbr.rel (%p554) target = $region72
        $region71: #{tpu_custom_call.1} parent=47 // pred_region
          %p557 = scmp.lt.s32.totalorder %s43, 3
          %s558 = scalar_select %p557, %s43, 3
          %s559 = scalar_lea.vmem %s6, %s558
        $region72: #{tpu_custom_call.1} parent=47 // pred_fallthru
          _
      $region48: #{tpu_custom_call.1} parent=5 // pred_fallthru
        _
      %p560 = scmp.le.s32.totalorder 1, %s36
      %p561 = scmp.lt.s32.totalorder %s36, 13
      %p562 = pnand %p560, %p561
      %p563 = pneg %p562
      // Predicated region
      $region73: #{tpu_custom_call.1} parent=5 // pred_check
        _
      $region74: #{tpu_custom_call.1} parent=5 // pred_check_branch
        %565 = sbr.rel (%p562) target = $region76
      $region75: #{tpu_custom_call.1} parent=5 // pred_region
        %s566 = ssub.s32 %s36, 1
        %s567 = sand.u32 %s63, 1
        %s568 = scalar_lea.sflag [#allocation5], %s567
        %s569 = sand.u32 %s63, 1
        %s570 = smul.addr %s569, 8
        %s571 = scalar_lea.vmem [#allocation4], %s570
        // Predicated region
        $region77: #{tpu_custom_call.1} parent=75 // pred_check
          %p572 = pneg %p76
        $region78: #{tpu_custom_call.1} parent=75 // pred_check_branch
          %574 = sbr.rel (%p572) target = $region80
        $region79: #{tpu_custom_call.1} parent=75 // pred_region
          %575 = dma.done %s568, 128
        $region80: #{tpu_custom_call.1} parent=75 // pred_fallthru
          _
        %s576 = sand.u32 %s41, 1
        %s577 = scalar_lea.sflag [#allocation8], %s576
        %s578 = sand.u32 %s91, 1
        %s579 = smul.addr %s578, 4
        %s580 = scalar_lea.vmem [#allocation7], %s579
        // Predicated region
        $region81: #{tpu_custom_call.1} parent=75 // pred_check
          %p581 = pneg %p104
        $region82: #{tpu_custom_call.1} parent=75 // pred_check_branch
          %583 = sbr.rel (%p581) target = $region84
        $region83: #{tpu_custom_call.1} parent=75 // pred_region
          %584 = dma.done %s577, 64
        $region84: #{tpu_custom_call.1} parent=75 // pred_fallthru
          _
        %s585 = sand.u32 %s41, 1
        %s586 = scalar_lea.sflag [#allocation8], %s585
        %s587 = sand.u32 %s119, 1
        %s588 = smul.addr %s587, 4
        %s589 = scalar_lea.vmem [#allocation9], %s588
        // Predicated region
        $region85: #{tpu_custom_call.1} parent=75 // pred_check
          %p590 = pneg %p132
        $region86: #{tpu_custom_call.1} parent=75 // pred_check_branch
          %592 = sbr.rel (%p590) target = $region88
        $region87: #{tpu_custom_call.1} parent=75 // pred_region
          %593 = dma.done %s586, 64
        $region88: #{tpu_custom_call.1} parent=75 // pred_fallthru
          _
        // Predicated region
        $region89: #{tpu_custom_call.1} parent=75 // pred_check
          %p594 = pneg %p252
        $region90: #{tpu_custom_call.1} parent=75 // pred_check_branch
          %596 = sbr.rel (%p594) target = $region92
        $region91: #{tpu_custom_call.1} parent=75 // pred_region
          %597 = dma.done [#allocation11], 3072
        $region92: #{tpu_custom_call.1} parent=75 // pred_fallthru
          _
        // Predicated region
        $region93: #{tpu_custom_call.1} parent=75 // pred_check
          %p598 = pneg %p315
        $region94: #{tpu_custom_call.1} parent=75 // pred_check_branch
          %600 = sbr.rel (%p598) target = $region96
        $region95: #{tpu_custom_call.1} parent=75 // pred_region
          %601 = dma.done [#allocation11], 3072
        $region96: #{tpu_custom_call.1} parent=75 // pred_fallthru
          _
        // Predicated region
        $region97: #{tpu_custom_call.1} parent=75 // pred_check
          %p602 = pneg %p357
        $region98: #{tpu_custom_call.1} parent=75 // pred_check_branch
          %604 = sbr.rel (%p602) target = $region100
        $region99: #{tpu_custom_call.1} parent=75 // pred_region
          %605 = dma.done [#allocation14], 1024
        $region100: #{tpu_custom_call.1} parent=75 // pred_fallthru
          _
        %s606 = sand.u32 %s63, 1
        %s607 = scalar_lea.sflag [#allocation5], %s606
        %s608 = sand.u32 %s63, 1
        %s609 = smul.addr %s608, 8
        %s610 = scalar_lea.vmem [#allocation4], %s609
        %p611 = pneg %p76
        %p612 = pneg %p73
        %s613 = sand.u32 %s41, 1
        %s614 = scalar_lea.sflag [#allocation8], %s613
        %s615 = sand.u32 %s91, 1
        %s616 = smul.addr %s615, 4
        %s617 = scalar_lea.vmem [#allocation7], %s616
        %p618 = pneg %p104
        %p619 = pneg %p101
        %s620 = sand.u32 %s41, 1
        %s621 = scalar_lea.sflag [#allocation8], %s620
        %s622 = sand.u32 %s119, 1
        %s623 = smul.addr %s622, 4
        %s624 = scalar_lea.vmem [#allocation9], %s623
        %p625 = pneg %p132
        %p626 = pneg %p129
        %p627 = scmp.lt.s32.totalorder %s45, 3
        %s628 = scalar_select %p627, %s45, 3
        %s629 = scalar_lea.vmem %s4, %s628
        %p630 = pneg %p158
        %p631 = pneg %p155
        %p632 = scmp.lt.s32.totalorder %s45, 3
        %s633 = scalar_select %p632, %s45, 3
        %s634 = scalar_lea.vmem %s5, %s633
        %p635 = pneg %p184
        %p636 = pneg %p181
        %p637 = scmp.lt.s32.totalorder %s45, 3
        %s638 = scalar_select %p637, %s45, 3
        %s639 = scalar_lea.vmem %s6, %s638
        %p640 = pneg %p210
        %p641 = pneg %p207
        %p642 = pneg %p231
        %p643 = pneg %p228
        %p644 = pneg %p252
        %p645 = pneg %p249
        %p646 = pneg %p273
        %p647 = pneg %p270
        %p648 = pneg %p294
        %p649 = pneg %p291
        %p650 = pneg %p315
        %p651 = pneg %p312
        %p652 = pneg %p336
        %p653 = pneg %p333
        %p654 = pneg %p357
        %p655 = pneg %p354
        %p656 = pneg %p378
        %p657 = pneg %p375
        %p658 = pneg %p406
        %p659 = pneg %p403
        %s660 = sand.u32 %s393, 1
        %s661 = scalar_lea.sflag [#allocation6], %s660
        %s662 = sand.u32 %s393, 1
        %s663 = smul.addr %s662, 16
        %s664 = scalar_lea.vmem [#allocation15], %s663
        %s665 = smul.u32 2, %s46
        %p666 = scmp.lt.s32.totalorder %s45, 3
        %s667 = scalar_select %p666, %s45, 3
        %s668 = scalar_lea.vmem %s4, %s667
        %p669 = scmp.lt.s32.totalorder %s45, 3
        %s670 = scalar_select %p669, %s45, 3
        %s671 = scalar_lea.vmem %s5, %s670
        %p672 = scmp.lt.s32.totalorder %s45, 3
        %s673 = scalar_select %p672, %s45, 3
        %s674 = scalar_lea.vmem %s6, %s673
        %s675 = smul.u32 2, %s46
        %v677 = vld [vmem:[%s571] sm:$0xf]
        %v678 = vld [vmem:[%s571 + $0x4] sm:$0xf]
        %v679 = vld [vmem:[%s580] sm:$0xf]
        %v680 = vunpack.c.l.bf16 %v679
        %v681 = vunpack.c.l.bf16 %v677
        %v682 = vunpack.c.l.bf16 %v678
        %v683 = vld [vmem:[%s589] sm:$0xf]
        %v684 = vunpack.c.l.bf16 %v683
        %s685 = smul.u32 %s46, 16
        %v686 = vlaneseq
        %v687 = vshrl.u32 %v686, 7
        %v688 = vadd.s32 %v687, 8
        %v689 = vadd.s32 %v687, 16
        %v690 = vadd.s32 %v687, 24
        %v691 = vstv %s685
        %v692 = vadd.s32 %v691, %v687
        %v693 = vadd.s32 %v691, %v688
        %v694 = vadd.s32 %v691, %v689
        %v695 = vadd.s32 %v691, %v690
        %v696 = vsub.s32 %v692, 8
        %v697 = vsub.s32 %v693, 8
        %v698 = vsub.s32 %v694, 8
        %v699 = vsub.s32 %v695, 8
        %vm700 = vcmp.ge.s32.totalorder %v696, 0
        %vm701 = vcmp.ge.s32.totalorder %v697, 0
        %vm702 = vcmp.ge.s32.totalorder %v698, 0
        %vm703 = vcmp.ge.s32.totalorder %v699, 0
        %s704 = sld [smem:[#allocation3 + %s45]]
        %v705 = vstv %s704
        %vm706 = vcmp.lt.s32.totalorder %v696, %v705
        %vm707 = vcmp.lt.s32.totalorder %v697, %v705
        %vm708 = vcmp.lt.s32.totalorder %v698, %v705
        %vm709 = vcmp.lt.s32.totalorder %v699, %v705
        %vm710 = vmand %vm700, %vm706
        %vm711 = vmand %vm701, %vm707
        %vm712 = vmand %vm702, %vm708
        %vm713 = vmand %vm703, %vm709
        %v714 = vsel %vm710, 1, 0
        %v715 = vsel %vm711, 1, 0
        %v716 = vsel %vm712, 1, 0
        %v717 = vsel %vm713, 1, 0
        %v718 = vcvt.s32.f32 %v714
        %v719 = vcvt.s32.f32 %v715
        %v720 = vcvt.s32.f32 %v716
        %v721 = vcvt.s32.f32 %v717
        %v722 = vld [vmem:[%s7] sm:$0x1]
        %v723 = vmul.f32 %v680, %v680
        %v724 = vmul.f32 %v681, %v681
        %v725 = vmul.f32 %v682, %v682
        %v726 = vmul.f32 %v684, %v684
        %727 = vadd.xlane.f32.xlu0 %v723
        %v728 = vpop.xlane.xlu0 %727
        %729 = vadd.xlane.f32.xlu0 %v724
        %v730 = vpop.xlane.xlu0 %729
        %731 = vadd.xlane.f32.xlu0 %v725
        %v732 = vpop.xlane.xlu0 %731
        %733 = vadd.xlane.f32.xlu0 %v726
        %v734 = vpop.xlane.xlu0 %733
        %v735 = vrsqrt.pop %v728
        %v736 = vmul.f32 %v728, %v735
        %vm737 = vcmp.eq.f32.partialorder %v728, inf
        %v738 = vsel %vm737, %v728, %v736
        %vm739 = vcmp.eq.f32.partialorder %v728, 0.0
        %v740 = vand.u32 %v728, 2147483648
        %v741 = vsel %vm739, %v740, %v738
        %v742 = vrsqrt.pop %v730
        %v743 = vmul.f32 %v730, %v742
        %vm744 = vcmp.eq.f32.partialorder %v730, inf
        %v745 = vsel %vm744, %v730, %v743
        %vm746 = vcmp.eq.f32.partialorder %v730, 0.0
        %v747 = vand.u32 %v730, 2147483648
        %v748 = vsel %vm746, %v747, %v745
        %v749 = vrsqrt.pop %v732
        %v750 = vmul.f32 %v732, %v749
        %vm751 = vcmp.eq.f32.partialorder %v732, inf
        %v752 = vsel %vm751, %v732, %v750
        %vm753 = vcmp.eq.f32.partialorder %v732, 0.0
        %v754 = vand.u32 %v732, 2147483648
        %v755 = vsel %vm753, %v754, %v752
        %v756 = vrsqrt.pop %v734
        %v757 = vmul.f32 %v734, %v756
        %vm758 = vcmp.eq.f32.partialorder %v734, inf
        %v759 = vsel %vm758, %v734, %v757
        %vm760 = vcmp.eq.f32.partialorder %v734, 0.0
        %v761 = vand.u32 %v734, 2147483648
        %v762 = vsel %vm760, %v761, %v759
        %v763 = vmax.f32 %v741, 1e-12
        %v764 = vmax.f32 %v748, 1e-12
        %v765 = vmax.f32 %v755, 1e-12
        %v766 = vmax.f32 %v762, 1e-12
        %v767 = vrcp.pop %v763
        %v768 = vmul.f32 %v680, %v767
        %v769 = vrcp.pop %v764
        %v770 = vmul.f32 %v681, %v769
        %v771 = vrcp.pop %v765
        %v772 = vmul.f32 %v682, %v771
        %v773 = vrcp.pop %v766
        %v774 = vmul.f32 %v684, %v773
        %v775 = vmul.f32 %v768, 5.656854
        %v776 = vmul.f32 %v770, 5.656854
        %v777 = vmul.f32 %v772, 5.656854
        %v778 = vmul.f32 %v774, 5.656854
        %v780 = vlaneseq
        %v781 = vshrl.u32 %v780, 7
        %v782 = vsub.s32 0, %v781
        %v783 = vrot.slane %v722, %v782
        %v785 = vmul.f32 %v775, %v783
        %v786 = vmul.f32 %v776, %v783
        %v787 = vmul.f32 %v777, %v783
        %v788 = vmul.f32 %v778, %v783
        %v789 = vxor.u32 %v785, 2147483648
        %v790 = vxor.u32 %v786, 2147483648
        %v791 = vxor.u32 %v787, 2147483648
        %v792 = vxor.u32 %v788, 2147483648
        %v793 = vmul.f32 %v789, 1.442695
        %v794 = vpow.pop %v793
        %v795 = vmul.f32 %v790, 1.442695
        %v796 = vpow.pop %v795
        %v797 = vmul.f32 %v791, 1.442695
        %v798 = vpow.pop %v797
        %v799 = vmul.f32 %v792, 1.442695
        %v800 = vpow.pop %v799
        %v801 = vadd.f32 %v794, 1.0
        %v802 = vadd.f32 %v796, 1.0
        %v803 = vadd.f32 %v798, 1.0
        %v804 = vadd.f32 %v800, 1.0
        %v805 = vrcp.pop %v801
        %v806 = vmul.f32 1.0, %v805
        %v807 = vrcp.pop %v802
        %v808 = vmul.f32 1.0, %v807
        %v809 = vrcp.pop %v803
        %v810 = vmul.f32 1.0, %v809
        %v811 = vrcp.pop %v804
        %v812 = vmul.f32 1.0, %v811
        %v813 = vmul.f32 %v785, %v806
        %v814 = vmul.f32 %v786, %v808
        %v815 = vmul.f32 %v787, %v810
        %v816 = vmul.f32 %v788, %v812
        %v817 = vmul.f32 %v813, %v718
        %v818 = vmul.f32 %v814, %v719
        %v819 = vmul.f32 %v815, %v720
        %v820 = vmul.f32 %v816, %v721
        %v821 = vrot.slane %v817, 7
        %v822 = vrot.slane %v818, 7
        %v823 = vrot.slane %v819, 7
        %v824 = vrot.slane %v820, 7
        %vm825 = vcmp.lt.s32.totalorder %v687, 1
        %v826 = vsel %vm825, %v823, %v824
        %v827 = vsel %vm825, %v822, %v823
        %v828 = vsel %vm825, %v821, %v822
        %v829 = vsel %vm825, %v824, %v821
        %v830 = vrot.slane %v817, 1
        %v831 = vrot.slane %v818, 1
        %v832 = vrot.slane %v819, 1
        %v833 = vrot.slane %v820, 1
        %vm834 = vcmp.lt.s32.totalorder %v687, 7
        %v835 = vsel %vm834, %v832, %v833
        %v836 = vsel %vm834, %v831, %v832
        %v837 = vsel %vm834, %v830, %v831
        %v838 = vsel %vm834, %v833, %v830
        %v839 = vpack.c.bf16 %v828, %v829
        %v840 = vpack.c.bf16 %v826, %v827
        %v841 = vld [vmem:[#allocation10] sm:$0xf]
        %v842 = vld [vmem:[#allocation10 + $0x4] sm:$0xf]
        %v843 = vld [vmem:[#allocation10 + $0x8] sm:$0xf]
        %v844 = vld [vmem:[#allocation10 + $0xc] sm:$0xf]
        %v845 = vld [vmem:[#allocation10 + $0x10] sm:$0xf]
        %v846 = vld [vmem:[#allocation10 + $0x14] sm:$0xf]
        %v847 = vld [vmem:[#allocation10 + $0x18] sm:$0xf]
        %v848 = vld [vmem:[#allocation10 + $0x1c] sm:$0xf]
        %v849 = vld [vmem:[#allocation10 + $0x20] sm:$0xf]
        %v850 = vld [vmem:[#allocation10 + $0x24] sm:$0xf]
        %v851 = vld [vmem:[#allocation10 + $0x28] sm:$0xf]
        %v852 = vld [vmem:[#allocation10 + $0x2c] sm:$0xf]
        %v853 = vld [vmem:[#allocation10 + $0x30] sm:$0xf]
        %v854 = vld [vmem:[#allocation10 + $0x34] sm:$0xf]
        %v855 = vld [vmem:[#allocation10 + $0x38] sm:$0xf]
        %v856 = vld [vmem:[#allocation10 + $0x3c] sm:$0xf]
        %v857 = vpack.c.bf16 %v818, %v817
        %v858 = vpack.c.bf16 %v820, %v819
        %s859 = scalar_lea.vmem [#allocation10], 64
        %v860 = vld [vmem:[%s859] sm:$0xf]
        %v861 = vld [vmem:[%s859 + $0x4] sm:$0xf]
        %v862 = vld [vmem:[%s859 + $0x8] sm:$0xf]
        %v863 = vld [vmem:[%s859 + $0xc] sm:$0xf]
        %v864 = vld [vmem:[%s859 + $0x10] sm:$0xf]
        %v865 = vld [vmem:[%s859 + $0x14] sm:$0xf]
        %v866 = vld [vmem:[%s859 + $0x18] sm:$0xf]
        %v867 = vld [vmem:[%s859 + $0x1c] sm:$0xf]
        %v868 = vld [vmem:[%s859 + $0x20] sm:$0xf]
        %v869 = vld [vmem:[%s859 + $0x24] sm:$0xf]
        %v870 = vld [vmem:[%s859 + $0x28] sm:$0xf]
        %v871 = vld [vmem:[%s859 + $0x2c] sm:$0xf]
        %v872 = vld [vmem:[%s859 + $0x30] sm:$0xf]
        %v873 = vld [vmem:[%s859 + $0x34] sm:$0xf]
        %v874 = vld [vmem:[%s859 + $0x38] sm:$0xf]
        %v875 = vld [vmem:[%s859 + $0x3c] sm:$0xf]
        %v892 = vunpack.c.l.b16 %v860
        %v893 = vunpack.c.l.b16 %v861
        %v894 = vunpack.c.l.b16 %v862
        %v895 = vunpack.c.l.b16 %v863
        %v896 = vunpack.c.l.b16 %v864
        %v897 = vunpack.c.l.b16 %v865
        %v898 = vunpack.c.l.b16 %v866
        %v899 = vunpack.c.l.b16 %v867
        %v900 = vunpack.c.l.b16 %v868
        %v901 = vunpack.c.l.b16 %v869
        %v902 = vunpack.c.l.b16 %v870
        %v903 = vunpack.c.l.b16 %v871
        %v904 = vunpack.c.l.b16 %v872
        %v905 = vunpack.c.l.b16 %v873
        %v906 = vunpack.c.l.b16 %v874
        %v907 = vunpack.c.l.b16 %v875
        %v908 = vpack.c.b16 %v893, %v892
        %v909 = vpack.c.b16 %v895, %v894
        %v910 = vpack.c.b16 %v897, %v896
        %v911 = vpack.c.b16 %v899, %v898
        %v912 = vpack.c.b16 %v901, %v900
        %v913 = vpack.c.b16 %v903, %v902
        %v914 = vpack.c.b16 %v905, %v904
        %v915 = vpack.c.b16 %v907, %v906
        %924 = vmatprep.subr.bf16.mxu0 0
        %925 = vmatpush1.bf16.msra.mxu0 %v908
        %926 = vmatprep.subr.bf16.mxu0 0
        %927 = vmatpush1.bf16.msra.mxu0 %v909
        %928 = vmatprep.subr.bf16.mxu0 0
        %929 = vmatpush1.bf16.msra.mxu0 %v910
        %930 = vmatprep.subr.bf16.mxu0 0
        %931 = vmatpush1.bf16.msra.mxu0 %v911
        %932 = vmatprep.subr.bf16.mxu0 0
        %933 = vmatpush1.bf16.msra.mxu0 %v912
        %934 = vmatprep.subr.bf16.mxu0 0
        %935 = vmatpush1.bf16.msra.mxu0 %v913
        %936 = vmatprep.subr.bf16.mxu0 0
        %937 = vmatpush1.bf16.msra.mxu0 %v914
        %938 = vmatprep.subr.bf16.mxu0 0
        %939 = vmatpush1.bf16.msra.mxu0 %v915
        %940 = vmatprep.subr.bf16.mxu0 0
        %941 = vmatpush1.bf16.msra.mxu0 0
        %942 = vmatprep.subr.bf16.mxu0 0
        %943 = vmatpush1.bf16.msra.mxu0 0
        %944 = vmatprep.subr.bf16.mxu0 0
        %945 = vmatpush1.bf16.msra.mxu0 0
        %946 = vmatprep.subr.bf16.mxu0 0
        %947 = vmatpush1.bf16.msra.mxu0 0
        %948 = vmatprep.subr.bf16.mxu0 0
        %949 = vmatpush1.bf16.msra.mxu0 0
        %950 = vmatprep.subr.bf16.mxu0 0
        %951 = vmatpush1.bf16.msra.mxu0 0
        %952 = vmatprep.subr.bf16.mxu0 0
        %953 = vmatpush1.bf16.msra.mxu0 0
        %954 = vmatprep.subr.bf16.mxu0 0
        %955 = vmatpush1.bf16.msra.mxu0 0
        %956 = vmatprep.mubr.bf16.mxu0 0
        %957 = vmatmul.mubr.bf16.gmra.mrb[0].mxu0 %v857
        %v958 = vpop.f32.mrb[0].mxu0
        %v959 = vadd.f32 0.0, %v958
        %v960 = vpop.f32.mrb[0].mxu0
        %v961 = vpop.f32.mrb[0].mxu0
        %v962 = vadd.f32 0.0, %v961
        %v963 = vpop.f32.mrb[0].mxu0
        %964 = vmatprep.mubr.bf16.mxu0 0
        %965 = vmatmul.mubr.bf16.gmra.mrb[0].mxu0 %v858
        %v966 = vpop.f32.mrb[0].mxu0
        %v967 = vadd.f32 0.0, %v966
        %v968 = vpop.f32.mrb[0].mxu0
        %v969 = vpop.f32.mrb[0].mxu0
        %v970 = vadd.f32 0.0, %v969
        %v971 = vpop.f32.mrb[0].mxu0
        %972 = vdwg.mxu0
        %v989 = vunpack.c.l.b16 %v841
        %v990 = vunpack.c.l.b16 %v842
        %v991 = vunpack.c.l.b16 %v843
        %v992 = vunpack.c.l.b16 %v844
        %v993 = vunpack.c.l.b16 %v845
        %v994 = vunpack.c.l.b16 %v846
        %v995 = vunpack.c.l.b16 %v847
        %v996 = vunpack.c.l.b16 %v848
        %v997 = vunpack.c.l.b16 %v849
        %v998 = vunpack.c.l.b16 %v850
        %v999 = vunpack.c.l.b16 %v851
        %v1000 = vunpack.c.l.b16 %v852
        %v1001 = vunpack.c.l.b16 %v853
        %v1002 = vunpack.c.l.b16 %v854
        %v1003 = vunpack.c.l.b16 %v855
        %v1004 = vunpack.c.l.b16 %v856
        %v1005 = vpack.c.b16 %v990, %v989
        %v1006 = vpack.c.b16 %v992, %v991
        %v1007 = vpack.c.b16 %v994, %v993
        %v1008 = vpack.c.b16 %v996, %v995
        %v1009 = vpack.c.b16 %v998, %v997
        %v1010 = vpack.c.b16 %v1000, %v999
        %v1011 = vpack.c.b16 %v1002, %v1001
        %v1012 = vpack.c.b16 %v1004, %v1003
        %1021 = vmatprep.subr.bf16.mxu0 0
        %1022 = vmatpush1.bf16.msra.mxu0 %v1005
        %1023 = vmatprep.subr.bf16.mxu0 0
        %1024 = vmatpush1.bf16.msra.mxu0 %v1006
        %1025 = vmatprep.subr.bf16.mxu0 0
        %1026 = vmatpush1.bf16.msra.mxu0 %v1007
        %1027 = vmatprep.subr.bf16.mxu0 0
        %1028 = vmatpush1.bf16.msra.mxu0 %v1008
        %1029 = vmatprep.subr.bf16.mxu0 0
        %1030 = vmatpush1.bf16.msra.mxu0 %v1009
        %1031 = vmatprep.subr.bf16.mxu0 0
        %1032 = vmatpush1.bf16.msra.mxu0 %v1010
        %1033 = vmatprep.subr.bf16.mxu0 0
        %1034 = vmatpush1.bf16.msra.mxu0 %v1011
        %1035 = vmatprep.subr.bf16.mxu0 0
        %1036 = vmatpush1.bf16.msra.mxu0 %v1012
        %1037 = vmatprep.subr.bf16.mxu0 0
        %1038 = vmatpush1.bf16.msra.mxu0 0
        %1039 = vmatprep.subr.bf16.mxu0 0
        %1040 = vmatpush1.bf16.msra.mxu0 0
        %1041 = vmatprep.subr.bf16.mxu0 0
        %1042 = vmatpush1.bf16.msra.mxu0 0
        %1043 = vmatprep.subr.bf16.mxu0 0
        %1044 = vmatpush1.bf16.msra.mxu0 0
        %1045 = vmatprep.subr.bf16.mxu0 0
        %1046 = vmatpush1.bf16.msra.mxu0 0
        %1047 = vmatprep.subr.bf16.mxu0 0
        %1048 = vmatpush1.bf16.msra.mxu0 0
        %1049 = vmatprep.subr.bf16.mxu0 0
        %1050 = vmatpush1.bf16.msra.mxu0 0
        %1051 = vmatprep.subr.bf16.mxu0 0
        %1052 = vmatpush1.bf16.msra.mxu0 0
        %1053 = vmatprep.mubr.bf16.mxu0 0
        %1054 = vmatmul.mubr.bf16.gmra.mrb[0].mxu0 %v839
        %v1055 = vpop.f32.mrb[0].mxu0
        %v1056 = vadd.f32 %v959, %v1055
        %v1057 = vpop.f32.mrb[0].mxu0
        %v1058 = vpop.f32.mrb[0].mxu0
        %v1059 = vadd.f32 %v962, %v1058
        %v1060 = vpop.f32.mrb[0].mxu0
        %1061 = vmatprep.mubr.bf16.mxu0 0
        %1062 = vmatmul.mubr.bf16.gmra.mrb[0].mxu0 %v840
        %v1063 = vpop.f32.mrb[0].mxu0
        %v1064 = vadd.f32 %v967, %v1063
        %v1065 = vpop.f32.mrb[0].mxu0
        %v1066 = vpop.f32.mrb[0].mxu0
        %v1067 = vadd.f32 %v970, %v1066
        %v1068 = vpop.f32.mrb[0].mxu0
        %1069 = vdwg.mxu0
        %v1070 = vpack.c.bf16 %v836, %v837
        %v1071 = vpack.c.bf16 %v838, %v835
        %s1072 = scalar_lea.vmem [#allocation10], 128
        %v1073 = vld [vmem:[%s1072] sm:$0xf]
        %v1074 = vld [vmem:[%s1072 + $0x4] sm:$0xf]
        %v1075 = vld [vmem:[%s1072 + $0x8] sm:$0xf]
        %v1076 = vld [vmem:[%s1072 + $0xc] sm:$0xf]
        %v1077 = vld [vmem:[%s1072 + $0x10] sm:$0xf]
        %v1078 = vld [vmem:[%s1072 + $0x14] sm:$0xf]
        %v1079 = vld [vmem:[%s1072 + $0x18] sm:$0xf]
        %v1080 = vld [vmem:[%s1072 + $0x1c] sm:$0xf]
        %v1081 = vld [vmem:[%s1072 + $0x20] sm:$0xf]
        %v1082 = vld [vmem:[%s1072 + $0x24] sm:$0xf]
        %v1083 = vld [vmem:[%s1072 + $0x28] sm:$0xf]
        %v1084 = vld [vmem:[%s1072 + $0x2c] sm:$0xf]
        %v1085 = vld [vmem:[%s1072 + $0x30] sm:$0xf]
        %v1086 = vld [vmem:[%s1072 + $0x34] sm:$0xf]
        %v1087 = vld [vmem:[%s1072 + $0x38] sm:$0xf]
        %v1088 = vld [vmem:[%s1072 + $0x3c] sm:$0xf]
        %v1105 = vunpack.c.l.b16 %v1073
        %v1106 = vunpack.c.l.b16 %v1074
        %v1107 = vunpack.c.l.b16 %v1075
        %v1108 = vunpack.c.l.b16 %v1076
        %v1109 = vunpack.c.l.b16 %v1077
        %v1110 = vunpack.c.l.b16 %v1078
        %v1111 = vunpack.c.l.b16 %v1079
        %v1112 = vunpack.c.l.b16 %v1080
        %v1113 = vunpack.c.l.b16 %v1081
        %v1114 = vunpack.c.l.b16 %v1082
        %v1115 = vunpack.c.l.b16 %v1083
        %v1116 = vunpack.c.l.b16 %v1084
        %v1117 = vunpack.c.l.b16 %v1085
        %v1118 = vunpack.c.l.b16 %v1086
        %v1119 = vunpack.c.l.b16 %v1087
        %v1120 = vunpack.c.l.b16 %v1088
        %v1121 = vpack.c.b16 %v1106, %v1105
        %v1122 = vpack.c.b16 %v1108, %v1107
        %v1123 = vpack.c.b16 %v1110, %v1109
        %v1124 = vpack.c.b16 %v1112, %v1111
        %v1125 = vpack.c.b16 %v1114, %v1113
        %v1126 = vpack.c.b16 %v1116, %v1115
        %v1127 = vpack.c.b16 %v1118, %v1117
        %v1128 = vpack.c.b16 %v1120, %v1119
        %1137 = vmatprep.subr.bf16.mxu0 0
        %1138 = vmatpush1.bf16.msra.mxu0 %v1121
        %1139 = vmatprep.subr.bf16.mxu0 0
        %1140 = vmatpush1.bf16.msra.mxu0 %v1122
        %1141 = vmatprep.subr.bf16.mxu0 0
        %1142 = vmatpush1.bf16.msra.mxu0 %v1123
        %1143 = vmatprep.subr.bf16.mxu0 0
        %1144 = vmatpush1.bf16.msra.mxu0 %v1124
        %1145 = vmatprep.subr.bf16.mxu0 0
        %1146 = vmatpush1.bf16.msra.mxu0 %v1125
        %1147 = vmatprep.subr.bf16.mxu0 0
        %1148 = vmatpush1.bf16.msra.mxu0 %v1126
        %1149 = vmatprep.subr.bf16.mxu0 0
        %1150 = vmatpush1.bf16.msra.mxu0 %v1127
        %1151 = vmatprep.subr.bf16.mxu0 0
        %1152 = vmatpush1.bf16.msra.mxu0 %v1128
        %1153 = vmatprep.subr.bf16.mxu0 0
        %1154 = vmatpush1.bf16.msra.mxu0 0
        %1155 = vmatprep.subr.bf16.mxu0 0
        %1156 = vmatpush1.bf16.msra.mxu0 0
        %1157 = vmatprep.subr.bf16.mxu0 0
        %1158 = vmatpush1.bf16.msra.mxu0 0
        %1159 = vmatprep.subr.bf16.mxu0 0
        %1160 = vmatpush1.bf16.msra.mxu0 0
        %1161 = vmatprep.subr.bf16.mxu0 0
        %1162 = vmatpush1.bf16.msra.mxu0 0
        %1163 = vmatprep.subr.bf16.mxu0 0
        %1164 = vmatpush1.bf16.msra.mxu0 0
        %1165 = vmatprep.subr.bf16.mxu0 0
        %1166 = vmatpush1.bf16.msra.mxu0 0
        %1167 = vmatprep.subr.bf16.mxu0 0
        %1168 = vmatpush1.bf16.msra.mxu0 0
        %1169 = vmatprep.mubr.bf16.mxu0 0
        %1170 = vmatmul.mubr.bf16.gmra.mrb[0].mxu0 %v1070
        %v1171 = vpop.f32.mrb[0].mxu0
        %v1172 = vadd.f32 0.0, %v1171
        %v1173 = vpop.f32.mrb[0].mxu0
        %v1174 = vpop.f32.mrb[0].mxu0
        %v1175 = vadd.f32 0.0, %v1174
        %v1176 = vpop.f32.mrb[0].mxu0
        %1177 = vmatprep.mubr.bf16.mxu0 0
        %1178 = vmatmul.mubr.bf16.gmra.mrb[0].mxu0 %v1071
        %v1179 = vpop.f32.mrb[0].mxu0
        %v1180 = vadd.f32 0.0, %v1179
        %v1181 = vpop.f32.mrb[0].mxu0
        %v1182 = vpop.f32.mrb[0].mxu0
        %v1183 = vadd.f32 0.0, %v1182
        %v1184 = vpop.f32.mrb[0].mxu0
        %1185 = vdwg.mxu0
        %v1186 = vadd.f32 %v1056, %v1172
        %v1187 = vadd.f32 %v1059, %v1175
        %v1188 = vadd.f32 %v1064, %v1180
        %v1189 = vadd.f32 %v1067, %v1183
        %v1190 = vld [vmem:[%s9] sm:$0x1]
        %v1192 = vlaneseq
        %v1193 = vshrl.u32 %v1192, 7
        %v1194 = vsub.s32 0, %v1193
        %v1195 = vrot.slane %v1190, %v1194
        %v1197 = vadd.f32 %v1186, %v1195
        %v1198 = vadd.f32 %v1187, %v1195
        %v1199 = vadd.f32 %v1188, %v1195
        %v1200 = vadd.f32 %v1189, %v1195
        %v1201 = vld [vmem:[%s10] sm:$0x1]
        %v1202 = vmul.f32 %v1197, %v1197
        %v1203 = vmul.f32 %v1198, %v1198
        %v1204 = vmul.f32 %v1199, %v1199
        %v1205 = vmul.f32 %v1200, %v1200
        %1206 = vadd.xlane.f32.xlu0 %v1202
        %v1207 = vpop.xlane.xlu0 %1206
        %1208 = vadd.xlane.f32.xlu0 %v1203
        %v1209 = vpop.xlane.xlu0 %1208
        %1210 = vadd.xlane.f32.xlu0 %v1204
        %v1211 = vpop.xlane.xlu0 %1210
        %1212 = vadd.xlane.f32.xlu0 %v1205
        %v1213 = vpop.xlane.xlu0 %1212
        %v1214 = vrsqrt.pop %v1207
        %v1215 = vmul.f32 %v1207, %v1214
        %vm1216 = vcmp.eq.f32.partialorder %v1207, inf
        %v1217 = vsel %vm1216, %v1207, %v1215
        %vm1218 = vcmp.eq.f32.partialorder %v1207, 0.0
        %v1219 = vand.u32 %v1207, 2147483648
        %v1220 = vsel %vm1218, %v1219, %v1217
        %v1221 = vrsqrt.pop %v1209
        %v1222 = vmul.f32 %v1209, %v1221
        %vm1223 = vcmp.eq.f32.partialorder %v1209, inf
        %v1224 = vsel %vm1223, %v1209, %v1222
        %vm1225 = vcmp.eq.f32.partialorder %v1209, 0.0
        %v1226 = vand.u32 %v1209, 2147483648
        %v1227 = vsel %vm1225, %v1226, %v1224
        %v1228 = vrsqrt.pop %v1211
        %v1229 = vmul.f32 %v1211, %v1228
        %vm1230 = vcmp.eq.f32.partialorder %v1211, inf
        %v1231 = vsel %vm1230, %v1211, %v1229
        %vm1232 = vcmp.eq.f32.partialorder %v1211, 0.0
        %v1233 = vand.u32 %v1211, 2147483648
        %v1234 = vsel %vm1232, %v1233, %v1231
        %v1235 = vrsqrt.pop %v1213
        %v1236 = vmul.f32 %v1213, %v1235
        %vm1237 = vcmp.eq.f32.partialorder %v1213, inf
        %v1238 = vsel %vm1237, %v1213, %v1236
        %vm1239 = vcmp.eq.f32.partialorder %v1213, 0.0
        %v1240 = vand.u32 %v1213, 2147483648
        %v1241 = vsel %vm1239, %v1240, %v1238
        %v1242 = vmax.f32 %v1220, 1e-12
        %v1243 = vmax.f32 %v1227, 1e-12
        %v1244 = vmax.f32 %v1234, 1e-12
        %v1245 = vmax.f32 %v1241, 1e-12
        %v1246 = vrcp.pop %v1242
        %v1247 = vmul.f32 %v1197, %v1246
        %v1248 = vrcp.pop %v1243
        %v1249 = vmul.f32 %v1198, %v1248
        %v1250 = vrcp.pop %v1244
        %v1251 = vmul.f32 %v1199, %v1250
        %v1252 = vrcp.pop %v1245
        %v1253 = vmul.f32 %v1200, %v1252
        %v1254 = vmul.f32 %v1247, 8.0
        %v1255 = vmul.f32 %v1249, 8.0
        %v1256 = vmul.f32 %v1251, 8.0
        %v1257 = vmul.f32 %v1253, 8.0
        %v1259 = vlaneseq
        %v1260 = vshrl.u32 %v1259, 7
        %v1261 = vsub.s32 0, %v1260
        %v1262 = vrot.slane %v1201, %v1261
        %v1264 = vmul.f32 %v1254, %v1262
        %v1265 = vmul.f32 %v1255, %v1262
        %v1266 = vmul.f32 %v1256, %v1262
        %v1267 = vmul.f32 %v1257, %v1262
        %v1268 = vld [vmem:[%s668] sm:$0x1]
        %v1269 = vadd.f32 %v1268, 1.0
        %v1271 = vlaneseq
        %v1272 = vshrl.u32 %v1271, 7
        %v1273 = vsub.s32 0, %v1272
        %v1274 = vrot.slane %v1269, %v1273
        %v1276 = vmul.f32 %v1264, %v1274
        %v1277 = vmul.f32 %v1265, %v1274
        %v1278 = vmul.f32 %v1266, %v1274
        %v1279 = vmul.f32 %v1267, %v1274
        %v1280 = vld [vmem:[%s671] sm:$0x1]
        %v1282 = vlaneseq
        %v1283 = vshrl.u32 %v1282, 7
        %v1284 = vsub.s32 0, %v1283
        %v1285 = vrot.slane %v1280, %v1284
        %v1287 = vadd.f32 %v1276, %v1285
        %v1288 = vadd.f32 %v1277, %v1285
        %v1289 = vadd.f32 %v1278, %v1285
        %v1290 = vadd.f32 %v1279, %v1285
        %v1291 = vxor.u32 %v1287, 2147483648
        %v1292 = vxor.u32 %v1288, 2147483648
        %v1293 = vxor.u32 %v1289, 2147483648
        %v1294 = vxor.u32 %v1290, 2147483648
        %v1295 = vmul.f32 %v1291, 1.442695
        %v1296 = vpow.pop %v1295
        %v1297 = vmul.f32 %v1292, 1.442695
        %v1298 = vpow.pop %v1297
        %v1299 = vmul.f32 %v1293, 1.442695
        %v1300 = vpow.pop %v1299
        %v1301 = vmul.f32 %v1294, 1.442695
        %v1302 = vpow.pop %v1301
        %v1303 = vadd.f32 %v1296, 1.0
        %v1304 = vadd.f32 %v1298, 1.0
        %v1305 = vadd.f32 %v1300, 1.0
        %v1306 = vadd.f32 %v1302, 1.0
        %v1307 = vrcp.pop %v1303
        %v1308 = vmul.f32 1.0, %v1307
        %v1309 = vrcp.pop %v1304
        %v1310 = vmul.f32 1.0, %v1309
        %v1311 = vrcp.pop %v1305
        %v1312 = vmul.f32 1.0, %v1311
        %v1313 = vrcp.pop %v1306
        %v1314 = vmul.f32 1.0, %v1313
        %v1315 = vmul.f32 %v1287, %v1308
        %v1316 = vmul.f32 %v1288, %v1310
        %v1317 = vmul.f32 %v1289, %v1312
        %v1318 = vmul.f32 %v1290, %v1314
        %v1319 = vmul.f32 %v1315, %v718
        %v1320 = vmul.f32 %v1316, %v719
        %v1321 = vmul.f32 %v1317, %v720
        %v1322 = vmul.f32 %v1318, %v721
        %v1323 = vrot.slane %v1319, 7
        %v1324 = vrot.slane %v1320, 7
        %v1325 = vrot.slane %v1321, 7
        %v1326 = vrot.slane %v1322, 7
        %v1327 = vsel %vm825, %v1325, %v1326
        %v1328 = vsel %vm825, %v1324, %v1325
        %v1329 = vsel %vm825, %v1323, %v1324
        %v1330 = vsel %vm825, %v1326, %v1323
        %v1331 = vrot.slane %v1319, 1
        %v1332 = vrot.slane %v1320, 1
        %v1333 = vrot.slane %v1321, 1
        %v1334 = vrot.slane %v1322, 1
        %v1335 = vsel %vm834, %v1333, %v1334
        %v1336 = vsel %vm834, %v1332, %v1333
        %v1337 = vsel %vm834, %v1331, %v1332
        %v1338 = vsel %vm834, %v1334, %v1331
        %v1339 = vpack.c.bf16 %v1329, %v1330
        %v1340 = vpack.c.bf16 %v1327, %v1328
        %v1341 = vld [vmem:[#allocation12] sm:$0xf]
        %v1342 = vld [vmem:[#allocation12 + $0x4] sm:$0xf]
        %v1343 = vld [vmem:[#allocation12 + $0x8] sm:$0xf]
        %v1344 = vld [vmem:[#allocation12 + $0xc] sm:$0xf]
        %v1345 = vld [vmem:[#allocation12 + $0x10] sm:$0xf]
        %v1346 = vld [vmem:[#allocation12 + $0x14] sm:$0xf]
        %v1347 = vld [vmem:[#allocation12 + $0x18] sm:$0xf]
        %v1348 = vld [vmem:[#allocation12 + $0x1c] sm:$0xf]
        %v1349 = vld [vmem:[#allocation12 + $0x20] sm:$0xf]
        %v1350 = vld [vmem:[#allocation12 + $0x24] sm:$0xf]
        %v1351 = vld [vmem:[#allocation12 + $0x28] sm:$0xf]
        %v1352 = vld [vmem:[#allocation12 + $0x2c] sm:$0xf]
        %v1353 = vld [vmem:[#allocation12 + $0x30] sm:$0xf]
        %v1354 = vld [vmem:[#allocation12 + $0x34] sm:$0xf]
        %v1355 = vld [vmem:[#allocation12 + $0x38] sm:$0xf]
        %v1356 = vld [vmem:[#allocation12 + $0x3c] sm:$0xf]
        %v1357 = vpack.c.bf16 %v1320, %v1319
        %v1358 = vpack.c.bf16 %v1322, %v1321
        %s1359 = scalar_lea.vmem [#allocation12], 64
        %v1360 = vld [vmem:[%s1359] sm:$0xf]
        %v1361 = vld [vmem:[%s1359 + $0x4] sm:$0xf]
        %v1362 = vld [vmem:[%s1359 + $0x8] sm:$0xf]
        %v1363 = vld [vmem:[%s1359 + $0xc] sm:$0xf]
        %v1364 = vld [vmem:[%s1359 + $0x10] sm:$0xf]
        %v1365 = vld [vmem:[%s1359 + $0x14] sm:$0xf]
        %v1366 = vld [vmem:[%s1359 + $0x18] sm:$0xf]
        %v1367 = vld [vmem:[%s1359 + $0x1c] sm:$0xf]
        %v1368 = vld [vmem:[%s1359 + $0x20] sm:$0xf]
        %v1369 = vld [vmem:[%s1359 + $0x24] sm:$0xf]
        %v1370 = vld [vmem:[%s1359 + $0x28] sm:$0xf]
        %v1371 = vld [vmem:[%s1359 + $0x2c] sm:$0xf]
        %v1372 = vld [vmem:[%s1359 + $0x30] sm:$0xf]
        %v1373 = vld [vmem:[%s1359 + $0x34] sm:$0xf]
        %v1374 = vld [vmem:[%s1359 + $0x38] sm:$0xf]
        %v1375 = vld [vmem:[%s1359 + $0x3c] sm:$0xf]
        %v1392 = vunpack.c.l.b16 %v1360
        %v1393 = vunpack.c.l.b16 %v1361
        %v1394 = vunpack.c.l.b16 %v1362
        %v1395 = vunpack.c.l.b16 %v1363
        %v1396 = vunpack.c.l.b16 %v1364
        %v1397 = vunpack.c.l.b16 %v1365
        %v1398 = vunpack.c.l.b16 %v1366
        %v1399 = vunpack.c.l.b16 %v1367
        %v1400 = vunpack.c.l.b16 %v1368
        %v1401 = vunpack.c.l.b16 %v1369
        %v1402 = vunpack.c.l.b16 %v1370
        %v1403 = vunpack.c.l.b16 %v1371
        %v1404 = vunpack.c.l.b16 %v1372
        %v1405 = vunpack.c.l.b16 %v1373
        %v1406 = vunpack.c.l.b16 %v1374
        %v1407 = vunpack.c.l.b16 %v1375
        %v1408 = vpack.c.b16 %v1393, %v1392
        %v1409 = vpack.c.b16 %v1395, %v1394
        %v1410 = vpack.c.b16 %v1397, %v1396
        %v1411 = vpack.c.b16 %v1399, %v1398
        %v1412 = vpack.c.b16 %v1401, %v1400
        %v1413 = vpack.c.b16 %v1403, %v1402
        %v1414 = vpack.c.b16 %v1405, %v1404
        %v1415 = vpack.c.b16 %v1407, %v1406
        %1424 = vmatprep.subr.bf16.mxu0 0
        %1425 = vmatpush1.bf16.msra.mxu0 %v1408
        %1426 = vmatprep.subr.bf16.mxu0 0
        %1427 = vmatpush1.bf16.msra.mxu0 %v1409
        %1428 = vmatprep.subr.bf16.mxu0 0
        %1429 = vmatpush1.bf16.msra.mxu0 %v1410
        %1430 = vmatprep.subr.bf16.mxu0 0
        %1431 = vmatpush1.bf16.msra.mxu0 %v1411
        %1432 = vmatprep.subr.bf16.mxu0 0
        %1433 = vmatpush1.bf16.msra.mxu0 %v1412
        %1434 = vmatprep.subr.bf16.mxu0 0
        %1435 = vmatpush1.bf16.msra.mxu0 %v1413
        %1436 = vmatprep.subr.bf16.mxu0 0
        %1437 = vmatpush1.bf16.msra.mxu0 %v1414
        %1438 = vmatprep.subr.bf16.mxu0 0
        %1439 = vmatpush1.bf16.msra.mxu0 %v1415
        %1440 = vmatprep.subr.bf16.mxu0 0
        %1441 = vmatpush1.bf16.msra.mxu0 0
        %1442 = vmatprep.subr.bf16.mxu0 0
        %1443 = vmatpush1.bf16.msra.mxu0 0
        %1444 = vmatprep.subr.bf16.mxu0 0
        %1445 = vmatpush1.bf16.msra.mxu0 0
        %1446 = vmatprep.subr.bf16.mxu0 0
        %1447 = vmatpush1.bf16.msra.mxu0 0
        %1448 = vmatprep.subr.bf16.mxu0 0
        %1449 = vmatpush1.bf16.msra.mxu0 0
        %1450 = vmatprep.subr.bf16.mxu0 0
        %1451 = vmatpush1.bf16.msra.mxu0 0
        %1452 = vmatprep.subr.bf16.mxu0 0
        %1453 = vmatpush1.bf16.msra.mxu0 0
        %1454 = vmatprep.subr.bf16.mxu0 0
        %1455 = vmatpush1.bf16.msra.mxu0 0
        %1456 = vmatprep.mubr.bf16.mxu0 0
        %1457 = vmatmul.mubr.bf16.gmra.mrb[0].mxu0 %v1357
        %v1458 = vpop.f32.mrb[0].mxu0
        %v1459 = vpop.f32.mrb[0].mxu0
        %v1460 = vpop.f32.mrb[0].mxu0
        %v1461 = vadd.f32 0.0, %v1460
        %v1462 = vpop.f32.mrb[0].mxu0
        %1463 = vmatprep.mubr.bf16.mxu0 0
        %1464 = vmatmul.mubr.bf16.gmra.mrb[0].mxu0 %v1358
        %v1465 = vpop.f32.mrb[0].mxu0
        %v1466 = vadd.f32 0.0, %v1465
        %v1467 = vpop.f32.mrb[0].mxu0
        %v1468 = vpop.f32.mrb[0].mxu0
        %v1469 = vpop.f32.mrb[0].mxu0
        %1470 = vdwg.mxu0
        %v1487 = vunpack.c.l.b16 %v1341
        %v1488 = vunpack.c.l.b16 %v1342
        %v1489 = vunpack.c.l.b16 %v1343
        %v1490 = vunpack.c.l.b16 %v1344
        %v1491 = vunpack.c.l.b16 %v1345
        %v1492 = vunpack.c.l.b16 %v1346
        %v1493 = vunpack.c.l.b16 %v1347
        %v1494 = vunpack.c.l.b16 %v1348
        %v1495 = vunpack.c.l.b16 %v1349
        %v1496 = vunpack.c.l.b16 %v1350
        %v1497 = vunpack.c.l.b16 %v1351
        %v1498 = vunpack.c.l.b16 %v1352
        %v1499 = vunpack.c.l.b16 %v1353
        %v1500 = vunpack.c.l.b16 %v1354
        %v1501 = vunpack.c.l.b16 %v1355
        %v1502 = vunpack.c.l.b16 %v1356
        %v1503 = vpack.c.b16 %v1488, %v1487
        %v1504 = vpack.c.b16 %v1490, %v1489
        %v1505 = vpack.c.b16 %v1492, %v1491
        %v1506 = vpack.c.b16 %v1494, %v1493
        %v1507 = vpack.c.b16 %v1496, %v1495
        %v1508 = vpack.c.b16 %v1498, %v1497
        %v1509 = vpack.c.b16 %v1500, %v1499
        %v1510 = vpack.c.b16 %v1502, %v1501
        %1519 = vmatprep.subr.bf16.mxu0 0
        %1520 = vmatpush1.bf16.msra.mxu0 %v1503
        %1521 = vmatprep.subr.bf16.mxu0 0
        %1522 = vmatpush1.bf16.msra.mxu0 %v1504
        %1523 = vmatprep.subr.bf16.mxu0 0
        %1524 = vmatpush1.bf16.msra.mxu0 %v1505
        %1525 = vmatprep.subr.bf16.mxu0 0
        %1526 = vmatpush1.bf16.msra.mxu0 %v1506
        %1527 = vmatprep.subr.bf16.mxu0 0
        %1528 = vmatpush1.bf16.msra.mxu0 %v1507
        %1529 = vmatprep.subr.bf16.mxu0 0
        %1530 = vmatpush1.bf16.msra.mxu0 %v1508
        %1531 = vmatprep.subr.bf16.mxu0 0
        %1532 = vmatpush1.bf16.msra.mxu0 %v1509
        %1533 = vmatprep.subr.bf16.mxu0 0
        %1534 = vmatpush1.bf16.msra.mxu0 %v1510
        %1535 = vmatprep.subr.bf16.mxu0 0
        %1536 = vmatpush1.bf16.msra.mxu0 0
        %1537 = vmatprep.subr.bf16.mxu0 0
        %1538 = vmatpush1.bf16.msra.mxu0 0
        %1539 = vmatprep.subr.bf16.mxu0 0
        %1540 = vmatpush1.bf16.msra.mxu0 0
        %1541 = vmatprep.subr.bf16.mxu0 0
        %1542 = vmatpush1.bf16.msra.mxu0 0
        %1543 = vmatprep.subr.bf16.mxu0 0
        %1544 = vmatpush1.bf16.msra.mxu0 0
        %1545 = vmatprep.subr.bf16.mxu0 0
        %1546 = vmatpush1.bf16.msra.mxu0 0
        %1547 = vmatprep.subr.bf16.mxu0 0
        %1548 = vmatpush1.bf16.msra.mxu0 0
        %1549 = vmatprep.subr.bf16.mxu0 0
        %1550 = vmatpush1.bf16.msra.mxu0 0
        %1551 = vmatprep.mubr.bf16.mxu0 0
        %1552 = vmatmul.mubr.bf16.gmra.mrb[0].mxu0 %v1339
        %v1553 = vpop.f32.mrb[0].mxu0
        %v1554 = vpop.f32.mrb[0].mxu0
        %v1555 = vpop.f32.mrb[0].mxu0
        %v1556 = vadd.f32 %v1461, %v1555
        %v1557 = vpop.f32.mrb[0].mxu0
        %1558 = vmatprep.mubr.bf16.mxu0 0
        %1559 = vmatmul.mubr.bf16.gmra.mrb[0].mxu0 %v1340
        %v1560 = vpop.f32.mrb[0].mxu0
        %v1561 = vadd.f32 %v1466, %v1560
        %v1562 = vpop.f32.mrb[0].mxu0
        %v1563 = vpop.f32.mrb[0].mxu0
        %v1564 = vpop.f32.mrb[0].mxu0
        %1565 = vdwg.mxu0
        %v1566 = vpack.c.bf16 %v1336, %v1337
        %v1567 = vpack.c.bf16 %v1338, %v1335
        %s1568 = scalar_lea.vmem [#allocation12], 128
        %v1569 = vld [vmem:[%s1568] sm:$0xf]
        %v1570 = vld [vmem:[%s1568 + $0x4] sm:$0xf]
        %v1571 = vld [vmem:[%s1568 + $0x8] sm:$0xf]
        %v1572 = vld [vmem:[%s1568 + $0xc] sm:$0xf]
        %v1573 = vld [vmem:[%s1568 + $0x10] sm:$0xf]
        %v1574 = vld [vmem:[%s1568 + $0x14] sm:$0xf]
        %v1575 = vld [vmem:[%s1568 + $0x18] sm:$0xf]
        %v1576 = vld [vmem:[%s1568 + $0x1c] sm:$0xf]
        %v1577 = vld [vmem:[%s1568 + $0x20] sm:$0xf]
        %v1578 = vld [vmem:[%s1568 + $0x24] sm:$0xf]
        %v1579 = vld [vmem:[%s1568 + $0x28] sm:$0xf]
        %v1580 = vld [vmem:[%s1568 + $0x2c] sm:$0xf]
        %v1581 = vld [vmem:[%s1568 + $0x30] sm:$0xf]
        %v1582 = vld [vmem:[%s1568 + $0x34] sm:$0xf]
        %v1583 = vld [vmem:[%s1568 + $0x38] sm:$0xf]
        %v1584 = vld [vmem:[%s1568 + $0x3c] sm:$0xf]
        %v1601 = vunpack.c.l.b16 %v1569
        %v1602 = vunpack.c.l.b16 %v1570
        %v1603 = vunpack.c.l.b16 %v1571
        %v1604 = vunpack.c.l.b16 %v1572
        %v1605 = vunpack.c.l.b16 %v1573
        %v1606 = vunpack.c.l.b16 %v1574
        %v1607 = vunpack.c.l.b16 %v1575
        %v1608 = vunpack.c.l.b16 %v1576
        %v1609 = vunpack.c.l.b16 %v1577
        %v1610 = vunpack.c.l.b16 %v1578
        %v1611 = vunpack.c.l.b16 %v1579
        %v1612 = vunpack.c.l.b16 %v1580
        %v1613 = vunpack.c.l.b16 %v1581
        %v1614 = vunpack.c.l.b16 %v1582
        %v1615 = vunpack.c.l.b16 %v1583
        %v1616 = vunpack.c.l.b16 %v1584
        %v1617 = vpack.c.b16 %v1602, %v1601
        %v1618 = vpack.c.b16 %v1604, %v1603
        %v1619 = vpack.c.b16 %v1606, %v1605
        %v1620 = vpack.c.b16 %v1608, %v1607
        %v1621 = vpack.c.b16 %v1610, %v1609
        %v1622 = vpack.c.b16 %v1612, %v1611
        %v1623 = vpack.c.b16 %v1614, %v1613
        %v1624 = vpack.c.b16 %v1616, %v1615
        %1633 = vmatprep.subr.bf16.mxu0 0
        %1634 = vmatpush1.bf16.msra.mxu0 %v1617
        %1635 = vmatprep.subr.bf16.mxu0 0
        %1636 = vmatpush1.bf16.msra.mxu0 %v1618
        %1637 = vmatprep.subr.bf16.mxu0 0
        %1638 = vmatpush1.bf16.msra.mxu0 %v1619
        %1639 = vmatprep.subr.bf16.mxu0 0
        %1640 = vmatpush1.bf16.msra.mxu0 %v1620
        %1641 = vmatprep.subr.bf16.mxu0 0
        %1642 = vmatpush1.bf16.msra.mxu0 %v1621
        %1643 = vmatprep.subr.bf16.mxu0 0
        %1644 = vmatpush1.bf16.msra.mxu0 %v1622
        %1645 = vmatprep.subr.bf16.mxu0 0
        %1646 = vmatpush1.bf16.msra.mxu0 %v1623
        %1647 = vmatprep.subr.bf16.mxu0 0
        %1648 = vmatpush1.bf16.msra.mxu0 %v1624
        %1649 = vmatprep.subr.bf16.mxu0 0
        %1650 = vmatpush1.bf16.msra.mxu0 0
        %1651 = vmatprep.subr.bf16.mxu0 0
        %1652 = vmatpush1.bf16.msra.mxu0 0
        %1653 = vmatprep.subr.bf16.mxu0 0
        %1654 = vmatpush1.bf16.msra.mxu0 0
        %1655 = vmatprep.subr.bf16.mxu0 0
        %1656 = vmatpush1.bf16.msra.mxu0 0
        %1657 = vmatprep.subr.bf16.mxu0 0
        %1658 = vmatpush1.bf16.msra.mxu0 0
        %1659 = vmatprep.subr.bf16.mxu0 0
        %1660 = vmatpush1.bf16.msra.mxu0 0
        %1661 = vmatprep.subr.bf16.mxu0 0
        %1662 = vmatpush1.bf16.msra.mxu0 0
        %1663 = vmatprep.subr.bf16.mxu0 0
        %1664 = vmatpush1.bf16.msra.mxu0 0
        %1665 = vmatprep.mubr.bf16.mxu0 0
        %1666 = vmatmul.mubr.bf16.gmra.mrb[0].mxu0 %v1566
        %v1667 = vpop.f32.mrb[0].mxu0
        %v1668 = vpop.f32.mrb[0].mxu0
        %v1669 = vpop.f32.mrb[0].mxu0
        %v1670 = vadd.f32 0.0, %v1669
        %v1671 = vpop.f32.mrb[0].mxu0
        %1672 = vmatprep.mubr.bf16.mxu0 0
        %1673 = vmatmul.mubr.bf16.gmra.mrb[0].mxu0 %v1567
        %v1674 = vpop.f32.mrb[0].mxu0
        %v1675 = vadd.f32 0.0, %v1674
        %v1676 = vpop.f32.mrb[0].mxu0
        %v1677 = vpop.f32.mrb[0].mxu0
        %v1678 = vpop.f32.mrb[0].mxu0
        %1679 = vdwg.mxu0
        %v1680 = vadd.f32 %v1556, %v1670
        %v1681 = vadd.f32 %v1561, %v1675
        %v1682 = vld [vmem:[%s12] sm:$0x1]
        %v1684 = vlaneseq
        %v1685 = vshrl.u32 %v1684, 7
        %v1686 = vsub.s32 0, %v1685
        %v1687 = vrot.slane %v1682, %v1686
        %v1689 = vadd.f32 %v1680, %v1687
        %v1690 = vadd.f32 %v1681, %v1687
        %v1691 = vld [vmem:[#allocation13] sm:$0xf]
        %v1692 = vld [vmem:[#allocation13 + $0x4] sm:$0xf]
        %v1693 = vld [vmem:[#allocation13 + $0x8] sm:$0xf]
        %v1694 = vld [vmem:[#allocation13 + $0xc] sm:$0xf]
        %v1695 = vld [vmem:[#allocation13 + $0x10] sm:$0xf]
        %v1696 = vld [vmem:[#allocation13 + $0x14] sm:$0xf]
        %v1697 = vld [vmem:[#allocation13 + $0x18] sm:$0xf]
        %v1698 = vld [vmem:[#allocation13 + $0x1c] sm:$0xf]
        %v1699 = vld [vmem:[#allocation13 + $0x20] sm:$0xf]
        %v1700 = vld [vmem:[#allocation13 + $0x24] sm:$0xf]
        %v1701 = vld [vmem:[#allocation13 + $0x28] sm:$0xf]
        %v1702 = vld [vmem:[#allocation13 + $0x2c] sm:$0xf]
        %v1703 = vld [vmem:[#allocation13 + $0x30] sm:$0xf]
        %v1704 = vld [vmem:[#allocation13 + $0x34] sm:$0xf]
        %v1705 = vld [vmem:[#allocation13 + $0x38] sm:$0xf]
        %v1706 = vld [vmem:[#allocation13 + $0x3c] sm:$0xf]
        %v1707 = vld [vmem:[%s14] sm:$0x1]
        %v1709 = vlaneseq
        %v1710 = vshrl.u32 %v1709, 7
        %v1711 = vsub.s32 0, %v1710
        %v1712 = vrot.slane %v1707, %v1711
        %v1716 = vunpack.c.l.b16 %v677
        %v1717 = vunpack.c.l.b16 %v678
        %v1718 = vpack.c.b16 %v1717, %v1716
        %v1736 = vunpack.c.l.b16 %v1691
        %v1737 = vunpack.c.l.b16 %v1692
        %v1738 = vunpack.c.l.b16 %v1693
        %v1739 = vunpack.c.l.b16 %v1694
        %v1740 = vunpack.c.l.b16 %v1695
        %v1741 = vunpack.c.l.b16 %v1696
        %v1742 = vunpack.c.l.b16 %v1697
        %v1743 = vunpack.c.l.b16 %v1698
        %v1744 = vunpack.c.l.b16 %v1699
        %v1745 = vunpack.c.l.b16 %v1700
        %v1746 = vunpack.c.l.b16 %v1701
        %v1747 = vunpack.c.l.b16 %v1702
        %v1748 = vunpack.c.l.b16 %v1703
        %v1749 = vunpack.c.l.b16 %v1704
        %v1750 = vunpack.c.l.b16 %v1705
        %v1751 = vunpack.c.l.b16 %v1706
        %v1752 = vpack.c.b16 %v1737, %v1736
        %v1753 = vpack.c.b16 %v1739, %v1738
        %v1754 = vpack.c.b16 %v1741, %v1740
        %v1755 = vpack.c.b16 %v1743, %v1742
        %v1756 = vpack.c.b16 %v1745, %v1744
        %v1757 = vpack.c.b16 %v1747, %v1746
        %v1758 = vpack.c.b16 %v1749, %v1748
        %v1759 = vpack.c.b16 %v1751, %v1750
        %1768 = vmatprep.subr.bf16.mxu0 0
        %1769 = vmatpush1.bf16.msra.mxu0 %v1752
        %1770 = vmatprep.subr.bf16.mxu0 0
        %1771 = vmatpush1.bf16.msra.mxu0 %v1753
        %1772 = vmatprep.subr.bf16.mxu0 0
        %1773 = vmatpush1.bf16.msra.mxu0 %v1754
        %1774 = vmatprep.subr.bf16.mxu0 0
        %1775 = vmatpush1.bf16.msra.mxu0 %v1755
        %1776 = vmatprep.subr.bf16.mxu0 0
        %1777 = vmatpush1.bf16.msra.mxu0 %v1756
        %1778 = vmatprep.subr.bf16.mxu0 0
        %1779 = vmatpush1.bf16.msra.mxu0 %v1757
        %1780 = vmatprep.subr.bf16.mxu0 0
        %1781 = vmatpush1.bf16.msra.mxu0 %v1758
        %1782 = vmatprep.subr.bf16.mxu0 0
        %1783 = vmatpush1.bf16.msra.mxu0 %v1759
        %1784 = vmatprep.subr.bf16.mxu0 0
        %1785 = vmatpush1.bf16.msra.mxu0 0
        %1786 = vmatprep.subr.bf16.mxu0 0
        %1787 = vmatpush1.bf16.msra.mxu0 0
        %1788 = vmatprep.subr.bf16.mxu0 0
        %1789 = vmatpush1.bf16.msra.mxu0 0
        %1790 = vmatprep.subr.bf16.mxu0 0
        %1791 = vmatpush1.bf16.msra.mxu0 0
        %1792 = vmatprep.subr.bf16.mxu0 0
        %1793 = vmatpush1.bf16.msra.mxu0 0
        %1794 = vmatprep.subr.bf16.mxu0 0
        %1795 = vmatpush1.bf16.msra.mxu0 0
        %1796 = vmatprep.subr.bf16.mxu0 0
        %1797 = vmatpush1.bf16.msra.mxu0 0
        %1798 = vmatprep.subr.bf16.mxu0 0
        %1799 = vmatpush1.bf16.msra.mxu0 0
        %1800 = vmatprep.mubr.bf16.mxu0 0
        %1801 = vmatmul.mubr.bf16.gmra.mrb[0].mxu0 %v1718
        %v1802 = vpop.f32.mrb[0].mxu0
        %v1803 = vadd.f32 %v1712, %v1802
        %v1804 = vpop.f32.mrb[0].mxu0
        %v1805 = vpop.f32.mrb[0].mxu0
        %v1806 = vadd.f32 %v1712, %v1805
        %v1807 = vpop.f32.mrb[0].mxu0
        %1808 = vdwg.mxu0
        %v1809 = vld [vmem:[%s674] sm:$0x1]
        %v1811 = vlaneseq
        %v1812 = vshrl.u32 %v1811, 7
        %v1813 = vsub.s32 0, %v1812
        %v1814 = vrot.slane %v1809, %v1813
        %v1816 = vmul.f32 %v1689, %v1814
        %v1817 = vmul.f32 %v1690, %v1814
        %v1818 = vadd.f32 %v1816, %v1803
        %v1819 = vadd.f32 %v1817, %v1806
        %1820 = vst [vmem:[%s664] sm:$0xff] %v1818
        %1821 = vst [vmem:[%s664 + $0x8] sm:$0xff] %v1819
        %s1822 = sand.u32 %s393, 1
        %s1823 = scalar_lea.sflag [#allocation6], %s1822
        %s1824 = sand.u32 %s393, 1
        %s1825 = smul.addr %s1824, 16
        %s1826 = scalar_lea.vmem [#allocation15], %s1825
        // Predicated region
        $region101: #{tpu_custom_call.1} parent=75 // pred_check
          %p1827 = pneg %p403
        $region102: #{tpu_custom_call.1} parent=75 // pred_check_branch
          %1829 = sbr.rel (%p1827) target = $region104
        $region103: #{tpu_custom_call.1} parent=75 // pred_region
          %s1830 = smul.u32 2, %s46
          %s1832 = ssub.s32 256, 256
          %1833 = vsyncadd %s1823, %s1832
          %s1834 = smul.addr %s45, 6
          %s1835 = sadd.s32 %s1830, %s1834
          %s1836 = smul.addr %s1835, 128
          %s1837 = scalar_lea.hbm %s15, %s1836
          %s1838 = sshll.u32 %s1826, 4
          %s1839 = int_to_ptr.vmem [resolvable:$true] %s1838
          %1844 = dma.vmem_to_hbm [thread:$0]  %s1839, 256, %s1837, %s1823, 128, 128, 8
        $region104: #{tpu_custom_call.1} parent=75 // pred_fallthru
          _
      $region76: #{tpu_custom_call.1} parent=5 // pred_fallthru
        _
      %p1845 = scmp.le.s32.totalorder 2, %s36
      // Predicated region
      $region105: #{tpu_custom_call.1} parent=5 // pred_check
        %p1846 = pneg %p1845
      $region106: #{tpu_custom_call.1} parent=5 // pred_check_branch
        %1848 = sbr.rel (%p1846) target = $region108
      $region107: #{tpu_custom_call.1} parent=5 // pred_region
        %s1849 = ssub.s32 %s36, 2
        // Predicated region
        $region109: #{tpu_custom_call.1} parent=107 // pred_check
          %p1850 = pneg %p409
        $region110: #{tpu_custom_call.1} parent=107 // pred_check_branch
          %1852 = sbr.rel (%p1850) target = $region112
        $region111: #{tpu_custom_call.1} parent=107 // pred_region
          %s1853 = sand.u32 %s394, 1
          %s1854 = scalar_lea.sflag [#allocation6], %s1853
          %s1855 = sand.u32 %s394, 1
          %s1856 = smul.addr %s1855, 16
          %s1857 = scalar_lea.vmem [#allocation15], %s1856
          %1858 = dma.done %s1854, 256
        $region112: #{tpu_custom_call.1} parent=107 // pred_fallthru
          _
      $region108: #{tpu_custom_call.1} parent=5 // pred_fallthru
        _
    $region6: #{tpu_custom_call.1} parent=1 // loop_footer
      %s40 = sadd.s32 1, %s36
    $region7: #{tpu_custom_call.1} parent=1 // loop_footer_branch
      %35 = sbr.rel target = $region3
    $region8: #{tpu_custom_call.1} parent=1 // loop_exit
      _
    %1859 = vsyncpa [#allocation5], 1
    %s1860 = scalar_lea.sflag [#allocation5], 1
    %1861 = vsyncpa %s1860, 1
    %1862 = vsyncpa [#allocation8], 1
    %s1863 = scalar_lea.sflag [#allocation8], 1
    %1864 = vsyncpa %s1863, 1
    %1865 = vsyncpa [#allocation11], 1
    %1866 = vsyncpa [#allocation14], 1
    %1867 = vsyncpa [#allocation6], 1
    %s1868 = scalar_lea.sflag [#allocation6], 1
    %1869 = vsyncpa %s1868, 1

</llo_original>
